<compile_context>
chip_gen: v5e
topology: v5e:2x2
jax: 0.10.0
libtpu: 0.0.40
codegen_flags: <defaults>
</compile_context>

<pallas_src>
import functools
import numpy as np
import jax
import jax.numpy as jnp
from jax.experimental import pallas as pl
from jax.experimental.pallas import tpu as pltpu

# ------------------------- small synthetic configuration ----------------------
VOCAB_SIZE = 16
EMB        = 32            # embedding_size
N_VEC      = 8             # sequence length
N_W        = 3             # number of sparse factors
N_LINKS    = N_W + 1       # chord links per position (self, +1, +2, +4)
HID_W      = 32            # hidden width of the fs MLPs  (Ws = [32, 'GELU'])
HID_G      = 32            # hidden width of the g  MLP   (V  = [32, 'GELU'])
N_CH_V     = 4             # n_channels_V
N_CLASS    = 2
N_CLASS_PAD = 8            # small lane padding of the head output; sliced in wrapper
USE_RESIDUALS = True
USE_POS_EMB   = True
TB_DEFAULT    = 32         # batch elements per grid step -> rows = 256

SHIFTS     = [0] + [(2 ** k) % N_VEC for k in range(N_LINKS - 1)]   # chord shifts
HID_FUSED  = HID_G + N_W * HID_W                 # 128 -> full vreg lane width (layer 1)
OUT2       = N_CH_V + N_W * N_LINKS * N_CH_V     # 52: [V | W_0 links x4 lanes | W_1 | W_2]
MM_DTYPE   = jnp.bfloat16                        # MXU operand dtype (f32 accumulation)

SQRT_HALF      = 0.7071067811865476
SQRT_2_OVER_PI = 0.7978845608028654


def _compute_dtype():
    """bf16 elementwise math on v6e/v7x (bf16 VPU+EUP); f32 on v5e / unknown."""
    try:
        kind = jax.devices()[0].device_kind.lower()
    except Exception:
        return jnp.float32
    return jnp.float32 if "v5" in kind else jnp.bfloat16


# ------------------------------ in-kernel GELU --------------------------------
def _gelu(x):
    # TODO(synk): PyTorch nn.GELU is exact-erf; Mosaic has no erf lowering, so the
    # tanh-form approximation is used (tanh -> EUP slot) and validated against the
    # erf reference with a loose tolerance below.
    return 0.5 * x * (1.0 + jnp.tanh(SQRT_2_OVER_PI * (x + 0.044715 * x * x * x)))


# --------------------------------- the kernel ---------------------------------
def psf_kernel(tok_ref, emb_ref, w1_ref, bias1_ref, w2_ref, b2_ref,
               wexp_ref, sel_ref, bfin_ref, out_ref, *, tb, cdt):
    rows = N_VEC * tb

    # ---- in-kernel embedding gather as a one-hot bf16 MXU matmul ----
    tok = tok_ref[0]                                            # (rows, 1) int32
    vocab = jax.lax.broadcasted_iota(jnp.int32, (rows, VOCAB_SIZE), 1)
    onehot = jnp.where(tok == vocab, 1.0, 0.0).astype(MM_DTYPE)  # (rows, VOCAB)
    x = jnp.dot(onehot, emb_ref[...], preferred_element_type=jnp.float32)  # (rows, EMB)

    # ---- fused first layer of g-MLP + all f-MLPs: one (rows,32)@(32,128) GEMM ----
    # (positional embedding is folded into the per-row bias1 in prepare_params)
    h = jnp.dot(x.astype(MM_DTYPE), w1_ref[...],
                preferred_element_type=jnp.float32) + bias1_ref[...]
    h = _gelu(h.astype(cdt))                                    # bf16 on v6e/v7x, f32 on v5e

    # ---- fused block-diagonal second layer -> [V | lane-replicated link weights] ----
    o2 = jnp.dot(h.astype(MM_DTYPE), w2_ref[...],
                 preferred_element_type=jnp.float32) + b2_ref[...]

    V = o2[:, :N_CH_V]                                          # (rows, n_channels_V)
    res = V

    # ---- chord-sparse mixing: per-sequence circular shift by s positions is a
    # tile-aligned sublane roll of the slab by s*tb rows (XLU); link weights are
    # lane-replicated across the N_CH_V channels -> lane-aligned elementwise mul.
    for m in range(N_W):
        base = N_CH_V + m * N_LINKS * N_CH_V
        Vn = o2[:, base:base + N_CH_V] * V                      # self link (shift 0)
        for j in range(1, N_LINKS):
            r = (SHIFTS[j] % N_VEC) * tb
            Vr = pltpu.roll(V, shift=rows - r, axis=0)          # Vr[q] = V[(q + r) % rows]
            Vn = Vn + o2[:, base + j * N_CH_V: base + (j + 1) * N_CH_V] * Vr
        V = Vn + res if USE_RESIDUALS else Vn

    # ---- head: z[r,:] = sum_c V[r,c] * wfin[i(r)*C + c, :pad]; out = sel @ z + b.
    z = V[:, 0:1] * wexp_ref[0]
    for c in range(1, N_CH_V):
        z = z + V[:, c:c + 1] * wexp_ref[c]
    out_ref[...] = jnp.dot(sel_ref[...], z.astype(MM_DTYPE),
                           preferred_element_type=jnp.float32) + bfin_ref[...]


# -------------------- one-time parameter preprocessing ------------------------
def prepare_params(p, *, tb=TB_DEFAULT):
    """Hoists all parameter-only work off the per-call path."""
    rows = N_VEC * tb

    # Fused layer-1 of the g-MLP and the N_W f-MLPs (lane width exactly 128).
    w1 = jnp.concatenate([p["wg1"]] + [p["wf1"][m] for m in range(N_W)], axis=1)   # (32, 128)
    b1 = jnp.concatenate([p["bg1"]] + [p["bf1"][m] for m in range(N_W)], axis=1)   # (1, 128)

    # Fold the positional embedding into a per-row layer-1 bias (sequence-major rows).
    if USE_POS_EMB:
        pos_slab = jnp.repeat(p["pos"], tb, axis=0)                                 # (rows, 32)
        bias1 = pos_slab @ w1 + b1                                                  # (rows, 128)
    else:
        bias1 = jnp.broadcast_to(b1, (rows, HID_FUSED))

    # Fused block-diagonal layer-2; each link-weight column replicated across the
    # n_channels_V lanes so the chord mix is a lane-aligned elementwise multiply.
    w2 = jnp.zeros((HID_FUSED, OUT2), jnp.float32).at[:HID_G, :N_CH_V].set(p["wg2"])
    b2 = jnp.zeros((1, OUT2), jnp.float32).at[:, :N_CH_V].set(p["bg2"])
    for m in range(N_W):
        rs = HID_G + m * HID_W
        cs = N_CH_V + m * N_LINKS * N_CH_V
        w2 = w2.at[rs:rs + HID_W, cs:cs + N_LINKS * N_CH_V].set(
            jnp.repeat(p["wf2"][m], N_CH_V, axis=1))
        b2 = b2.at[:, cs:cs + N_LINKS * N_CH_V].set(
            jnp.repeat(p["bf2"][m], N_CH_V, axis=1))

    # Head: per-row expanded final weights (8-lane pad) + 0/1 batch selector (bf16).
    wfin_pad = jnp.zeros((N_VEC * N_CH_V, N_CLASS_PAD), jnp.float32).at[:, :N_CLASS].set(p["wfin"])
    bfin_pad = jnp.zeros((1, N_CLASS_PAD), jnp.float32).at[:, :N_CLASS].set(p["bfin"])
    seq_of_row = jnp.arange(rows) // tb
    wexp = jnp.stack([wfin_pad[seq_of_row * N_CH_V + c] for c in range(N_CH_V)],
                     axis=0)                                                         # (4, rows, 8)
    sel = (jnp.arange(rows)[None, :] % tb ==
           jnp.arange(tb)[:, None]).astype(MM_DTYPE)                                 # (tb, rows)

    return {
        "emb":  p["emb"].astype(MM_DTYPE),
        "w1":   w1.astype(MM_DTYPE),
        "bias1": bias1,
        "w2":   w2.astype(MM_DTYPE),
        "b2":   b2,
        "wexp": wexp,
        "sel":  sel,
        "bfin": bfin_pad,
    }


# --------------------------------- wrapper ------------------------------------
@functools.partial(jax.jit, static_argnames=("tb",))
def psf_forward(tokens, prep, *, tb=TB_DEFAULT):
    B = tokens.shape[0]
    nb = pl.cdiv(B, tb)
    b_pad = nb * tb
    rows = N_VEC * tb

    tok = tokens[..., 0]                                    # (B, n_vec) int32
    if b_pad != B:
        tok = jnp.concatenate(
            [tok, jnp.zeros((b_pad - B, N_VEC), tok.dtype)], axis=0)

    # Sequence-major token slab: tok_blocks[g, i*tb + b, 0] = tok[g*tb + b, i]
    tok_blocks = (tok.reshape(nb, tb, N_VEC)
                     .transpose(0, 2, 1)
                     .reshape(nb, rows, 1))

    cdt = _compute_dtype()

    def rep(a):
        nd = a.ndim
        return pl.BlockSpec(a.shape, lambda g, nd=nd: (0,) * nd)

    out = pl.pallas_call(
        functools.partial(psf_kernel, tb=tb, cdt=cdt),
        out_shape=jax.ShapeDtypeStruct((b_pad, N_CLASS_PAD), jnp.float32),
        grid=(nb,),
        in_specs=[
            pl.BlockSpec((1, rows, 1), lambda g: (g, 0, 0)),   # token ids, sequence-major
            rep(prep["emb"]),
            rep(prep["w1"]), rep(prep["bias1"]),
            rep(prep["w2"]), rep(prep["b2"]),
            rep(prep["wexp"]), rep(prep["sel"]), rep(prep["bfin"]),
        ],
        out_specs=pl.BlockSpec((tb, N_CLASS_PAD), lambda g: (g, 0)),
        compiler_params=pltpu.CompilerParams(
            dimension_semantics=("parallel",)),                # batch tiles -> both v7x cores
    )(tok_blocks, prep["emb"], prep["w1"], prep["bias1"],
      prep["w2"], prep["b2"], prep["wexp"], prep["sel"], prep["bfin"])

    return out[:B, :N_CLASS]


# ---------------------------- parameters & helpers -----------------------------
def init_params(key):
    ks = jax.random.split(key, 12)

    def lin(kw, kb, fan_in, w_shape, b_shape):
        bound = 1.0 / np.sqrt(fan_in)
        w = jax.random.uniform(kw, w_shape, jnp.float32, -bound, bound)
        b = jax.random.uniform(kb, b_shape, jnp.float32, -bound, bound)
        return w, b

    p = {}
    p["emb"] = jax.random.normal(ks[0], (VOCAB_SIZE, EMB), jnp.float32)
    p["pos"] = jax.random.normal(ks[1], (N_VEC, EMB), jnp.float32)
    p["wg1"], p["bg1"] = lin(ks[2], ks[3], EMB,   (EMB, HID_G),     (1, HID_G))
    p["wg2"], p["bg2"] = lin(ks[4], ks[5], HID_G, (HID_G, N_CH_V),  (1, N_CH_V))
    p["wf1"], p["bf1"] = lin(ks[6], ks[7], EMB,   (N_W, EMB, HID_W),   (N_W, 1, HID_W))
    p["wf2"], p["bf2"] = lin(ks[8], ks[9], HID_W, (N_W, HID_W, N_LINKS), (N_W, 1, N_LINKS))
    p["wfin"], p["bfin"] = lin(ks[10], ks[11], N_VEC * N_CH_V,
                               (N_VEC * N_CH_V, N_CLASS), (1, N_CLASS))
    return p


# ----------------------------- pure-JAX reference ------------------------------
def _gelu_ref(x):
    return 0.5 * x * (1.0 + jax.scipy.special.erf(x * SQRT_HALF))


def build_chord_shift_matrices():
    # one-hot versions of get_chord_indices_assym (self, +1, +2, +4)
    shifts = [0] + [2 ** k for k in range(N_LINKS - 1)]
    sh = np.zeros((N_LINKS, N_VEC, N_VEC), np.float32)
    for j, s in enumerate(shifts):
        for i in range(N_VEC):
            sh[j, i, (i + s) % N_VEC] = 1.0
    return jnp.asarray(sh)


def psf_reference(tokens, p):
    sh = build_chord_shift_matrices()
    x = p["emb"][tokens[..., 0]]
    if USE_POS_EMB:
        x = x + p["pos"][None]
    V = _gelu_ref(x @ p["wg1"] + p["bg1"]) @ p["wg2"] + p["bg2"]
    res = V
    for m in range(N_W):
        Wm = _gelu_ref(x @ p["wf1"][m] + p["bf1"][m]) @ p["wf2"][m] + p["bf2"][m]
        A = jnp.einsum("bnj,jnk->bnk", Wm, sh)     # dense chord-sparse factor
        V = jnp.einsum("bnk,bkc->bnc", A, V)       # == torch_sparse.spmm(...)
        if USE_RESIDUALS:
            V = V + res
    return V.reshape(V.shape[0], -1) @ p["wfin"] + p["bfin"]


# ------------------------------------ main -------------------------------------
if __name__ == "__main__":
    B, TB = 64, 32                                  # grid = (2,) -> both TCs on v7x, rows = 256
    key = jax.random.PRNGKey(0)
    k_tok, k_par = jax.random.split(key)
    # problem == 'order' input: integer tokens of shape (B, n_vec, 1)
    tokens = jax.random.randint(k_tok, (B, N_VEC, 1), 0, VOCAB_SIZE, dtype=jnp.int32)
    params = init_params(k_par)

    prep = prepare_params(params, tb=TB)            # one-time parameter preprocessing

    out = psf_forward(tokens, prep, tb=TB)
    out = jax.block_until_ready(out)

    ref = psf_reference(tokens, params)
    err = float(jnp.max(jnp.abs(out - ref)))
    assert out.shape == (B, N_CLASS), out.shape
    # Kernel uses bf16 MXU operands / bf16 elementwise (f32 accumulate) + tanh-GELU;
    # reference is f32 exact-erf GELU.
    assert err < 5e-2, f"kernel vs reference mismatch: {err}"
    print("KERNEL_OK")
</pallas_src>

<mosaic_0001>
module attributes {stable_mosaic.version = 11 : i64} {
  func.func @psf_kernel(%arg0: i32, %arg1: memref<1x256x1xi32, #tpu.memory_space<vmem>>, %arg2: memref<16x32xbf16, #tpu.memory_space<vmem>>, %arg3: memref<32x128xbf16, #tpu.memory_space<vmem>>, %arg4: memref<256x128xf32, #tpu.memory_space<vmem>>, %arg5: memref<128x52xbf16, #tpu.memory_space<vmem>>, %arg6: memref<1x52xf32, #tpu.memory_space<vmem>>, %arg7: memref<4x256x8xf32, #tpu.memory_space<vmem>>, %arg8: memref<32x256xbf16, #tpu.memory_space<vmem>>, %arg9: memref<1x8xf32, #tpu.memory_space<vmem>>, %arg10: memref<32x8xf32, #tpu.memory_space<vmem>>) attributes {dimension_semantics = [#tpu.dimension_semantics<parallel>], iteration_bounds = array<i64: 2>, scalar_prefetch = 0 : i64, scratch_operands = 0 : i64, tpu.core_type = #tpu.core_type<tc>, window_params = [{transform_indices = @transform_0, window_bounds = array<i64: 1, 256, 1>}, {pipeline_mode = #tpu.pipeline_mode<synchronous>, transform_indices = @transform_1, window_bounds = array<i64: 16, 32>}, {pipeline_mode = #tpu.pipeline_mode<synchronous>, transform_indices = @transform_2, window_bounds = array<i64: 32, 128>}, {pipeline_mode = #tpu.pipeline_mode<synchronous>, transform_indices = @transform_3, window_bounds = array<i64: 256, 128>}, {pipeline_mode = #tpu.pipeline_mode<synchronous>, transform_indices = @transform_4, window_bounds = array<i64: 128, 52>}, {pipeline_mode = #tpu.pipeline_mode<synchronous>, transform_indices = @transform_5, window_bounds = array<i64: 1, 52>}, {pipeline_mode = #tpu.pipeline_mode<synchronous>, transform_indices = @transform_6, window_bounds = array<i64: 4, 256, 8>}, {pipeline_mode = #tpu.pipeline_mode<synchronous>, transform_indices = @transform_7, window_bounds = array<i64: 32, 256>}, {pipeline_mode = #tpu.pipeline_mode<synchronous>, transform_indices = @transform_8, window_bounds = array<i64: 1, 8>}, {transform_indices = @transform_9, window_bounds = array<i64: 32, 8>}]} {
    %c0 = arith.constant 0 : index
    %c0_0 = arith.constant 0 : index
    %c0_1 = arith.constant 0 : index
    %0 = vector.load %arg1[%c0, %c0_0, %c0_1] : memref<1x256x1xi32, #tpu.memory_space<vmem>>, vector<1x256x1xi32>
    %1 = vector.shape_cast %0 : vector<1x256x1xi32> to vector<256x1xi32>
    %2 = tpu.iota {dimensions = array<i32: 1>} : vector<256x16xi32>
    %3 = vector.broadcast %1 : vector<256x1xi32> to vector<256x16xi32>
    %4 = arith.cmpi eq, %3, %2 : vector<256x16xi32>
    %cst = arith.constant 1.000000e+00 : f32
    %cst_2 = arith.constant 0.000000e+00 : f32
    %5 = vector.broadcast %cst : f32 to vector<256x16xf32>
    %6 = vector.broadcast %cst_2 : f32 to vector<256x16xf32>
    %7 = arith.select %4, %5, %6 : vector<256x16xi1>, vector<256x16xf32>
    %8 = arith.truncf %7 : vector<256x16xf32> to vector<256x16xbf16>
    %c0_3 = arith.constant 0 : index
    %c0_4 = arith.constant 0 : index
    %9 = vector.load %arg2[%c0_3, %c0_4] : memref<16x32xbf16, #tpu.memory_space<vmem>>, vector<16x32xbf16>
    %cst_5 = arith.constant dense<0.000000e+00> : vector<256x32xf32>
    %10 = tpu.matmul %8, %9, %cst_5 {dimension_numbers = #tpu.dot_dimension_numbers<[1], [0], [0], [1], [0, 0, 1, 1], [], []>} : vector<256x16xbf16>, vector<16x32xbf16>, vector<256x32xf32> -> vector<256x32xf32>
    %11 = arith.truncf %10 : vector<256x32xf32> to vector<256x32xbf16>
    %c0_6 = arith.constant 0 : index
    %c0_7 = arith.constant 0 : index
    %12 = vector.load %arg3[%c0_6, %c0_7] : memref<32x128xbf16, #tpu.memory_space<vmem>>, vector<32x128xbf16>
    %cst_8 = arith.constant dense<0.000000e+00> : vector<256x128xf32>
    %13 = tpu.matmul %11, %12, %cst_8 {dimension_numbers = #tpu.dot_dimension_numbers<[1], [0], [0], [1], [0, 0, 1, 1], [], []>} : vector<256x32xbf16>, vector<32x128xbf16>, vector<256x128xf32> -> vector<256x128xf32>
    %c0_9 = arith.constant 0 : index
    %c0_10 = arith.constant 0 : index
    %14 = vector.load %arg4[%c0_9, %c0_10] : memref<256x128xf32, #tpu.memory_space<vmem>>, vector<256x128xf32>
    %15 = arith.addf %13, %14 : vector<256x128xf32>
    %16 = arith.truncf %15 : vector<256x128xf32> to vector<256x128xbf16>
    %cst_11 = arith.constant 5.000000e-01 : bf16
    %17 = vector.broadcast %cst_11 : bf16 to vector<256x128xbf16>
    %18 = arith.mulf %17, %16 : vector<256x128xbf16>
    %cst_12 = arith.constant 4.467770e-02 : bf16
    %19 = vector.broadcast %cst_12 : bf16 to vector<256x128xbf16>
    %20 = arith.mulf %19, %16 : vector<256x128xbf16>
    %21 = arith.mulf %20, %16 : vector<256x128xbf16>
    %22 = arith.mulf %21, %16 : vector<256x128xbf16>
    %23 = arith.addf %16, %22 : vector<256x128xbf16>
    %cst_13 = arith.constant 7.968750e-01 : bf16
    %24 = vector.broadcast %cst_13 : bf16 to vector<256x128xbf16>
    %25 = arith.mulf %24, %23 : vector<256x128xbf16>
    %26 = math.tanh %25 : vector<256x128xbf16>
    %cst_14 = arith.constant 1.000000e+00 : bf16
    %27 = vector.broadcast %cst_14 : bf16 to vector<256x128xbf16>
    %28 = arith.addf %27, %26 : vector<256x128xbf16>
    %29 = arith.mulf %18, %28 : vector<256x128xbf16>
    %c0_15 = arith.constant 0 : index
    %c0_16 = arith.constant 0 : index
    %30 = vector.load %arg5[%c0_15, %c0_16] : memref<128x52xbf16, #tpu.memory_space<vmem>>, vector<128x52xbf16>
    %cst_17 = arith.constant dense<0.000000e+00> : vector<256x52xf32>
    %31 = tpu.matmul %29, %30, %cst_17 {dimension_numbers = #tpu.dot_dimension_numbers<[1], [0], [0], [1], [0, 0, 1, 1], [], []>} : vector<256x128xbf16>, vector<128x52xbf16>, vector<256x52xf32> -> vector<256x52xf32>
    %c0_18 = arith.constant 0 : index
    %c0_19 = arith.constant 0 : index
    %32 = vector.load %arg6[%c0_18, %c0_19] : memref<1x52xf32, #tpu.memory_space<vmem>>, vector<1x52xf32>
    %33 = vector.broadcast %32 : vector<1x52xf32> to vector<256x52xf32>
    %34 = arith.addf %31, %33 : vector<256x52xf32>
    %35 = vector.extract_strided_slice %34 {offsets = [0, 0], sizes = [256, 4], strides = [1, 1]} : vector<256x52xf32> to vector<256x4xf32>
    %36 = vector.extract_strided_slice %34 {offsets = [0, 4], sizes = [256, 4], strides = [1, 1]} : vector<256x52xf32> to vector<256x4xf32>
    %37 = arith.mulf %36, %35 : vector<256x4xf32>
    %c224_i32 = arith.constant 224 : i32
    %38 = tpu.dynamic_rotate %35 by %c224_i32 dim 0 : vector<256x4xf32>, i32 -> vector<256x4xf32>
    %39 = vector.extract_strided_slice %34 {offsets = [0, 8], sizes = [256, 4], strides = [1, 1]} : vector<256x52xf32> to vector<256x4xf32>
    %40 = arith.mulf %39, %38 : vector<256x4xf32>
    %41 = arith.addf %37, %40 : vector<256x4xf32>
    %c192_i32 = arith.constant 192 : i32
    %42 = tpu.dynamic_rotate %35 by %c192_i32 dim 0 : vector<256x4xf32>, i32 -> vector<256x4xf32>
    %43 = vector.extract_strided_slice %34 {offsets = [0, 12], sizes = [256, 4], strides = [1, 1]} : vector<256x52xf32> to vector<256x4xf32>
    %44 = arith.mulf %43, %42 : vector<256x4xf32>
    %45 = arith.addf %41, %44 : vector<256x4xf32>
    %c128_i32 = arith.constant 128 : i32
    %46 = tpu.dynamic_rotate %35 by %c128_i32 dim 0 : vector<256x4xf32>, i32 -> vector<256x4xf32>
    %47 = vector.extract_strided_slice %34 {offsets = [0, 16], sizes = [256, 4], strides = [1, 1]} : vector<256x52xf32> to vector<256x4xf32>
    %48 = arith.mulf %47, %46 : vector<256x4xf32>
    %49 = arith.addf %45, %48 : vector<256x4xf32>
    %50 = arith.addf %49, %35 : vector<256x4xf32>
    %51 = vector.extract_strided_slice %34 {offsets = [0, 20], sizes = [256, 4], strides = [1, 1]} : vector<256x52xf32> to vector<256x4xf32>
    %52 = arith.mulf %51, %50 : vector<256x4xf32>
    %c224_i32_20 = arith.constant 224 : i32
    %53 = tpu.dynamic_rotate %50 by %c224_i32_20 dim 0 : vector<256x4xf32>, i32 -> vector<256x4xf32>
    %54 = vector.extract_strided_slice %34 {offsets = [0, 24], sizes = [256, 4], strides = [1, 1]} : vector<256x52xf32> to vector<256x4xf32>
    %55 = arith.mulf %54, %53 : vector<256x4xf32>
    %56 = arith.addf %52, %55 : vector<256x4xf32>
    %c192_i32_21 = arith.constant 192 : i32
    %57 = tpu.dynamic_rotate %50 by %c192_i32_21 dim 0 : vector<256x4xf32>, i32 -> vector<256x4xf32>
    %58 = vector.extract_strided_slice %34 {offsets = [0, 28], sizes = [256, 4], strides = [1, 1]} : vector<256x52xf32> to vector<256x4xf32>
    %59 = arith.mulf %58, %57 : vector<256x4xf32>
    %60 = arith.addf %56, %59 : vector<256x4xf32>
    %c128_i32_22 = arith.constant 128 : i32
    %61 = tpu.dynamic_rotate %50 by %c128_i32_22 dim 0 : vector<256x4xf32>, i32 -> vector<256x4xf32>
    %62 = vector.extract_strided_slice %34 {offsets = [0, 32], sizes = [256, 4], strides = [1, 1]} : vector<256x52xf32> to vector<256x4xf32>
    %63 = arith.mulf %62, %61 : vector<256x4xf32>
    %64 = arith.addf %60, %63 : vector<256x4xf32>
    %65 = arith.addf %64, %35 : vector<256x4xf32>
    %66 = vector.extract_strided_slice %34 {offsets = [0, 36], sizes = [256, 4], strides = [1, 1]} : vector<256x52xf32> to vector<256x4xf32>
    %67 = arith.mulf %66, %65 : vector<256x4xf32>
    %c224_i32_23 = arith.constant 224 : i32
    %68 = tpu.dynamic_rotate %65 by %c224_i32_23 dim 0 : vector<256x4xf32>, i32 -> vector<256x4xf32>
    %69 = vector.extract_strided_slice %34 {offsets = [0, 40], sizes = [256, 4], strides = [1, 1]} : vector<256x52xf32> to vector<256x4xf32>
    %70 = arith.mulf %69, %68 : vector<256x4xf32>
    %71 = arith.addf %67, %70 : vector<256x4xf32>
    %c192_i32_24 = arith.constant 192 : i32
    %72 = tpu.dynamic_rotate %65 by %c192_i32_24 dim 0 : vector<256x4xf32>, i32 -> vector<256x4xf32>
    %73 = vector.extract_strided_slice %34 {offsets = [0, 44], sizes = [256, 4], strides = [1, 1]} : vector<256x52xf32> to vector<256x4xf32>
    %74 = arith.mulf %73, %72 : vector<256x4xf32>
    %75 = arith.addf %71, %74 : vector<256x4xf32>
    %c128_i32_25 = arith.constant 128 : i32
    %76 = tpu.dynamic_rotate %65 by %c128_i32_25 dim 0 : vector<256x4xf32>, i32 -> vector<256x4xf32>
    %77 = vector.extract_strided_slice %34 {offsets = [0, 48], sizes = [256, 4], strides = [1, 1]} : vector<256x52xf32> to vector<256x4xf32>
    %78 = arith.mulf %77, %76 : vector<256x4xf32>
    %79 = arith.addf %75, %78 : vector<256x4xf32>
    %80 = arith.addf %79, %35 : vector<256x4xf32>
    %81 = vector.extract_strided_slice %80 {offsets = [0, 0], sizes = [256, 1], strides = [1, 1]} : vector<256x4xf32> to vector<256x1xf32>
    %c0_26 = arith.constant 0 : index
    %c0_27 = arith.constant 0 : index
    %c0_28 = arith.constant 0 : index
    %82 = vector.load %arg7[%c0_26, %c0_27, %c0_28] : memref<4x256x8xf32, #tpu.memory_space<vmem>>, vector<1x256x8xf32>
    %83 = vector.shape_cast %82 : vector<1x256x8xf32> to vector<256x8xf32>
    %84 = vector.broadcast %81 : vector<256x1xf32> to vector<256x8xf32>
    %85 = arith.mulf %84, %83 : vector<256x8xf32>
    %86 = vector.extract_strided_slice %80 {offsets = [0, 1], sizes = [256, 1], strides = [1, 1]} : vector<256x4xf32> to vector<256x1xf32>
    %c1 = arith.constant 1 : index
    %c0_29 = arith.constant 0 : index
    %c0_30 = arith.constant 0 : index
    %87 = vector.load %arg7[%c1, %c0_29, %c0_30] : memref<4x256x8xf32, #tpu.memory_space<vmem>>, vector<1x256x8xf32>
    %88 = vector.shape_cast %87 : vector<1x256x8xf32> to vector<256x8xf32>
    %89 = vector.broadcast %86 : vector<256x1xf32> to vector<256x8xf32>
    %90 = arith.mulf %89, %88 : vector<256x8xf32>
    %91 = arith.addf %85, %90 : vector<256x8xf32>
    %92 = vector.extract_strided_slice %80 {offsets = [0, 2], sizes = [256, 1], strides = [1, 1]} : vector<256x4xf32> to vector<256x1xf32>
    %c2 = arith.constant 2 : index
    %c0_31 = arith.constant 0 : index
    %c0_32 = arith.constant 0 : index
    %93 = vector.load %arg7[%c2, %c0_31, %c0_32] : memref<4x256x8xf32, #tpu.memory_space<vmem>>, vector<1x256x8xf32>
    %94 = vector.shape_cast %93 : vector<1x256x8xf32> to vector<256x8xf32>
    %95 = vector.broadcast %92 : vector<256x1xf32> to vector<256x8xf32>
    %96 = arith.mulf %95, %94 : vector<256x8xf32>
    %97 = arith.addf %91, %96 : vector<256x8xf32>
    %98 = vector.extract_strided_slice %80 {offsets = [0, 3], sizes = [256, 1], strides = [1, 1]} : vector<256x4xf32> to vector<256x1xf32>
    %c3 = arith.constant 3 : index
    %c0_33 = arith.constant 0 : index
    %c0_34 = arith.constant 0 : index
    %99 = vector.load %arg7[%c3, %c0_33, %c0_34] : memref<4x256x8xf32, #tpu.memory_space<vmem>>, vector<1x256x8xf32>
    %100 = vector.shape_cast %99 : vector<1x256x8xf32> to vector<256x8xf32>
    %101 = vector.broadcast %98 : vector<256x1xf32> to vector<256x8xf32>
    %102 = arith.mulf %101, %100 : vector<256x8xf32>
    %103 = arith.addf %97, %102 : vector<256x8xf32>
    %c0_35 = arith.constant 0 : index
    %c0_36 = arith.constant 0 : index
    %104 = vector.load %arg8[%c0_35, %c0_36] : memref<32x256xbf16, #tpu.memory_space<vmem>>, vector<32x256xbf16>
    %105 = arith.truncf %103 : vector<256x8xf32> to vector<256x8xbf16>
    %cst_37 = arith.constant dense<0.000000e+00> : vector<32x8xf32>
    %106 = tpu.matmul %104, %105, %cst_37 {dimension_numbers = #tpu.dot_dimension_numbers<[1], [0], [0], [1], [0, 0, 1, 1], [], []>} : vector<32x256xbf16>, vector<256x8xbf16>, vector<32x8xf32> -> vector<32x8xf32>
    %c0_38 = arith.constant 0 : index
    %c0_39 = arith.constant 0 : index
    %107 = vector.load %arg9[%c0_38, %c0_39] : memref<1x8xf32, #tpu.memory_space<vmem>>, vector<1x8xf32>
    %108 = vector.broadcast %107 : vector<1x8xf32> to vector<32x8xf32>
    %109 = arith.addf %106, %108 : vector<32x8xf32>
    %c0_40 = arith.constant 0 : index
    %c0_41 = arith.constant 0 : index
    %110 = vector.load %arg10[%c0_40, %c0_41] : memref<32x8xf32, #tpu.memory_space<vmem>>, vector<32x8xf32>
    tpu.vector_store %arg10[%c0_40, %c0_41], %109 {strides = array<i32>} : memref<32x8xf32, #tpu.memory_space<vmem>>, vector<32x8xf32>,
    return
  }
  func.func @transform_0(%arg0: i32) -> (i32, i32, i32) {
    %c0_i32 = arith.constant 0 : i32
    %c0_i32_0 = arith.constant 0 : i32
    %c0_i32_1 = arith.constant 0 : i32
    return %arg0, %c0_i32, %c0_i32_0 : i32, i32, i32
  }
  func.func @transform_1(%arg0: i32) -> (i32, i32) {
    %c0_i32 = arith.constant 0 : i32
    %c0_i32_0 = arith.constant 0 : i32
    %c0_i32_1 = arith.constant 0 : i32
    return %c0_i32, %c0_i32_0 : i32, i32
  }
  func.func @transform_2(%arg0: i32) -> (i32, i32) {
    %c0_i32 = arith.constant 0 : i32
    %c0_i32_0 = arith.constant 0 : i32
    %c0_i32_1 = arith.constant 0 : i32
    return %c0_i32, %c0_i32_0 : i32, i32
  }
  func.func @transform_3(%arg0: i32) -> (i32, i32) {
    %c0_i32 = arith.constant 0 : i32
    %c0_i32_0 = arith.constant 0 : i32
    %c0_i32_1 = arith.constant 0 : i32
    return %c0_i32, %c0_i32_0 : i32, i32
  }
  func.func @transform_4(%arg0: i32) -> (i32, i32) {
    %c0_i32 = arith.constant 0 : i32
    %c0_i32_0 = arith.constant 0 : i32
    %c0_i32_1 = arith.constant 0 : i32
    return %c0_i32, %c0_i32_0 : i32, i32
  }
  func.func @transform_5(%arg0: i32) -> (i32, i32) {
    %c0_i32 = arith.constant 0 : i32
    %c0_i32_0 = arith.constant 0 : i32
    %c0_i32_1 = arith.constant 0 : i32
    return %c0_i32, %c0_i32_0 : i32, i32
  }
  func.func @transform_6(%arg0: i32) -> (i32, i32, i32) {
    %c0_i32 = arith.constant 0 : i32
    %c0_i32_0 = arith.constant 0 : i32
    %c0_i32_1 = arith.constant 0 : i32
    %c0_i32_2 = arith.constant 0 : i32
    return %c0_i32, %c0_i32_0, %c0_i32_1 : i32, i32, i32
  }
  func.func @transform_7(%arg0: i32) -> (i32, i32) {
    %c0_i32 = arith.constant 0 : i32
    %c0_i32_0 = arith.constant 0 : i32
    %c0_i32_1 = arith.constant 0 : i32
    return %c0_i32, %c0_i32_0 : i32, i32
  }
  func.func @transform_8(%arg0: i32) -> (i32, i32) {
    %c0_i32 = arith.constant 0 : i32
    %c0_i32_0 = arith.constant 0 : i32
    %c0_i32_1 = arith.constant 0 : i32
    return %c0_i32, %c0_i32_0 : i32, i32
  }
  func.func @transform_9(%arg0: i32) -> (i32, i32) {
    %c0_i32 = arith.constant 0 : i32
    %c0_i32_0 = arith.constant 0 : i32
    return %arg0, %c0_i32 : i32, i32
  }
}

</mosaic_0001>

<llo_original>
// kernel: squeeze.1
$region0: #{squeeze.1}
  %s0 = inlined_call_operand.vmem [shape: s32[64,8], index: 0, kind: input, shape index: {}]
  %s1 = inlined_call_operand.vmem [shape: s32[2,32,8], index: 1, kind: output, shape index: {}]
  $region1: #{squeeze.1} parent=0
    #allocation0 [shape = 'u8[32768]{0}', space=vmem, size = 0x8000, scoped, tag = 'scoped mem for output reshape']
    %v2 = vld [vmem:[%s0] sm:$0xff]
    %vm3 = vcmask 261120
    %4 = vst.msk [vmem:[#allocation0] ss:$8 sm:$0xf] %vm3, %v2
    %5 = vst.msk [vmem:[#allocation0] ss:$8 sm:$0xf0] %vm3, %v2
    %v6 = vld [vmem:[%s0] sm:$0xff]
    %7 = vrot.lane.b32.xlu0 %v6, 96
    %v8 = vpop.permute.xlu0 %7
    %vm9 = vcmask 261120
    %s10 = scalar_lea.vmem [#allocation0], 1
    %11 = vst.msk [vmem:[%s10] ss:$8 sm:$0xf] %vm9, %v8
    %s12 = scalar_lea.vmem [#allocation0], 1
    %13 = vst.msk [vmem:[%s12] ss:$8 sm:$0xf0] %vm9, %v8
    %s15 = ssub.s32 4, 1
    %v16 = vld [vmem:[#allocation0] sm:%s15]
    %s18 = ssub.s32 4, 1
    %19 = vst [vmem:[%s1] sm:%s18] %v16
    %s20 = scalar_lea.vmem [#allocation0], 8
    %v21 = vld [vmem:[%s20] sm:%s15]
    %s23 = ssub.s32 4, 1
    %s24 = scalar_lea.vmem %s1, 2
    %25 = vst [vmem:[%s24] sm:%s23] %v21
    %s26 = scalar_lea.vmem [#allocation0], 16
    %v27 = vld [vmem:[%s26] sm:%s15]
    %s29 = ssub.s32 4, 1
    %s30 = scalar_lea.vmem %s1, 4
    %31 = vst [vmem:[%s30] sm:%s29] %v27
    %s32 = scalar_lea.vmem [#allocation0], 24
    %v33 = vld [vmem:[%s32] sm:%s15]
    %s35 = ssub.s32 4, 1
    %s36 = scalar_lea.vmem %s1, 6
    %37 = vst [vmem:[%s36] sm:%s35] %v33
    %s38 = scalar_lea.vmem [#allocation0], 32
    %v39 = vld [vmem:[%s38] sm:%s15]
    %s41 = ssub.s32 4, 1
    %s42 = scalar_lea.vmem %s1, 8
    %43 = vst [vmem:[%s42] sm:%s41] %v39
    %s44 = scalar_lea.vmem [#allocation0], 40
    %v45 = vld [vmem:[%s44] sm:%s15]
    %s47 = ssub.s32 4, 1
    %s48 = scalar_lea.vmem %s1, 10
    %49 = vst [vmem:[%s48] sm:%s47] %v45
    %s50 = scalar_lea.vmem [#allocation0], 48
    %v51 = vld [vmem:[%s50] sm:%s15]
    %s53 = ssub.s32 4, 1
    %s54 = scalar_lea.vmem %s1, 12
    %55 = vst [vmem:[%s54] sm:%s53] %v51
    %s56 = scalar_lea.vmem [#allocation0], 56
    %v57 = vld [vmem:[%s56] sm:%s15]
    %s59 = ssub.s32 4, 1
    %s60 = scalar_lea.vmem %s1, 14
    %61 = vst [vmem:[%s60] sm:%s59] %v57

// kernel: psf_forward.1
$region0: #{psf_forward.1}
  #allocation0 [shape = 'u32[]', space=smem, size = 0x4, offset = 0x4, fixed_abs, tag = 'smem constant byte address 0x4 - core index']
  #allocation1 [shape = 'u32[72,128]{1,0:T(1,128)}', space=vmem, size = 0x9000, scoped, tag = 'internal scratch']
  %s0 = inlined_call_operand.vmem [shape: s32[2,256,1], index: 0, kind: input, shape index: {}]
  %s1 = inlined_call_operand.vmem [shape: bf16[16,32], index: 1, kind: input, shape index: {}]
  %s2 = inlined_call_operand.vmem [shape: bf16[32,128], index: 2, kind: input, shape index: {}]
  %s3 = inlined_call_operand.vmem [shape: f32[256,128], index: 3, kind: input, shape index: {}]
  %s4 = inlined_call_operand.vmem [shape: bf16[128,52], index: 4, kind: input, shape index: {}]
  %s5 = inlined_call_operand.vmem [shape: f32[1,52], index: 5, kind: input, shape index: {}]
  %s6 = inlined_call_operand.vmem [shape: f32[4,256,8], index: 6, kind: input, shape index: {}]
  %s7 = inlined_call_operand.vmem [shape: bf16[32,256], index: 7, kind: input, shape index: {}]
  %s8 = inlined_call_operand.vmem [shape: f32[1,8], index: 8, kind: input, shape index: {}]
  %s9 = inlined_call_operand.vmem [shape: f32[64,8], index: 9, kind: output, shape index: {}]
  %s10 = sld [smem:[#allocation0]]
  $region69: #{psf_forward.1} parent=0
    _
  %s12 = ssub.s32 1, %s10
  %s13 = scalar_select 0, %s12, %s10
  loop: start=0, step=1, limit=4
  $region2: #{psf_forward.1} parent=0 // loop_pre_header
    _
  $region3: #{psf_forward.1} parent=0 // loop_header
    %s15 = sphi 0, %s19
    %p16 = scmp.ge.s32.totalorder %s15, 4
    %s25 = sphi 0, %s27
    %s28 = sphi 0, %s25
    %s29 = sphi 0, %s28
    %s45 = sphi 0, %s29
    %s49 = sphi 0, %s49
    %s51 = sphi 0, %s49
    %s52 = sphi 0, %s51
    %s66 = sphi 0, %s52
    %s70 = sphi 0, %s70
    %s72 = sphi 0, %s70
    %s73 = sphi 0, %s72
    %s87 = sphi 0, %s73
    %s91 = sphi 0, %s91
    %s93 = sphi 0, %s91
    %s94 = sphi 0, %s93
    %s108 = sphi 0, %s94
    %s112 = sphi 0, %s112
    %s114 = sphi 0, %s112
    %s115 = sphi 0, %s114
    %s129 = sphi 0, %s115
    %s133 = sphi 0, %s133
    %s135 = sphi 0, %s133
    %s136 = sphi 0, %s135
    %s150 = sphi 0, %s136
    %s154 = sphi 0, %s154
    %s156 = sphi 0, %s154
    %s157 = sphi 0, %s156
    %s171 = sphi 0, %s157
    %s175 = sphi 0, %s175
    %s177 = sphi 0, %s175
    %s178 = sphi 0, %s177
    %s192 = sphi 0, %s178
    %s196 = sphi 0, %s196
    %s198 = sphi 0, %s196
    %s199 = sphi 0, %s198
    %s213 = sphi 0, %s199
    %s219 = sphi 0, %s221
    %s222 = sphi 0, %s219
    %s223 = sphi 0, %s222
    %s239 = sphi 0, %s223
  $region4: #{psf_forward.1} parent=0 // loop_header_branch
    %18 = sbr.rel (%p16) target = $region8
  $region5: #{psf_forward.1} parent=0 // loop_body
    %s20 = ssub.s32 %s15, 1
    %s21 = ssub.s32 %s15, 2
    %s22 = sadd.s32 %s15, 1
    %s23 = ssub.s32 %s15, %s22
    %p24 = scmp.eq.s32.totalorder %s23, 0
    %s26 = sadd.s32 %s25, 1
    %s27 = scalar_select %p24, %s25, %s26
    %p30 = pneg %p24
    %p31 = scmp.eq.s32.totalorder %s15, 1
    %p32 = por %p30, %p31
    %p33 = scmp.ne.s32.totalorder %s25, %s28
    %p34 = scmp.eq.s32.totalorder %s15, 0
    %p35 = por %p33, %p34
    %p36 = scmp.ne.s32.totalorder %s25, %s28
    %p37 = scmp.eq.s32.totalorder %s20, 1
    %p38 = por %p36, %p37
    %p39 = scmp.ne.s32.totalorder %s28, %s29
    %p40 = scmp.eq.s32.totalorder %s20, 0
    %p41 = por %p39, %p40
    %p42 = scmp.ne.s32.totalorder %s28, %s29
    %p43 = scmp.eq.s32.totalorder %s21, 1
    %p44 = por %p42, %p43
    %p46 = scmp.ne.s32.totalorder %s29, %s45
    %p47 = scmp.eq.s32.totalorder %s21, 0
    %p48 = por %p46, %p47
    %s50 = sadd.s32 %s49, 1
    %p53 = scmp.eq.s32.totalorder %s15, 1
    %p54 = scmp.ne.s32.totalorder %s49, %s51
    %p55 = scmp.eq.s32.totalorder %s15, 0
    %p56 = por %p54, %p55
    %p57 = scmp.ne.s32.totalorder %s49, %s51
    %p58 = scmp.eq.s32.totalorder %s20, 1
    %p59 = por %p57, %p58
    %p60 = scmp.ne.s32.totalorder %s51, %s52
    %p61 = scmp.eq.s32.totalorder %s20, 0
    %p62 = por %p60, %p61
    %p63 = scmp.ne.s32.totalorder %s51, %s52
    %p64 = scmp.eq.s32.totalorder %s21, 1
    %p65 = por %p63, %p64
    %p67 = scmp.ne.s32.totalorder %s52, %s66
    %p68 = scmp.eq.s32.totalorder %s21, 0
    %p69 = por %p67, %p68
    %s71 = sadd.s32 %s70, 1
    %p74 = scmp.eq.s32.totalorder %s15, 1
    %p75 = scmp.ne.s32.totalorder %s70, %s72
    %p76 = scmp.eq.s32.totalorder %s15, 0
    %p77 = por %p75, %p76
    %p78 = scmp.ne.s32.totalorder %s70, %s72
    %p79 = scmp.eq.s32.totalorder %s20, 1
    %p80 = por %p78, %p79
    %p81 = scmp.ne.s32.totalorder %s72, %s73
    %p82 = scmp.eq.s32.totalorder %s20, 0
    %p83 = por %p81, %p82
    %p84 = scmp.ne.s32.totalorder %s72, %s73
    %p85 = scmp.eq.s32.totalorder %s21, 1
    %p86 = por %p84, %p85
    %p88 = scmp.ne.s32.totalorder %s73, %s87
    %p89 = scmp.eq.s32.totalorder %s21, 0
    %p90 = por %p88, %p89
    %s92 = sadd.s32 %s91, 1
    %p95 = scmp.eq.s32.totalorder %s15, 1
    %p96 = scmp.ne.s32.totalorder %s91, %s93
    %p97 = scmp.eq.s32.totalorder %s15, 0
    %p98 = por %p96, %p97
    %p99 = scmp.ne.s32.totalorder %s91, %s93
    %p100 = scmp.eq.s32.totalorder %s20, 1
    %p101 = por %p99, %p100
    %p102 = scmp.ne.s32.totalorder %s93, %s94
    %p103 = scmp.eq.s32.totalorder %s20, 0
    %p104 = por %p102, %p103
    %p105 = scmp.ne.s32.totalorder %s93, %s94
    %p106 = scmp.eq.s32.totalorder %s21, 1
    %p107 = por %p105, %p106
    %p109 = scmp.ne.s32.totalorder %s94, %s108
    %p110 = scmp.eq.s32.totalorder %s21, 0
    %p111 = por %p109, %p110
    %s113 = sadd.s32 %s112, 1
    %p116 = scmp.eq.s32.totalorder %s15, 1
    %p117 = scmp.ne.s32.totalorder %s112, %s114
    %p118 = scmp.eq.s32.totalorder %s15, 0
    %p119 = por %p117, %p118
    %p120 = scmp.ne.s32.totalorder %s112, %s114
    %p121 = scmp.eq.s32.totalorder %s20, 1
    %p122 = por %p120, %p121
    %p123 = scmp.ne.s32.totalorder %s114, %s115
    %p124 = scmp.eq.s32.totalorder %s20, 0
    %p125 = por %p123, %p124
    %p126 = scmp.ne.s32.totalorder %s114, %s115
    %p127 = scmp.eq.s32.totalorder %s21, 1
    %p128 = por %p126, %p127
    %p130 = scmp.ne.s32.totalorder %s115, %s129
    %p131 = scmp.eq.s32.totalorder %s21, 0
    %p132 = por %p130, %p131
    %s134 = sadd.s32 %s133, 1
    %p137 = scmp.eq.s32.totalorder %s15, 1
    %p138 = scmp.ne.s32.totalorder %s133, %s135
    %p139 = scmp.eq.s32.totalorder %s15, 0
    %p140 = por %p138, %p139
    %p141 = scmp.ne.s32.totalorder %s133, %s135
    %p142 = scmp.eq.s32.totalorder %s20, 1
    %p143 = por %p141, %p142
    %p144 = scmp.ne.s32.totalorder %s135, %s136
    %p145 = scmp.eq.s32.totalorder %s20, 0
    %p146 = por %p144, %p145
    %p147 = scmp.ne.s32.totalorder %s135, %s136
    %p148 = scmp.eq.s32.totalorder %s21, 1
    %p149 = por %p147, %p148
    %p151 = scmp.ne.s32.totalorder %s136, %s150
    %p152 = scmp.eq.s32.totalorder %s21, 0
    %p153 = por %p151, %p152
    %s155 = sadd.s32 %s154, 1
    %p158 = scmp.eq.s32.totalorder %s15, 1
    %p159 = scmp.ne.s32.totalorder %s154, %s156
    %p160 = scmp.eq.s32.totalorder %s15, 0
    %p161 = por %p159, %p160
    %p162 = scmp.ne.s32.totalorder %s154, %s156
    %p163 = scmp.eq.s32.totalorder %s20, 1
    %p164 = por %p162, %p163
    %p165 = scmp.ne.s32.totalorder %s156, %s157
    %p166 = scmp.eq.s32.totalorder %s20, 0
    %p167 = por %p165, %p166
    %p168 = scmp.ne.s32.totalorder %s156, %s157
    %p169 = scmp.eq.s32.totalorder %s21, 1
    %p170 = por %p168, %p169
    %p172 = scmp.ne.s32.totalorder %s157, %s171
    %p173 = scmp.eq.s32.totalorder %s21, 0
    %p174 = por %p172, %p173
    %s176 = sadd.s32 %s175, 1
    %p179 = scmp.eq.s32.totalorder %s15, 1
    %p180 = scmp.ne.s32.totalorder %s175, %s177
    %p181 = scmp.eq.s32.totalorder %s15, 0
    %p182 = por %p180, %p181
    %p183 = scmp.ne.s32.totalorder %s175, %s177
    %p184 = scmp.eq.s32.totalorder %s20, 1
    %p185 = por %p183, %p184
    %p186 = scmp.ne.s32.totalorder %s177, %s178
    %p187 = scmp.eq.s32.totalorder %s20, 0
    %p188 = por %p186, %p187
    %p189 = scmp.ne.s32.totalorder %s177, %s178
    %p190 = scmp.eq.s32.totalorder %s21, 1
    %p191 = por %p189, %p190
    %p193 = scmp.ne.s32.totalorder %s178, %s192
    %p194 = scmp.eq.s32.totalorder %s21, 0
    %p195 = por %p193, %p194
    %s197 = sadd.s32 %s196, 1
    %p200 = scmp.eq.s32.totalorder %s15, 1
    %p201 = scmp.ne.s32.totalorder %s196, %s198
    %p202 = scmp.eq.s32.totalorder %s15, 0
    %p203 = por %p201, %p202
    %p204 = scmp.ne.s32.totalorder %s196, %s198
    %p205 = scmp.eq.s32.totalorder %s20, 1
    %p206 = por %p204, %p205
    %p207 = scmp.ne.s32.totalorder %s198, %s199
    %p208 = scmp.eq.s32.totalorder %s20, 0
    %p209 = por %p207, %p208
    %p210 = scmp.ne.s32.totalorder %s198, %s199
    %p211 = scmp.eq.s32.totalorder %s21, 1
    %p212 = por %p210, %p211
    %p214 = scmp.ne.s32.totalorder %s199, %s213
    %p215 = scmp.eq.s32.totalorder %s21, 0
    %p216 = por %p214, %p215
    %s217 = ssub.s32 %s15, %s22
    %p218 = scmp.eq.s32.totalorder %s217, 0
    %s220 = sadd.s32 %s219, 1
    %s221 = scalar_select %p218, %s219, %s220
    %p224 = pneg %p218
    %p225 = scmp.eq.s32.totalorder %s15, 1
    %p226 = por %p224, %p225
    %p227 = scmp.ne.s32.totalorder %s219, %s222
    %p228 = scmp.eq.s32.totalorder %s15, 0
    %p229 = por %p227, %p228
    %p230 = scmp.ne.s32.totalorder %s219, %s222
    %p231 = scmp.eq.s32.totalorder %s20, 1
    %p232 = por %p230, %p231
    %p233 = scmp.ne.s32.totalorder %s222, %s223
    %p234 = scmp.eq.s32.totalorder %s20, 0
    %p235 = por %p233, %p234
    %p236 = scmp.ne.s32.totalorder %s222, %s223
    %p237 = scmp.eq.s32.totalorder %s21, 1
    %p238 = por %p236, %p237
    %p240 = scmp.ne.s32.totalorder %s223, %s239
    %p241 = scmp.eq.s32.totalorder %s21, 0
    %p242 = por %p240, %p241
    %p243 = scmp.le.s32.totalorder 1, %s15
    %p244 = scmp.lt.s32.totalorder %s15, 3
    %p245 = pnand %p243, %p244
    %p246 = pneg %p245
    // Predicated region
    $region9: #{psf_forward.1} parent=5 // pred_check
      _
    $region10: #{psf_forward.1} parent=5 // pred_check_branch
      %248 = sbr.rel (%p245) target = $region12
    $region11: #{psf_forward.1} parent=5 // pred_region
      %s249 = ssub.s32 %s15, 1
      // Predicated region
      $region13: #{psf_forward.1} parent=11 // pred_check
        %p250 = pneg %p62
      $region14: #{psf_forward.1} parent=11 // pred_check_branch
        %252 = sbr.rel (%p250) target = $region16
      $region15: #{psf_forward.1} parent=11 // pred_region
        _
      $region16: #{psf_forward.1} parent=11 // pred_fallthru
        _
      // Predicated region
      $region17: #{psf_forward.1} parent=11 // pred_check
        %p253 = pneg %p83
      $region18: #{psf_forward.1} parent=11 // pred_check_branch
        %255 = sbr.rel (%p253) target = $region20
      $region19: #{psf_forward.1} parent=11 // pred_region
        _
      $region20: #{psf_forward.1} parent=11 // pred_fallthru
        _
      // Predicated region
      $region21: #{psf_forward.1} parent=11 // pred_check
        %p256 = pneg %p104
      $region22: #{psf_forward.1} parent=11 // pred_check_branch
        %258 = sbr.rel (%p256) target = $region24
      $region23: #{psf_forward.1} parent=11 // pred_region
        _
      $region24: #{psf_forward.1} parent=11 // pred_fallthru
        _
      // Predicated region
      $region25: #{psf_forward.1} parent=11 // pred_check
        %p259 = pneg %p125
      $region26: #{psf_forward.1} parent=11 // pred_check_branch
        %261 = sbr.rel (%p259) target = $region28
      $region27: #{psf_forward.1} parent=11 // pred_region
        _
      $region28: #{psf_forward.1} parent=11 // pred_fallthru
        _
      // Predicated region
      $region29: #{psf_forward.1} parent=11 // pred_check
        %p262 = pneg %p146
      $region30: #{psf_forward.1} parent=11 // pred_check_branch
        %264 = sbr.rel (%p262) target = $region32
      $region31: #{psf_forward.1} parent=11 // pred_region
        _
      $region32: #{psf_forward.1} parent=11 // pred_fallthru
        _
      // Predicated region
      $region33: #{psf_forward.1} parent=11 // pred_check
        %p265 = pneg %p167
      $region34: #{psf_forward.1} parent=11 // pred_check_branch
        %267 = sbr.rel (%p265) target = $region36
      $region35: #{psf_forward.1} parent=11 // pred_region
        _
      $region36: #{psf_forward.1} parent=11 // pred_fallthru
        _
      // Predicated region
      $region37: #{psf_forward.1} parent=11 // pred_check
        %p268 = pneg %p188
      $region38: #{psf_forward.1} parent=11 // pred_check_branch
        %270 = sbr.rel (%p268) target = $region40
      $region39: #{psf_forward.1} parent=11 // pred_region
        _
      $region40: #{psf_forward.1} parent=11 // pred_fallthru
        _
      // Predicated region
      $region41: #{psf_forward.1} parent=11 // pred_check
        %p271 = pneg %p209
      $region42: #{psf_forward.1} parent=11 // pred_check_branch
        %273 = sbr.rel (%p271) target = $region44
      $region43: #{psf_forward.1} parent=11 // pred_region
        _
      $region44: #{psf_forward.1} parent=11 // pred_fallthru
        _
    $region12: #{psf_forward.1} parent=5 // pred_fallthru
      _
    %p274 = scmp.lt.s32.totalorder %s15, 2
    // Predicated region
    $region45: #{psf_forward.1} parent=5 // pred_check
      %p275 = pneg %p274
    $region46: #{psf_forward.1} parent=5 // pred_check_branch
      %277 = sbr.rel (%p275) target = $region48
    $region47: #{psf_forward.1} parent=5 // pred_region
      // Predicated region
      $region49: #{psf_forward.1} parent=47 // pred_check
        %p278 = pneg %p35
      $region50: #{psf_forward.1} parent=47 // pred_check_branch
        %280 = sbr.rel (%p278) target = $region52
      $region51: #{psf_forward.1} parent=47 // pred_region
        %p281 = scmp.lt.s32.totalorder %s15, 1
        %s282 = scalar_select %p281, %s15, 1
        %s283 = smul.addr %s282, 32
        %s284 = smul.addr %s283, 8
        %s285 = scalar_lea.vmem %s0, %s284
      $region52: #{psf_forward.1} parent=47 // pred_fallthru
        _
    $region48: #{psf_forward.1} parent=5 // pred_fallthru
      _
    %p286 = scmp.le.s32.totalorder 1, %s15
    %p287 = scmp.lt.s32.totalorder %s15, 3
    %p288 = pnand %p286, %p287
    %p289 = pneg %p288
    // Predicated region
    $region53: #{psf_forward.1} parent=5 // pred_check
      _
    $region54: #{psf_forward.1} parent=5 // pred_check_branch
      %291 = sbr.rel (%p288) target = $region56
    $region55: #{psf_forward.1} parent=5 // pred_region
      %s292 = ssub.s32 %s15, 1
      %p293 = scmp.lt.s32.totalorder %s20, 1
      %s294 = scalar_select %p293, %s20, 1
      %s295 = smul.addr %s294, 32
      %s296 = smul.addr %s295, 8
      %s297 = scalar_lea.vmem %s0, %s296
      %p298 = pneg %p41
      %p299 = pneg %p38
      %p300 = pneg %p62
      %p301 = pneg %p59
      %p302 = pneg %p83
      %p303 = pneg %p80
      %p304 = pneg %p104
      %p305 = pneg %p101
      %p306 = pneg %p125
      %p307 = pneg %p122
      %p308 = pneg %p146
      %p309 = pneg %p143
      %p310 = pneg %p167
      %p311 = pneg %p164
      %p312 = pneg %p188
      %p313 = pneg %p185
      %p314 = pneg %p209
      %p315 = pneg %p206
      %p316 = pneg %p235
      %p317 = pneg %p232
      %s318 = smul.u32 4, %s20
      %p319 = scmp.lt.s32.totalorder %s318, 7
      %s320 = scalar_select %p319, %s318, 7
      %s321 = smul.addr %s320, 8
      %s322 = scalar_lea.vmem %s9, %s321
      %p323 = scmp.lt.s32.totalorder %s20, 1
      %s324 = scalar_select %p323, %s20, 1
      %s325 = smul.addr %s324, 32
      %s326 = smul.addr %s325, 8
      %s327 = scalar_lea.vmem %s0, %s326
      %s328 = smul.u32 4, %s20
      %p329 = scmp.lt.s32.totalorder %s328, 7
      %s330 = scalar_select %p329, %s328, 7
      %s331 = smul.addr %s330, 8
      %s332 = scalar_lea.vmem %s9, %s331
      %s333 = smul.u32 4, %s20
      %v335 = vld [vmem:[%s327] sm:$0xff]
      %v336 = vld [vmem:[%s327 + $0x8] sm:$0xff]
      %v337 = vld [vmem:[%s327 + $0x10] sm:$0xff]
      %v338 = vld [vmem:[%s327 + $0x18] sm:$0xff]
      %v339 = vld [vmem:[%s327 + $0x20] sm:$0xff]
      %v340 = vld [vmem:[%s327 + $0x28] sm:$0xff]
      %v341 = vld [vmem:[%s327 + $0x30] sm:$0xff]
      %v342 = vld [vmem:[%s327 + $0x38] sm:$0xff]
      %v343 = vld [vmem:[%s327 + $0x40] sm:$0xff]
      %v344 = vld [vmem:[%s327 + $0x48] sm:$0xff]
      %v345 = vld [vmem:[%s327 + $0x50] sm:$0xff]
      %v346 = vld [vmem:[%s327 + $0x58] sm:$0xff]
      %v347 = vld [vmem:[%s327 + $0x60] sm:$0xff]
      %v348 = vld [vmem:[%s327 + $0x68] sm:$0xff]
      %v349 = vld [vmem:[%s327 + $0x70] sm:$0xff]
      %v350 = vld [vmem:[%s327 + $0x78] sm:$0xff]
      %v351 = vld [vmem:[%s327 + $0x80] sm:$0xff]
      %v352 = vld [vmem:[%s327 + $0x88] sm:$0xff]
      %v353 = vld [vmem:[%s327 + $0x90] sm:$0xff]
      %v354 = vld [vmem:[%s327 + $0x98] sm:$0xff]
      %v355 = vld [vmem:[%s327 + $0xa0] sm:$0xff]
      %v356 = vld [vmem:[%s327 + $0xa8] sm:$0xff]
      %v357 = vld [vmem:[%s327 + $0xb0] sm:$0xff]
      %v358 = vld [vmem:[%s327 + $0xb8] sm:$0xff]
      %v359 = vld [vmem:[%s327 + $0xc0] sm:$0xff]
      %v360 = vld [vmem:[%s327 + $0xc8] sm:$0xff]
      %v361 = vld [vmem:[%s327 + $0xd0] sm:$0xff]
      %v362 = vld [vmem:[%s327 + $0xd8] sm:$0xff]
      %v363 = vld [vmem:[%s327 + $0xe0] sm:$0xff]
      %v364 = vld [vmem:[%s327 + $0xe8] sm:$0xff]
      %v365 = vld [vmem:[%s327 + $0xf0] sm:$0xff]
      %v366 = vld [vmem:[%s327 + $0xf8] sm:$0xff]
      %v367 = vlaneseq
      %v368 = vand.u32 %v367, 127
      %369 = vset.pattern.permute.xlu0 0
      %370 = vperm.xlu0 %369, %v335
      %v371 = vpop.permute.xlu0 %370
      %372 = vset.pattern.permute.xlu0 0
      %373 = vperm.xlu0 %372, %v336
      %v374 = vpop.permute.xlu0 %373
      %375 = vset.pattern.permute.xlu0 0
      %376 = vperm.xlu0 %375, %v337
      %v377 = vpop.permute.xlu0 %376
      %378 = vset.pattern.permute.xlu0 0
      %379 = vperm.xlu0 %378, %v338
      %v380 = vpop.permute.xlu0 %379
      %381 = vset.pattern.permute.xlu0 0
      %382 = vperm.xlu0 %381, %v339
      %v383 = vpop.permute.xlu0 %382
      %384 = vset.pattern.permute.xlu0 0
      %385 = vperm.xlu0 %384, %v340
      %v386 = vpop.permute.xlu0 %385
      %387 = vset.pattern.permute.xlu0 0
      %388 = vperm.xlu0 %387, %v341
      %v389 = vpop.permute.xlu0 %388
      %390 = vset.pattern.permute.xlu0 0
      %391 = vperm.xlu0 %390, %v342
      %v392 = vpop.permute.xlu0 %391
      %393 = vset.pattern.permute.xlu0 0
      %394 = vperm.xlu0 %393, %v343
      %v395 = vpop.permute.xlu0 %394
      %396 = vset.pattern.permute.xlu0 0
      %397 = vperm.xlu0 %396, %v344
      %v398 = vpop.permute.xlu0 %397
      %399 = vset.pattern.permute.xlu0 0
      %400 = vperm.xlu0 %399, %v345
      %v401 = vpop.permute.xlu0 %400
      %402 = vset.pattern.permute.xlu0 0
      %403 = vperm.xlu0 %402, %v346
      %v404 = vpop.permute.xlu0 %403
      %405 = vset.pattern.permute.xlu0 0
      %406 = vperm.xlu0 %405, %v347
      %v407 = vpop.permute.xlu0 %406
      %408 = vset.pattern.permute.xlu0 0
      %409 = vperm.xlu0 %408, %v348
      %v410 = vpop.permute.xlu0 %409
      %411 = vset.pattern.permute.xlu0 0
      %412 = vperm.xlu0 %411, %v349
      %v413 = vpop.permute.xlu0 %412
      %414 = vset.pattern.permute.xlu0 0
      %415 = vperm.xlu0 %414, %v350
      %v416 = vpop.permute.xlu0 %415
      %417 = vset.pattern.permute.xlu0 0
      %418 = vperm.xlu0 %417, %v351
      %v419 = vpop.permute.xlu0 %418
      %420 = vset.pattern.permute.xlu0 0
      %421 = vperm.xlu0 %420, %v352
      %v422 = vpop.permute.xlu0 %421
      %423 = vset.pattern.permute.xlu0 0
      %424 = vperm.xlu0 %423, %v353
      %v425 = vpop.permute.xlu0 %424
      %426 = vset.pattern.permute.xlu0 0
      %427 = vperm.xlu0 %426, %v354
      %v428 = vpop.permute.xlu0 %427
      %429 = vset.pattern.permute.xlu0 0
      %430 = vperm.xlu0 %429, %v355
      %v431 = vpop.permute.xlu0 %430
      %432 = vset.pattern.permute.xlu0 0
      %433 = vperm.xlu0 %432, %v356
      %v434 = vpop.permute.xlu0 %433
      %435 = vset.pattern.permute.xlu0 0
      %436 = vperm.xlu0 %435, %v357
      %v437 = vpop.permute.xlu0 %436
      %438 = vset.pattern.permute.xlu0 0
      %439 = vperm.xlu0 %438, %v358
      %v440 = vpop.permute.xlu0 %439
      %441 = vset.pattern.permute.xlu0 0
      %442 = vperm.xlu0 %441, %v359
      %v443 = vpop.permute.xlu0 %442
      %444 = vset.pattern.permute.xlu0 0
      %445 = vperm.xlu0 %444, %v360
      %v446 = vpop.permute.xlu0 %445
      %447 = vset.pattern.permute.xlu0 0
      %448 = vperm.xlu0 %447, %v361
      %v449 = vpop.permute.xlu0 %448
      %450 = vset.pattern.permute.xlu0 0
      %451 = vperm.xlu0 %450, %v362
      %v452 = vpop.permute.xlu0 %451
      %453 = vset.pattern.permute.xlu0 0
      %454 = vperm.xlu0 %453, %v363
      %v455 = vpop.permute.xlu0 %454
      %456 = vset.pattern.permute.xlu0 0
      %457 = vperm.xlu0 %456, %v364
      %v458 = vpop.permute.xlu0 %457
      %459 = vset.pattern.permute.xlu0 0
      %460 = vperm.xlu0 %459, %v365
      %v461 = vpop.permute.xlu0 %460
      %462 = vset.pattern.permute.xlu0 0
      %463 = vperm.xlu0 %462, %v366
      %v464 = vpop.permute.xlu0 %463
      %vm465 = vcmp.eq.s32.totalorder %v371, %v368
      %vm466 = vcmp.eq.s32.totalorder %v374, %v368
      %vm467 = vcmp.eq.s32.totalorder %v377, %v368
      %vm468 = vcmp.eq.s32.totalorder %v380, %v368
      %vm469 = vcmp.eq.s32.totalorder %v383, %v368
      %vm470 = vcmp.eq.s32.totalorder %v386, %v368
      %vm471 = vcmp.eq.s32.totalorder %v389, %v368
      %vm472 = vcmp.eq.s32.totalorder %v392, %v368
      %vm473 = vcmp.eq.s32.totalorder %v395, %v368
      %vm474 = vcmp.eq.s32.totalorder %v398, %v368
      %vm475 = vcmp.eq.s32.totalorder %v401, %v368
      %vm476 = vcmp.eq.s32.totalorder %v404, %v368
      %vm477 = vcmp.eq.s32.totalorder %v407, %v368
      %vm478 = vcmp.eq.s32.totalorder %v410, %v368
      %vm479 = vcmp.eq.s32.totalorder %v413, %v368
      %vm480 = vcmp.eq.s32.totalorder %v416, %v368
      %vm481 = vcmp.eq.s32.totalorder %v419, %v368
      %vm482 = vcmp.eq.s32.totalorder %v422, %v368
      %vm483 = vcmp.eq.s32.totalorder %v425, %v368
      %vm484 = vcmp.eq.s32.totalorder %v428, %v368
      %vm485 = vcmp.eq.s32.totalorder %v431, %v368
      %vm486 = vcmp.eq.s32.totalorder %v434, %v368
      %vm487 = vcmp.eq.s32.totalorder %v437, %v368
      %vm488 = vcmp.eq.s32.totalorder %v440, %v368
      %vm489 = vcmp.eq.s32.totalorder %v443, %v368
      %vm490 = vcmp.eq.s32.totalorder %v446, %v368
      %vm491 = vcmp.eq.s32.totalorder %v449, %v368
      %vm492 = vcmp.eq.s32.totalorder %v452, %v368
      %vm493 = vcmp.eq.s32.totalorder %v455, %v368
      %vm494 = vcmp.eq.s32.totalorder %v458, %v368
      %vm495 = vcmp.eq.s32.totalorder %v461, %v368
      %vm496 = vcmp.eq.s32.totalorder %v464, %v368
      %v497 = vsel %vm465, 1.0, 0.0
      %v498 = vsel %vm466, 1.0, 0.0
      %v499 = vsel %vm467, 1.0, 0.0
      %v500 = vsel %vm468, 1.0, 0.0
      %v501 = vsel %vm469, 1.0, 0.0
      %v502 = vsel %vm470, 1.0, 0.0
      %v503 = vsel %vm471, 1.0, 0.0
      %v504 = vsel %vm472, 1.0, 0.0
      %v505 = vsel %vm473, 1.0, 0.0
      %v506 = vsel %vm474, 1.0, 0.0
      %v507 = vsel %vm475, 1.0, 0.0
      %v508 = vsel %vm476, 1.0, 0.0
      %v509 = vsel %vm477, 1.0, 0.0
      %v510 = vsel %vm478, 1.0, 0.0
      %v511 = vsel %vm479, 1.0, 0.0
      %v512 = vsel %vm480, 1.0, 0.0
      %v513 = vsel %vm481, 1.0, 0.0
      %v514 = vsel %vm482, 1.0, 0.0
      %v515 = vsel %vm483, 1.0, 0.0
      %v516 = vsel %vm484, 1.0, 0.0
      %v517 = vsel %vm485, 1.0, 0.0
      %v518 = vsel %vm486, 1.0, 0.0
      %v519 = vsel %vm487, 1.0, 0.0
      %v520 = vsel %vm488, 1.0, 0.0
      %v521 = vsel %vm489, 1.0, 0.0
      %v522 = vsel %vm490, 1.0, 0.0
      %v523 = vsel %vm491, 1.0, 0.0
      %v524 = vsel %vm492, 1.0, 0.0
      %v525 = vsel %vm493, 1.0, 0.0
      %v526 = vsel %vm494, 1.0, 0.0
      %v527 = vsel %vm495, 1.0, 0.0
      %v528 = vsel %vm496, 1.0, 0.0
      %v529 = vpack.c.bf16 %v498, %v497
      %v530 = vpack.c.bf16 %v500, %v499
      %v531 = vpack.c.bf16 %v502, %v501
      %v532 = vpack.c.bf16 %v504, %v503
      %v533 = vpack.c.bf16 %v506, %v505
      %v534 = vpack.c.bf16 %v508, %v507
      %v535 = vpack.c.bf16 %v510, %v509
      %v536 = vpack.c.bf16 %v512, %v511
      %v537 = vpack.c.bf16 %v514, %v513
      %v538 = vpack.c.bf16 %v516, %v515
      %v539 = vpack.c.bf16 %v518, %v517
      %v540 = vpack.c.bf16 %v520, %v519
      %v541 = vpack.c.bf16 %v522, %v521
      %v542 = vpack.c.bf16 %v524, %v523
      %v543 = vpack.c.bf16 %v526, %v525
      %v544 = vpack.c.bf16 %v528, %v527
      %v545 = vld [vmem:[%s1] sm:$0xf]
      %v546 = vld [vmem:[%s1 + $0x4] sm:$0xf]
      %v549 = vunpack.c.l.b16 %v545
      %v550 = vunpack.c.l.b16 %v546
      %v551 = vpack.c.b16 %v550, %v549
      %vm553 = vcmask 130048
      %v555 = vsel %vm553, %v529, 0
      %v558 = vsel %vm553, %v530, 0
      %v561 = vsel %vm553, %v531, 0
      %v564 = vsel %vm553, %v532, 0
      %v567 = vsel %vm553, %v533, 0
      %v570 = vsel %vm553, %v534, 0
      %v573 = vsel %vm553, %v535, 0
      %v576 = vsel %vm553, %v536, 0
      %v579 = vsel %vm553, %v537, 0
      %v582 = vsel %vm553, %v538, 0
      %v585 = vsel %vm553, %v539, 0
      %v588 = vsel %vm553, %v540, 0
      %v591 = vsel %vm553, %v541, 0
      %v594 = vsel %vm553, %v542, 0
      %v597 = vsel %vm553, %v543, 0
      %v600 = vsel %vm553, %v544, 0
      %602 = vmatpush.bf16.msra.mxu0 0
      %603 = vmatpush.bf16.msra.mxu0 0
      %604 = vmatpush.bf16.msra.mxu0 0
      %605 = vmatpush.bf16.msra.mxu0 0
      %606 = vmatpush.bf16.msra.mxu0 0
      %607 = vmatpush.bf16.msra.mxu0 0
      %608 = vmatpush.bf16.msra.mxu0 0
      %609 = vmatpush.bf16.msra.mxu0 %v551
      %610 = vmatmul.bf16.gmra.mxu0 %v555
      %v611 = vpop.f32.mrf.mxu0
      %v612 = vadd.f32 0.0, %v611
      %v613 = vpop.f32.mrf.mxu0
      %v614 = vadd.f32 0.0, %v613
      %615 = vmatmul.bf16.gmra.mxu0 %v558
      %v616 = vpop.f32.mrf.mxu0
      %v617 = vadd.f32 0.0, %v616
      %v618 = vpop.f32.mrf.mxu0
      %v619 = vadd.f32 0.0, %v618
      %620 = vmatmul.bf16.gmra.mxu0 %v561
      %v621 = vpop.f32.mrf.mxu0
      %v622 = vadd.f32 0.0, %v621
      %v623 = vpop.f32.mrf.mxu0
      %v624 = vadd.f32 0.0, %v623
      %625 = vmatmul.bf16.gmra.mxu0 %v564
      %v626 = vpop.f32.mrf.mxu0
      %v627 = vadd.f32 0.0, %v626
      %v628 = vpop.f32.mrf.mxu0
      %v629 = vadd.f32 0.0, %v628
      %630 = vmatmul.bf16.gmra.mxu0 %v567
      %v631 = vpop.f32.mrf.mxu0
      %v632 = vadd.f32 0.0, %v631
      %v633 = vpop.f32.mrf.mxu0
      %v634 = vadd.f32 0.0, %v633
      %635 = vmatmul.bf16.gmra.mxu0 %v570
      %v636 = vpop.f32.mrf.mxu0
      %v637 = vadd.f32 0.0, %v636
      %v638 = vpop.f32.mrf.mxu0
      %v639 = vadd.f32 0.0, %v638
      %640 = vmatmul.bf16.gmra.mxu0 %v573
      %v641 = vpop.f32.mrf.mxu0
      %v642 = vadd.f32 0.0, %v641
      %v643 = vpop.f32.mrf.mxu0
      %v644 = vadd.f32 0.0, %v643
      %645 = vmatmul.bf16.gmra.mxu0 %v576
      %v646 = vpop.f32.mrf.mxu0
      %v647 = vadd.f32 0.0, %v646
      %v648 = vpop.f32.mrf.mxu0
      %v649 = vadd.f32 0.0, %v648
      %650 = vmatmul.bf16.gmra.mxu0 %v579
      %v651 = vpop.f32.mrf.mxu0
      %v652 = vadd.f32 0.0, %v651
      %v653 = vpop.f32.mrf.mxu0
      %v654 = vadd.f32 0.0, %v653
      %655 = vmatmul.bf16.gmra.mxu0 %v582
      %v656 = vpop.f32.mrf.mxu0
      %v657 = vadd.f32 0.0, %v656
      %v658 = vpop.f32.mrf.mxu0
      %v659 = vadd.f32 0.0, %v658
      %660 = vmatmul.bf16.gmra.mxu0 %v585
      %v661 = vpop.f32.mrf.mxu0
      %v662 = vadd.f32 0.0, %v661
      %v663 = vpop.f32.mrf.mxu0
      %v664 = vadd.f32 0.0, %v663
      %665 = vmatmul.bf16.gmra.mxu0 %v588
      %v666 = vpop.f32.mrf.mxu0
      %v667 = vadd.f32 0.0, %v666
      %v668 = vpop.f32.mrf.mxu0
      %v669 = vadd.f32 0.0, %v668
      %670 = vmatmul.bf16.gmra.mxu0 %v591
      %v671 = vpop.f32.mrf.mxu0
      %v672 = vadd.f32 0.0, %v671
      %v673 = vpop.f32.mrf.mxu0
      %v674 = vadd.f32 0.0, %v673
      %675 = vmatmul.bf16.gmra.mxu0 %v594
      %v676 = vpop.f32.mrf.mxu0
      %v677 = vadd.f32 0.0, %v676
      %v678 = vpop.f32.mrf.mxu0
      %v679 = vadd.f32 0.0, %v678
      %680 = vmatmul.bf16.gmra.mxu0 %v597
      %v681 = vpop.f32.mrf.mxu0
      %v682 = vadd.f32 0.0, %v681
      %v683 = vpop.f32.mrf.mxu0
      %v684 = vadd.f32 0.0, %v683
      %685 = vmatmul.bf16.gmra.mxu0 %v600
      %v686 = vpop.f32.mrf.mxu0
      %v687 = vadd.f32 0.0, %v686
      %v688 = vpop.f32.mrf.mxu0
      %v689 = vadd.f32 0.0, %v688
      %690 = vdwg.mxu0
      %v691 = vpack.c.bf16 %v614, %v612
      %v692 = vpack.c.bf16 %v619, %v617
      %v693 = vpack.c.bf16 %v624, %v622
      %v694 = vpack.c.bf16 %v629, %v627
      %v695 = vpack.c.bf16 %v634, %v632
      %v696 = vpack.c.bf16 %v639, %v637
      %v697 = vpack.c.bf16 %v644, %v642
      %v698 = vpack.c.bf16 %v649, %v647
      %v699 = vpack.c.bf16 %v654, %v652
      %v700 = vpack.c.bf16 %v659, %v657
      %v701 = vpack.c.bf16 %v664, %v662
      %v702 = vpack.c.bf16 %v669, %v667
      %v703 = vpack.c.bf16 %v674, %v672
      %v704 = vpack.c.bf16 %v679, %v677
      %v705 = vpack.c.bf16 %v684, %v682
      %v706 = vpack.c.bf16 %v689, %v687
      %v707 = vld [vmem:[%s2] sm:$0xf]
      %v708 = vld [vmem:[%s2 + $0x4] sm:$0xf]
      %v709 = vld [vmem:[%s2 + $0x8] sm:$0xf]
      %v710 = vld [vmem:[%s2 + $0xc] sm:$0xf]
      %v711 = vld [vmem:[%s3] sm:$0xff]
      %v712 = vld [vmem:[%s3 + $0x8] sm:$0xff]
      %v713 = vld [vmem:[%s3 + $0x10] sm:$0xff]
      %v714 = vld [vmem:[%s3 + $0x18] sm:$0xff]
      %v715 = vld [vmem:[%s3 + $0x20] sm:$0xff]
      %v716 = vld [vmem:[%s3 + $0x28] sm:$0xff]
      %v717 = vld [vmem:[%s3 + $0x30] sm:$0xff]
      %v718 = vld [vmem:[%s3 + $0x38] sm:$0xff]
      %v719 = vld [vmem:[%s3 + $0x40] sm:$0xff]
      %v720 = vld [vmem:[%s3 + $0x48] sm:$0xff]
      %v721 = vld [vmem:[%s3 + $0x50] sm:$0xff]
      %v722 = vld [vmem:[%s3 + $0x58] sm:$0xff]
      %v723 = vld [vmem:[%s3 + $0x60] sm:$0xff]
      %v724 = vld [vmem:[%s3 + $0x68] sm:$0xff]
      %v725 = vld [vmem:[%s3 + $0x70] sm:$0xff]
      %v726 = vld [vmem:[%s3 + $0x78] sm:$0xff]
      %v727 = vld [vmem:[%s3 + $0x80] sm:$0xff]
      %v728 = vld [vmem:[%s3 + $0x88] sm:$0xff]
      %v729 = vld [vmem:[%s3 + $0x90] sm:$0xff]
      %v730 = vld [vmem:[%s3 + $0x98] sm:$0xff]
      %v731 = vld [vmem:[%s3 + $0xa0] sm:$0xff]
      %v732 = vld [vmem:[%s3 + $0xa8] sm:$0xff]
      %v733 = vld [vmem:[%s3 + $0xb0] sm:$0xff]
      %v734 = vld [vmem:[%s3 + $0xb8] sm:$0xff]
      %v735 = vld [vmem:[%s3 + $0xc0] sm:$0xff]
      %v736 = vld [vmem:[%s3 + $0xc8] sm:$0xff]
      %v737 = vld [vmem:[%s3 + $0xd0] sm:$0xff]
      %v738 = vld [vmem:[%s3 + $0xd8] sm:$0xff]
      %v739 = vld [vmem:[%s3 + $0xe0] sm:$0xff]
      %v740 = vld [vmem:[%s3 + $0xe8] sm:$0xff]
      %v741 = vld [vmem:[%s3 + $0xf0] sm:$0xff]
      %v742 = vld [vmem:[%s3 + $0xf8] sm:$0xff]
      %v747 = vunpack.c.l.b16 %v707
      %v748 = vunpack.c.l.b16 %v708
      %v749 = vunpack.c.l.b16 %v709
      %v750 = vunpack.c.l.b16 %v710
      %v751 = vpack.c.b16 %v748, %v747
      %v752 = vpack.c.b16 %v750, %v749
      %vm755 = vcmask 261120
      %v757 = vsel %vm755, %v691, 0
      %v760 = vsel %vm755, %v692, 0
      %v763 = vsel %vm755, %v693, 0
      %v766 = vsel %vm755, %v694, 0
      %v769 = vsel %vm755, %v695, 0
      %v772 = vsel %vm755, %v696, 0
      %v775 = vsel %vm755, %v697, 0
      %v778 = vsel %vm755, %v698, 0
      %v781 = vsel %vm755, %v699, 0
      %v784 = vsel %vm755, %v700, 0
      %v787 = vsel %vm755, %v701, 0
      %v790 = vsel %vm755, %v702, 0
      %v793 = vsel %vm755, %v703, 0
      %v796 = vsel %vm755, %v704, 0
      %v799 = vsel %vm755, %v705, 0
      %v802 = vsel %vm755, %v706, 0
      %804 = vmatpush.bf16.msra.mxu0 0
      %805 = vmatpush.bf16.msra.mxu0 0
      %806 = vmatpush.bf16.msra.mxu0 0
      %807 = vmatpush.bf16.msra.mxu0 0
      %808 = vmatpush.bf16.msra.mxu0 0
      %809 = vmatpush.bf16.msra.mxu0 0
      %810 = vmatpush.bf16.msra.mxu0 %v752
      %811 = vmatpush.bf16.msra.mxu0 %v751
      %812 = vmatmul.bf16.gmra.mxu0 %v757
      %v813 = vpop.f32.mrf.mxu0
      %v814 = vadd.f32 %v711, %v813
      %v815 = vpop.f32.mrf.mxu0
      %v816 = vadd.f32 %v712, %v815
      %817 = vmatmul.bf16.gmra.mxu0 %v760
      %v818 = vpop.f32.mrf.mxu0
      %v819 = vadd.f32 %v713, %v818
      %v820 = vpop.f32.mrf.mxu0
      %v821 = vadd.f32 %v714, %v820
      %822 = vmatmul.bf16.gmra.mxu0 %v763
      %v823 = vpop.f32.mrf.mxu0
      %v824 = vadd.f32 %v715, %v823
      %v825 = vpop.f32.mrf.mxu0
      %v826 = vadd.f32 %v716, %v825
      %827 = vmatmul.bf16.gmra.mxu0 %v766
      %v828 = vpop.f32.mrf.mxu0
      %v829 = vadd.f32 %v717, %v828
      %v830 = vpop.f32.mrf.mxu0
      %v831 = vadd.f32 %v718, %v830
      %832 = vmatmul.bf16.gmra.mxu0 %v769
      %v833 = vpop.f32.mrf.mxu0
      %v834 = vadd.f32 %v719, %v833
      %v835 = vpop.f32.mrf.mxu0
      %v836 = vadd.f32 %v720, %v835
      %837 = vmatmul.bf16.gmra.mxu0 %v772
      %v838 = vpop.f32.mrf.mxu0
      %v839 = vadd.f32 %v721, %v838
      %v840 = vpop.f32.mrf.mxu0
      %v841 = vadd.f32 %v722, %v840
      %842 = vmatmul.bf16.gmra.mxu0 %v775
      %v843 = vpop.f32.mrf.mxu0
      %v844 = vadd.f32 %v723, %v843
      %v845 = vpop.f32.mrf.mxu0
      %v846 = vadd.f32 %v724, %v845
      %847 = vmatmul.bf16.gmra.mxu0 %v778
      %v848 = vpop.f32.mrf.mxu0
      %v849 = vadd.f32 %v725, %v848
      %v850 = vpop.f32.mrf.mxu0
      %v851 = vadd.f32 %v726, %v850
      %852 = vmatmul.bf16.gmra.mxu0 %v781
      %v853 = vpop.f32.mrf.mxu0
      %v854 = vadd.f32 %v727, %v853
      %v855 = vpop.f32.mrf.mxu0
      %v856 = vadd.f32 %v728, %v855
      %857 = vmatmul.bf16.gmra.mxu0 %v784
      %v858 = vpop.f32.mrf.mxu0
      %v859 = vadd.f32 %v729, %v858
      %v860 = vpop.f32.mrf.mxu0
      %v861 = vadd.f32 %v730, %v860
      %862 = vmatmul.bf16.gmra.mxu0 %v787
      %v863 = vpop.f32.mrf.mxu0
      %v864 = vadd.f32 %v731, %v863
      %v865 = vpop.f32.mrf.mxu0
      %v866 = vadd.f32 %v732, %v865
      %867 = vmatmul.bf16.gmra.mxu0 %v790
      %v868 = vpop.f32.mrf.mxu0
      %v869 = vadd.f32 %v733, %v868
      %v870 = vpop.f32.mrf.mxu0
      %v871 = vadd.f32 %v734, %v870
      %872 = vmatmul.bf16.gmra.mxu0 %v793
      %v873 = vpop.f32.mrf.mxu0
      %v874 = vadd.f32 %v735, %v873
      %v875 = vpop.f32.mrf.mxu0
      %v876 = vadd.f32 %v736, %v875
      %877 = vmatmul.bf16.gmra.mxu0 %v796
      %v878 = vpop.f32.mrf.mxu0
      %v879 = vadd.f32 %v737, %v878
      %v880 = vpop.f32.mrf.mxu0
      %v881 = vadd.f32 %v738, %v880
      %882 = vmatmul.bf16.gmra.mxu0 %v799
      %v883 = vpop.f32.mrf.mxu0
      %v884 = vadd.f32 %v739, %v883
      %v885 = vpop.f32.mrf.mxu0
      %v886 = vadd.f32 %v740, %v885
      %887 = vmatmul.bf16.gmra.mxu0 %v802
      %v888 = vpop.f32.mrf.mxu0
      %v889 = vadd.f32 %v741, %v888
      %v890 = vpop.f32.mrf.mxu0
      %v891 = vadd.f32 %v742, %v890
      %892 = vdwg.mxu0
      %v893 = vpack.c.bf16 %v814, %v814
      %v894 = vpack.c.bf16 %v816, %v816
      %v895 = vpack.c.bf16 %v819, %v819
      %v896 = vpack.c.bf16 %v821, %v821
      %v897 = vpack.c.bf16 %v824, %v824
      %v898 = vpack.c.bf16 %v826, %v826
      %v899 = vpack.c.bf16 %v829, %v829
      %v900 = vpack.c.bf16 %v831, %v831
      %v901 = vpack.c.bf16 %v834, %v834
      %v902 = vpack.c.bf16 %v836, %v836
      %v903 = vpack.c.bf16 %v839, %v839
      %v904 = vpack.c.bf16 %v841, %v841
      %v905 = vpack.c.bf16 %v844, %v844
      %v906 = vpack.c.bf16 %v846, %v846
      %v907 = vpack.c.bf16 %v849, %v849
      %v908 = vpack.c.bf16 %v851, %v851
      %v909 = vpack.c.bf16 %v854, %v854
      %v910 = vpack.c.bf16 %v856, %v856
      %v911 = vpack.c.bf16 %v859, %v859
      %v912 = vpack.c.bf16 %v861, %v861
      %v913 = vpack.c.bf16 %v864, %v864
      %v914 = vpack.c.bf16 %v866, %v866
      %v915 = vpack.c.bf16 %v869, %v869
      %v916 = vpack.c.bf16 %v871, %v871
      %v917 = vpack.c.bf16 %v874, %v874
      %v918 = vpack.c.bf16 %v876, %v876
      %v919 = vpack.c.bf16 %v879, %v879
      %v920 = vpack.c.bf16 %v881, %v881
      %v921 = vpack.c.bf16 %v884, %v884
      %v922 = vpack.c.bf16 %v886, %v886
      %v923 = vpack.c.bf16 %v889, %v889
      %v924 = vpack.c.bf16 %v891, %v891
      %v925 = vunpack.c.l.bf16 %v893
      %v926 = vunpack.c.l.bf16 %v894
      %v927 = vunpack.c.l.bf16 %v895
      %v928 = vunpack.c.l.bf16 %v896
      %v929 = vunpack.c.l.bf16 %v897
      %v930 = vunpack.c.l.bf16 %v898
      %v931 = vunpack.c.l.bf16 %v899
      %v932 = vunpack.c.l.bf16 %v900
      %v933 = vunpack.c.l.bf16 %v901
      %v934 = vunpack.c.l.bf16 %v902
      %v935 = vunpack.c.l.bf16 %v903
      %v936 = vunpack.c.l.bf16 %v904
      %v937 = vunpack.c.l.bf16 %v905
      %v938 = vunpack.c.l.bf16 %v906
      %v939 = vunpack.c.l.bf16 %v907
      %v940 = vunpack.c.l.bf16 %v908
      %v941 = vunpack.c.l.bf16 %v909
      %v942 = vunpack.c.l.bf16 %v910
      %v943 = vunpack.c.l.bf16 %v911
      %v944 = vunpack.c.l.bf16 %v912
      %v945 = vunpack.c.l.bf16 %v913
      %v946 = vunpack.c.l.bf16 %v914
      %v947 = vunpack.c.l.bf16 %v915
      %v948 = vunpack.c.l.bf16 %v916
      %v949 = vunpack.c.l.bf16 %v917
      %v950 = vunpack.c.l.bf16 %v918
      %v951 = vunpack.c.l.bf16 %v919
      %v952 = vunpack.c.l.bf16 %v920
      %v953 = vunpack.c.l.bf16 %v921
      %v954 = vunpack.c.l.bf16 %v922
      %v955 = vunpack.c.l.bf16 %v923
      %v956 = vunpack.c.l.bf16 %v924
      %v957 = vmul.f32 %v925, 0.5
      %v958 = vmul.f32 %v926, 0.5
      %v959 = vmul.f32 %v927, 0.5
      %v960 = vmul.f32 %v928, 0.5
      %v961 = vmul.f32 %v929, 0.5
      %v962 = vmul.f32 %v930, 0.5
      %v963 = vmul.f32 %v931, 0.5
      %v964 = vmul.f32 %v932, 0.5
      %v965 = vmul.f32 %v933, 0.5
      %v966 = vmul.f32 %v934, 0.5
      %v967 = vmul.f32 %v935, 0.5
      %v968 = vmul.f32 %v936, 0.5
      %v969 = vmul.f32 %v937, 0.5
      %v970 = vmul.f32 %v938, 0.5
      %v971 = vmul.f32 %v939, 0.5
      %v972 = vmul.f32 %v940, 0.5
      %v973 = vmul.f32 %v941, 0.5
      %v974 = vmul.f32 %v942, 0.5
      %v975 = vmul.f32 %v943, 0.5
      %v976 = vmul.f32 %v944, 0.5
      %v977 = vmul.f32 %v945, 0.5
      %v978 = vmul.f32 %v946, 0.5
      %v979 = vmul.f32 %v947, 0.5
      %v980 = vmul.f32 %v948, 0.5
      %v981 = vmul.f32 %v949, 0.5
      %v982 = vmul.f32 %v950, 0.5
      %v983 = vmul.f32 %v951, 0.5
      %v984 = vmul.f32 %v952, 0.5
      %v985 = vmul.f32 %v953, 0.5
      %v986 = vmul.f32 %v954, 0.5
      %v987 = vmul.f32 %v955, 0.5
      %v988 = vmul.f32 %v956, 0.5
      %v989 = vpack.c.bf16 %v957, %v957
      %v990 = vpack.c.bf16 %v958, %v958
      %v991 = vpack.c.bf16 %v959, %v959
      %v992 = vpack.c.bf16 %v960, %v960
      %v993 = vpack.c.bf16 %v961, %v961
      %v994 = vpack.c.bf16 %v962, %v962
      %v995 = vpack.c.bf16 %v963, %v963
      %v996 = vpack.c.bf16 %v964, %v964
      %v997 = vpack.c.bf16 %v965, %v965
      %v998 = vpack.c.bf16 %v966, %v966
      %v999 = vpack.c.bf16 %v967, %v967
      %v1000 = vpack.c.bf16 %v968, %v968
      %v1001 = vpack.c.bf16 %v969, %v969
      %v1002 = vpack.c.bf16 %v970, %v970
      %v1003 = vpack.c.bf16 %v971, %v971
      %v1004 = vpack.c.bf16 %v972, %v972
      %v1005 = vpack.c.bf16 %v973, %v973
      %v1006 = vpack.c.bf16 %v974, %v974
      %v1007 = vpack.c.bf16 %v975, %v975
      %v1008 = vpack.c.bf16 %v976, %v976
      %v1009 = vpack.c.bf16 %v977, %v977
      %v1010 = vpack.c.bf16 %v978, %v978
      %v1011 = vpack.c.bf16 %v979, %v979
      %v1012 = vpack.c.bf16 %v980, %v980
      %v1013 = vpack.c.bf16 %v981, %v981
      %v1014 = vpack.c.bf16 %v982, %v982
      %v1015 = vpack.c.bf16 %v983, %v983
      %v1016 = vpack.c.bf16 %v984, %v984
      %v1017 = vpack.c.bf16 %v985, %v985
      %v1018 = vpack.c.bf16 %v986, %v986
      %v1019 = vpack.c.bf16 %v987, %v987
      %v1020 = vpack.c.bf16 %v988, %v988
      %v1021 = vmul.f32 %v925, 0.044677734
      %v1022 = vmul.f32 %v926, 0.044677734
      %v1023 = vmul.f32 %v927, 0.044677734
      %v1024 = vmul.f32 %v928, 0.044677734
      %v1025 = vmul.f32 %v929, 0.044677734
      %v1026 = vmul.f32 %v930, 0.044677734
      %v1027 = vmul.f32 %v931, 0.044677734
      %v1028 = vmul.f32 %v932, 0.044677734
      %v1029 = vmul.f32 %v933, 0.044677734
      %v1030 = vmul.f32 %v934, 0.044677734
      %v1031 = vmul.f32 %v935, 0.044677734
      %v1032 = vmul.f32 %v936, 0.044677734
      %v1033 = vmul.f32 %v937, 0.044677734
      %v1034 = vmul.f32 %v938, 0.044677734
      %v1035 = vmul.f32 %v939, 0.044677734
      %v1036 = vmul.f32 %v940, 0.044677734
      %v1037 = vmul.f32 %v941, 0.044677734
      %v1038 = vmul.f32 %v942, 0.044677734
      %v1039 = vmul.f32 %v943, 0.044677734
      %v1040 = vmul.f32 %v944, 0.044677734
      %v1041 = vmul.f32 %v945, 0.044677734
      %v1042 = vmul.f32 %v946, 0.044677734
      %v1043 = vmul.f32 %v947, 0.044677734
      %v1044 = vmul.f32 %v948, 0.044677734
      %v1045 = vmul.f32 %v949, 0.044677734
      %v1046 = vmul.f32 %v950, 0.044677734
      %v1047 = vmul.f32 %v951, 0.044677734
      %v1048 = vmul.f32 %v952, 0.044677734
      %v1049 = vmul.f32 %v953, 0.044677734
      %v1050 = vmul.f32 %v954, 0.044677734
      %v1051 = vmul.f32 %v955, 0.044677734
      %v1052 = vmul.f32 %v956, 0.044677734
      %v1053 = vpack.c.bf16 %v1021, %v1021
      %v1054 = vpack.c.bf16 %v1022, %v1022
      %v1055 = vpack.c.bf16 %v1023, %v1023
      %v1056 = vpack.c.bf16 %v1024, %v1024
      %v1057 = vpack.c.bf16 %v1025, %v1025
      %v1058 = vpack.c.bf16 %v1026, %v1026
      %v1059 = vpack.c.bf16 %v1027, %v1027
      %v1060 = vpack.c.bf16 %v1028, %v1028
      %v1061 = vpack.c.bf16 %v1029, %v1029
      %v1062 = vpack.c.bf16 %v1030, %v1030
      %v1063 = vpack.c.bf16 %v1031, %v1031
      %v1064 = vpack.c.bf16 %v1032, %v1032
      %v1065 = vpack.c.bf16 %v1033, %v1033
      %v1066 = vpack.c.bf16 %v1034, %v1034
      %v1067 = vpack.c.bf16 %v1035, %v1035
      %v1068 = vpack.c.bf16 %v1036, %v1036
      %v1069 = vpack.c.bf16 %v1037, %v1037
      %v1070 = vpack.c.bf16 %v1038, %v1038
      %v1071 = vpack.c.bf16 %v1039, %v1039
      %v1072 = vpack.c.bf16 %v1040, %v1040
      %v1073 = vpack.c.bf16 %v1041, %v1041
      %v1074 = vpack.c.bf16 %v1042, %v1042
      %v1075 = vpack.c.bf16 %v1043, %v1043
      %v1076 = vpack.c.bf16 %v1044, %v1044
      %v1077 = vpack.c.bf16 %v1045, %v1045
      %v1078 = vpack.c.bf16 %v1046, %v1046
      %v1079 = vpack.c.bf16 %v1047, %v1047
      %v1080 = vpack.c.bf16 %v1048, %v1048
      %v1081 = vpack.c.bf16 %v1049, %v1049
      %v1082 = vpack.c.bf16 %v1050, %v1050
      %v1083 = vpack.c.bf16 %v1051, %v1051
      %v1084 = vpack.c.bf16 %v1052, %v1052
      %v1085 = vunpack.c.l.bf16 %v1053
      %v1086 = vunpack.c.l.bf16 %v1054
      %v1087 = vunpack.c.l.bf16 %v1055
      %v1088 = vunpack.c.l.bf16 %v1056
      %v1089 = vunpack.c.l.bf16 %v1057
      %v1090 = vunpack.c.l.bf16 %v1058
      %v1091 = vunpack.c.l.bf16 %v1059
      %v1092 = vunpack.c.l.bf16 %v1060
      %v1093 = vunpack.c.l.bf16 %v1061
      %v1094 = vunpack.c.l.bf16 %v1062
      %v1095 = vunpack.c.l.bf16 %v1063
      %v1096 = vunpack.c.l.bf16 %v1064
      %v1097 = vunpack.c.l.bf16 %v1065
      %v1098 = vunpack.c.l.bf16 %v1066
      %v1099 = vunpack.c.l.bf16 %v1067
      %v1100 = vunpack.c.l.bf16 %v1068
      %v1101 = vunpack.c.l.bf16 %v1069
      %v1102 = vunpack.c.l.bf16 %v1070
      %v1103 = vunpack.c.l.bf16 %v1071
      %v1104 = vunpack.c.l.bf16 %v1072
      %v1105 = vunpack.c.l.bf16 %v1073
      %v1106 = vunpack.c.l.bf16 %v1074
      %v1107 = vunpack.c.l.bf16 %v1075
      %v1108 = vunpack.c.l.bf16 %v1076
      %v1109 = vunpack.c.l.bf16 %v1077
      %v1110 = vunpack.c.l.bf16 %v1078
      %v1111 = vunpack.c.l.bf16 %v1079
      %v1112 = vunpack.c.l.bf16 %v1080
      %v1113 = vunpack.c.l.bf16 %v1081
      %v1114 = vunpack.c.l.bf16 %v1082
      %v1115 = vunpack.c.l.bf16 %v1083
      %v1116 = vunpack.c.l.bf16 %v1084
      %v1117 = vmul.f32 %v1085, %v925
      %v1118 = vmul.f32 %v1086, %v926
      %v1119 = vmul.f32 %v1087, %v927
      %v1120 = vmul.f32 %v1088, %v928
      %v1121 = vmul.f32 %v1089, %v929
      %v1122 = vmul.f32 %v1090, %v930
      %v1123 = vmul.f32 %v1091, %v931
      %v1124 = vmul.f32 %v1092, %v932
      %v1125 = vmul.f32 %v1093, %v933
      %v1126 = vmul.f32 %v1094, %v934
      %v1127 = vmul.f32 %v1095, %v935
      %v1128 = vmul.f32 %v1096, %v936
      %v1129 = vmul.f32 %v1097, %v937
      %v1130 = vmul.f32 %v1098, %v938
      %v1131 = vmul.f32 %v1099, %v939
      %v1132 = vmul.f32 %v1100, %v940
      %v1133 = vmul.f32 %v1101, %v941
      %v1134 = vmul.f32 %v1102, %v942
      %v1135 = vmul.f32 %v1103, %v943
      %v1136 = vmul.f32 %v1104, %v944
      %v1137 = vmul.f32 %v1105, %v945
      %v1138 = vmul.f32 %v1106, %v946
      %v1139 = vmul.f32 %v1107, %v947
      %v1140 = vmul.f32 %v1108, %v948
      %v1141 = vmul.f32 %v1109, %v949
      %v1142 = vmul.f32 %v1110, %v950
      %v1143 = vmul.f32 %v1111, %v951
      %v1144 = vmul.f32 %v1112, %v952
      %v1145 = vmul.f32 %v1113, %v953
      %v1146 = vmul.f32 %v1114, %v954
      %v1147 = vmul.f32 %v1115, %v955
      %v1148 = vmul.f32 %v1116, %v956
      %v1149 = vpack.c.bf16 %v1117, %v1117
      %v1150 = vpack.c.bf16 %v1118, %v1118
      %v1151 = vpack.c.bf16 %v1119, %v1119
      %v1152 = vpack.c.bf16 %v1120, %v1120
      %v1153 = vpack.c.bf16 %v1121, %v1121
      %v1154 = vpack.c.bf16 %v1122, %v1122
      %v1155 = vpack.c.bf16 %v1123, %v1123
      %v1156 = vpack.c.bf16 %v1124, %v1124
      %v1157 = vpack.c.bf16 %v1125, %v1125
      %v1158 = vpack.c.bf16 %v1126, %v1126
      %v1159 = vpack.c.bf16 %v1127, %v1127
      %v1160 = vpack.c.bf16 %v1128, %v1128
      %v1161 = vpack.c.bf16 %v1129, %v1129
      %v1162 = vpack.c.bf16 %v1130, %v1130
      %v1163 = vpack.c.bf16 %v1131, %v1131
      %v1164 = vpack.c.bf16 %v1132, %v1132
      %v1165 = vpack.c.bf16 %v1133, %v1133
      %v1166 = vpack.c.bf16 %v1134, %v1134
      %v1167 = vpack.c.bf16 %v1135, %v1135
      %v1168 = vpack.c.bf16 %v1136, %v1136
      %v1169 = vpack.c.bf16 %v1137, %v1137
      %v1170 = vpack.c.bf16 %v1138, %v1138
      %v1171 = vpack.c.bf16 %v1139, %v1139
      %v1172 = vpack.c.bf16 %v1140, %v1140
      %v1173 = vpack.c.bf16 %v1141, %v1141
      %v1174 = vpack.c.bf16 %v1142, %v1142
      %v1175 = vpack.c.bf16 %v1143, %v1143
      %v1176 = vpack.c.bf16 %v1144, %v1144
      %v1177 = vpack.c.bf16 %v1145, %v1145
      %v1178 = vpack.c.bf16 %v1146, %v1146
      %v1179 = vpack.c.bf16 %v1147, %v1147
      %v1180 = vpack.c.bf16 %v1148, %v1148
      %v1181 = vunpack.c.l.bf16 %v1149
      %v1182 = vunpack.c.l.bf16 %v1150
      %v1183 = vunpack.c.l.bf16 %v1151
      %v1184 = vunpack.c.l.bf16 %v1152
      %v1185 = vunpack.c.l.bf16 %v1153
      %v1186 = vunpack.c.l.bf16 %v1154
      %v1187 = vunpack.c.l.bf16 %v1155
      %v1188 = vunpack.c.l.bf16 %v1156
      %v1189 = vunpack.c.l.bf16 %v1157
      %v1190 = vunpack.c.l.bf16 %v1158
      %v1191 = vunpack.c.l.bf16 %v1159
      %v1192 = vunpack.c.l.bf16 %v1160
      %v1193 = vunpack.c.l.bf16 %v1161
      %v1194 = vunpack.c.l.bf16 %v1162
      %v1195 = vunpack.c.l.bf16 %v1163
      %v1196 = vunpack.c.l.bf16 %v1164
      %v1197 = vunpack.c.l.bf16 %v1165
      %v1198 = vunpack.c.l.bf16 %v1166
      %v1199 = vunpack.c.l.bf16 %v1167
      %v1200 = vunpack.c.l.bf16 %v1168
      %v1201 = vunpack.c.l.bf16 %v1169
      %v1202 = vunpack.c.l.bf16 %v1170
      %v1203 = vunpack.c.l.bf16 %v1171
      %v1204 = vunpack.c.l.bf16 %v1172
      %v1205 = vunpack.c.l.bf16 %v1173
      %v1206 = vunpack.c.l.bf16 %v1174
      %v1207 = vunpack.c.l.bf16 %v1175
      %v1208 = vunpack.c.l.bf16 %v1176
      %v1209 = vunpack.c.l.bf16 %v1177
      %v1210 = vunpack.c.l.bf16 %v1178
      %v1211 = vunpack.c.l.bf16 %v1179
      %v1212 = vunpack.c.l.bf16 %v1180
      %v1213 = vmul.f32 %v1181, %v925
      %v1214 = vmul.f32 %v1182, %v926
      %v1215 = vmul.f32 %v1183, %v927
      %v1216 = vmul.f32 %v1184, %v928
      %v1217 = vmul.f32 %v1185, %v929
      %v1218 = vmul.f32 %v1186, %v930
      %v1219 = vmul.f32 %v1187, %v931
      %v1220 = vmul.f32 %v1188, %v932
      %v1221 = vmul.f32 %v1189, %v933
      %v1222 = vmul.f32 %v1190, %v934
      %v1223 = vmul.f32 %v1191, %v935
      %v1224 = vmul.f32 %v1192, %v936
      %v1225 = vmul.f32 %v1193, %v937
      %v1226 = vmul.f32 %v1194, %v938
      %v1227 = vmul.f32 %v1195, %v939
      %v1228 = vmul.f32 %v1196, %v940
      %v1229 = vmul.f32 %v1197, %v941
      %v1230 = vmul.f32 %v1198, %v942
      %v1231 = vmul.f32 %v1199, %v943
      %v1232 = vmul.f32 %v1200, %v944
      %v1233 = vmul.f32 %v1201, %v945
      %v1234 = vmul.f32 %v1202, %v946
      %v1235 = vmul.f32 %v1203, %v947
      %v1236 = vmul.f32 %v1204, %v948
      %v1237 = vmul.f32 %v1205, %v949
      %v1238 = vmul.f32 %v1206, %v950
      %v1239 = vmul.f32 %v1207, %v951
      %v1240 = vmul.f32 %v1208, %v952
      %v1241 = vmul.f32 %v1209, %v953
      %v1242 = vmul.f32 %v1210, %v954
      %v1243 = vmul.f32 %v1211, %v955
      %v1244 = vmul.f32 %v1212, %v956
      %v1245 = vpack.c.bf16 %v1213, %v1213
      %v1246 = vpack.c.bf16 %v1214, %v1214
      %v1247 = vpack.c.bf16 %v1215, %v1215
      %v1248 = vpack.c.bf16 %v1216, %v1216
      %v1249 = vpack.c.bf16 %v1217, %v1217
      %v1250 = vpack.c.bf16 %v1218, %v1218
      %v1251 = vpack.c.bf16 %v1219, %v1219
      %v1252 = vpack.c.bf16 %v1220, %v1220
      %v1253 = vpack.c.bf16 %v1221, %v1221
      %v1254 = vpack.c.bf16 %v1222, %v1222
      %v1255 = vpack.c.bf16 %v1223, %v1223
      %v1256 = vpack.c.bf16 %v1224, %v1224
      %v1257 = vpack.c.bf16 %v1225, %v1225
      %v1258 = vpack.c.bf16 %v1226, %v1226
      %v1259 = vpack.c.bf16 %v1227, %v1227
      %v1260 = vpack.c.bf16 %v1228, %v1228
      %v1261 = vpack.c.bf16 %v1229, %v1229
      %v1262 = vpack.c.bf16 %v1230, %v1230
      %v1263 = vpack.c.bf16 %v1231, %v1231
      %v1264 = vpack.c.bf16 %v1232, %v1232
      %v1265 = vpack.c.bf16 %v1233, %v1233
      %v1266 = vpack.c.bf16 %v1234, %v1234
      %v1267 = vpack.c.bf16 %v1235, %v1235
      %v1268 = vpack.c.bf16 %v1236, %v1236
      %v1269 = vpack.c.bf16 %v1237, %v1237
      %v1270 = vpack.c.bf16 %v1238, %v1238
      %v1271 = vpack.c.bf16 %v1239, %v1239
      %v1272 = vpack.c.bf16 %v1240, %v1240
      %v1273 = vpack.c.bf16 %v1241, %v1241
      %v1274 = vpack.c.bf16 %v1242, %v1242
      %v1275 = vpack.c.bf16 %v1243, %v1243
      %v1276 = vpack.c.bf16 %v1244, %v1244
      %v1277 = vunpack.c.l.bf16 %v1245
      %v1278 = vunpack.c.l.bf16 %v1246
      %v1279 = vunpack.c.l.bf16 %v1247
      %v1280 = vunpack.c.l.bf16 %v1248
      %v1281 = vunpack.c.l.bf16 %v1249
      %v1282 = vunpack.c.l.bf16 %v1250
      %v1283 = vunpack.c.l.bf16 %v1251
      %v1284 = vunpack.c.l.bf16 %v1252
      %v1285 = vunpack.c.l.bf16 %v1253
      %v1286 = vunpack.c.l.bf16 %v1254
      %v1287 = vunpack.c.l.bf16 %v1255
      %v1288 = vunpack.c.l.bf16 %v1256
      %v1289 = vunpack.c.l.bf16 %v1257
      %v1290 = vunpack.c.l.bf16 %v1258
      %v1291 = vunpack.c.l.bf16 %v1259
      %v1292 = vunpack.c.l.bf16 %v1260
      %v1293 = vunpack.c.l.bf16 %v1261
      %v1294 = vunpack.c.l.bf16 %v1262
      %v1295 = vunpack.c.l.bf16 %v1263
      %v1296 = vunpack.c.l.bf16 %v1264
      %v1297 = vunpack.c.l.bf16 %v1265
      %v1298 = vunpack.c.l.bf16 %v1266
      %v1299 = vunpack.c.l.bf16 %v1267
      %v1300 = vunpack.c.l.bf16 %v1268
      %v1301 = vunpack.c.l.bf16 %v1269
      %v1302 = vunpack.c.l.bf16 %v1270
      %v1303 = vunpack.c.l.bf16 %v1271
      %v1304 = vunpack.c.l.bf16 %v1272
      %v1305 = vunpack.c.l.bf16 %v1273
      %v1306 = vunpack.c.l.bf16 %v1274
      %v1307 = vunpack.c.l.bf16 %v1275
      %v1308 = vunpack.c.l.bf16 %v1276
      %v1309 = vadd.f32 %v925, %v1277
      %v1310 = vadd.f32 %v926, %v1278
      %v1311 = vadd.f32 %v927, %v1279
      %v1312 = vadd.f32 %v928, %v1280
      %v1313 = vadd.f32 %v929, %v1281
      %v1314 = vadd.f32 %v930, %v1282
      %v1315 = vadd.f32 %v931, %v1283
      %v1316 = vadd.f32 %v932, %v1284
      %v1317 = vadd.f32 %v933, %v1285
      %v1318 = vadd.f32 %v934, %v1286
      %v1319 = vadd.f32 %v935, %v1287
      %v1320 = vadd.f32 %v936, %v1288
      %v1321 = vadd.f32 %v937, %v1289
      %v1322 = vadd.f32 %v938, %v1290
      %v1323 = vadd.f32 %v939, %v1291
      %v1324 = vadd.f32 %v940, %v1292
      %v1325 = vadd.f32 %v941, %v1293
      %v1326 = vadd.f32 %v942, %v1294
      %v1327 = vadd.f32 %v943, %v1295
      %v1328 = vadd.f32 %v944, %v1296
      %v1329 = vadd.f32 %v945, %v1297
      %v1330 = vadd.f32 %v946, %v1298
      %v1331 = vadd.f32 %v947, %v1299
      %v1332 = vadd.f32 %v948, %v1300
      %v1333 = vadd.f32 %v949, %v1301
      %v1334 = vadd.f32 %v950, %v1302
      %v1335 = vadd.f32 %v951, %v1303
      %v1336 = vadd.f32 %v952, %v1304
      %v1337 = vadd.f32 %v953, %v1305
      %v1338 = vadd.f32 %v954, %v1306
      %v1339 = vadd.f32 %v955, %v1307
      %v1340 = vadd.f32 %v956, %v1308
      %v1341 = vpack.c.bf16 %v1309, %v1309
      %v1342 = vpack.c.bf16 %v1310, %v1310
      %v1343 = vpack.c.bf16 %v1311, %v1311
      %v1344 = vpack.c.bf16 %v1312, %v1312
      %v1345 = vpack.c.bf16 %v1313, %v1313
      %v1346 = vpack.c.bf16 %v1314, %v1314
      %v1347 = vpack.c.bf16 %v1315, %v1315
      %v1348 = vpack.c.bf16 %v1316, %v1316
      %v1349 = vpack.c.bf16 %v1317, %v1317
      %v1350 = vpack.c.bf16 %v1318, %v1318
      %v1351 = vpack.c.bf16 %v1319, %v1319
      %v1352 = vpack.c.bf16 %v1320, %v1320
      %v1353 = vpack.c.bf16 %v1321, %v1321
      %v1354 = vpack.c.bf16 %v1322, %v1322
      %v1355 = vpack.c.bf16 %v1323, %v1323
      %v1356 = vpack.c.bf16 %v1324, %v1324
      %v1357 = vpack.c.bf16 %v1325, %v1325
      %v1358 = vpack.c.bf16 %v1326, %v1326
      %v1359 = vpack.c.bf16 %v1327, %v1327
      %v1360 = vpack.c.bf16 %v1328, %v1328
      %v1361 = vpack.c.bf16 %v1329, %v1329
      %v1362 = vpack.c.bf16 %v1330, %v1330
      %v1363 = vpack.c.bf16 %v1331, %v1331
      %v1364 = vpack.c.bf16 %v1332, %v1332
      %v1365 = vpack.c.bf16 %v1333, %v1333
      %v1366 = vpack.c.bf16 %v1334, %v1334
      %v1367 = vpack.c.bf16 %v1335, %v1335
      %v1368 = vpack.c.bf16 %v1336, %v1336
      %v1369 = vpack.c.bf16 %v1337, %v1337
      %v1370 = vpack.c.bf16 %v1338, %v1338
      %v1371 = vpack.c.bf16 %v1339, %v1339
      %v1372 = vpack.c.bf16 %v1340, %v1340
      %v1373 = vunpack.c.l.bf16 %v1341
      %v1374 = vunpack.c.l.bf16 %v1342
      %v1375 = vunpack.c.l.bf16 %v1343
      %v1376 = vunpack.c.l.bf16 %v1344
      %v1377 = vunpack.c.l.bf16 %v1345
      %v1378 = vunpack.c.l.bf16 %v1346
      %v1379 = vunpack.c.l.bf16 %v1347
      %v1380 = vunpack.c.l.bf16 %v1348
      %v1381 = vunpack.c.l.bf16 %v1349
      %v1382 = vunpack.c.l.bf16 %v1350
      %v1383 = vunpack.c.l.bf16 %v1351
      %v1384 = vunpack.c.l.bf16 %v1352
      %v1385 = vunpack.c.l.bf16 %v1353
      %v1386 = vunpack.c.l.bf16 %v1354
      %v1387 = vunpack.c.l.bf16 %v1355
      %v1388 = vunpack.c.l.bf16 %v1356
      %v1389 = vunpack.c.l.bf16 %v1357
      %v1390 = vunpack.c.l.bf16 %v1358
      %v1391 = vunpack.c.l.bf16 %v1359
      %v1392 = vunpack.c.l.bf16 %v1360
      %v1393 = vunpack.c.l.bf16 %v1361
      %v1394 = vunpack.c.l.bf16 %v1362
      %v1395 = vunpack.c.l.bf16 %v1363
      %v1396 = vunpack.c.l.bf16 %v1364
      %v1397 = vunpack.c.l.bf16 %v1365
      %v1398 = vunpack.c.l.bf16 %v1366
      %v1399 = vunpack.c.l.bf16 %v1367
      %v1400 = vunpack.c.l.bf16 %v1368
      %v1401 = vunpack.c.l.bf16 %v1369
      %v1402 = vunpack.c.l.bf16 %v1370
      %v1403 = vunpack.c.l.bf16 %v1371
      %v1404 = vunpack.c.l.bf16 %v1372
      %v1405 = vmul.f32 %v1373, 0.796875
      %v1406 = vmul.f32 %v1374, 0.796875
      %v1407 = vmul.f32 %v1375, 0.796875
      %v1408 = vmul.f32 %v1376, 0.796875
      %v1409 = vmul.f32 %v1377, 0.796875
      %v1410 = vmul.f32 %v1378, 0.796875
      %v1411 = vmul.f32 %v1379, 0.796875
      %v1412 = vmul.f32 %v1380, 0.796875
      %v1413 = vmul.f32 %v1381, 0.796875
      %v1414 = vmul.f32 %v1382, 0.796875
      %v1415 = vmul.f32 %v1383, 0.796875
      %v1416 = vmul.f32 %v1384, 0.796875
      %v1417 = vmul.f32 %v1385, 0.796875
      %v1418 = vmul.f32 %v1386, 0.796875
      %v1419 = vmul.f32 %v1387, 0.796875
      %v1420 = vmul.f32 %v1388, 0.796875
      %v1421 = vmul.f32 %v1389, 0.796875
      %v1422 = vmul.f32 %v1390, 0.796875
      %v1423 = vmul.f32 %v1391, 0.796875
      %v1424 = vmul.f32 %v1392, 0.796875
      %v1425 = vmul.f32 %v1393, 0.796875
      %v1426 = vmul.f32 %v1394, 0.796875
      %v1427 = vmul.f32 %v1395, 0.796875
      %v1428 = vmul.f32 %v1396, 0.796875
      %v1429 = vmul.f32 %v1397, 0.796875
      %v1430 = vmul.f32 %v1398, 0.796875
      %v1431 = vmul.f32 %v1399, 0.796875
      %v1432 = vmul.f32 %v1400, 0.796875
      %v1433 = vmul.f32 %v1401, 0.796875
      %v1434 = vmul.f32 %v1402, 0.796875
      %v1435 = vmul.f32 %v1403, 0.796875
      %v1436 = vmul.f32 %v1404, 0.796875
      %v1437 = vpack.c.bf16 %v1405, %v1405
      %v1438 = vpack.c.bf16 %v1406, %v1406
      %v1439 = vpack.c.bf16 %v1407, %v1407
      %v1440 = vpack.c.bf16 %v1408, %v1408
      %v1441 = vpack.c.bf16 %v1409, %v1409
      %v1442 = vpack.c.bf16 %v1410, %v1410
      %v1443 = vpack.c.bf16 %v1411, %v1411
      %v1444 = vpack.c.bf16 %v1412, %v1412
      %v1445 = vpack.c.bf16 %v1413, %v1413
      %v1446 = vpack.c.bf16 %v1414, %v1414
      %v1447 = vpack.c.bf16 %v1415, %v1415
      %v1448 = vpack.c.bf16 %v1416, %v1416
      %v1449 = vpack.c.bf16 %v1417, %v1417
      %v1450 = vpack.c.bf16 %v1418, %v1418
      %v1451 = vpack.c.bf16 %v1419, %v1419
      %v1452 = vpack.c.bf16 %v1420, %v1420
      %v1453 = vpack.c.bf16 %v1421, %v1421
      %v1454 = vpack.c.bf16 %v1422, %v1422
      %v1455 = vpack.c.bf16 %v1423, %v1423
      %v1456 = vpack.c.bf16 %v1424, %v1424
      %v1457 = vpack.c.bf16 %v1425, %v1425
      %v1458 = vpack.c.bf16 %v1426, %v1426
      %v1459 = vpack.c.bf16 %v1427, %v1427
      %v1460 = vpack.c.bf16 %v1428, %v1428
      %v1461 = vpack.c.bf16 %v1429, %v1429
      %v1462 = vpack.c.bf16 %v1430, %v1430
      %v1463 = vpack.c.bf16 %v1431, %v1431
      %v1464 = vpack.c.bf16 %v1432, %v1432
      %v1465 = vpack.c.bf16 %v1433, %v1433
      %v1466 = vpack.c.bf16 %v1434, %v1434
      %v1467 = vpack.c.bf16 %v1435, %v1435
      %v1468 = vpack.c.bf16 %v1436, %v1436
      %v1469 = vunpack.c.l.bf16 %v1437
      %v1470 = vunpack.c.l.bf16 %v1438
      %v1471 = vunpack.c.l.bf16 %v1439
      %v1472 = vunpack.c.l.bf16 %v1440
      %v1473 = vunpack.c.l.bf16 %v1441
      %v1474 = vunpack.c.l.bf16 %v1442
      %v1475 = vunpack.c.l.bf16 %v1443
      %v1476 = vunpack.c.l.bf16 %v1444
      %v1477 = vunpack.c.l.bf16 %v1445
      %v1478 = vunpack.c.l.bf16 %v1446
      %v1479 = vunpack.c.l.bf16 %v1447
      %v1480 = vunpack.c.l.bf16 %v1448
      %v1481 = vunpack.c.l.bf16 %v1449
      %v1482 = vunpack.c.l.bf16 %v1450
      %v1483 = vunpack.c.l.bf16 %v1451
      %v1484 = vunpack.c.l.bf16 %v1452
      %v1485 = vunpack.c.l.bf16 %v1453
      %v1486 = vunpack.c.l.bf16 %v1454
      %v1487 = vunpack.c.l.bf16 %v1455
      %v1488 = vunpack.c.l.bf16 %v1456
      %v1489 = vunpack.c.l.bf16 %v1457
      %v1490 = vunpack.c.l.bf16 %v1458
      %v1491 = vunpack.c.l.bf16 %v1459
      %v1492 = vunpack.c.l.bf16 %v1460
      %v1493 = vunpack.c.l.bf16 %v1461
      %v1494 = vunpack.c.l.bf16 %v1462
      %v1495 = vunpack.c.l.bf16 %v1463
      %v1496 = vunpack.c.l.bf16 %v1464
      %v1497 = vunpack.c.l.bf16 %v1465
      %v1498 = vunpack.c.l.bf16 %v1466
      %v1499 = vunpack.c.l.bf16 %v1467
      %v1500 = vunpack.c.l.bf16 %v1468
      %v1501 = vtanh.pop %v1469
      %v1502 = vtanh.pop %v1470
      %v1503 = vtanh.pop %v1471
      %v1504 = vtanh.pop %v1472
      %v1505 = vtanh.pop %v1473
      %v1506 = vtanh.pop %v1474
      %v1507 = vtanh.pop %v1475
      %v1508 = vtanh.pop %v1476
      %v1509 = vtanh.pop %v1477
      %v1510 = vtanh.pop %v1478
      %v1511 = vtanh.pop %v1479
      %v1512 = vtanh.pop %v1480
      %v1513 = vtanh.pop %v1481
      %v1514 = vtanh.pop %v1482
      %v1515 = vtanh.pop %v1483
      %v1516 = vtanh.pop %v1484
      %v1517 = vtanh.pop %v1485
      %v1518 = vtanh.pop %v1486
      %v1519 = vtanh.pop %v1487
      %v1520 = vtanh.pop %v1488
      %v1521 = vtanh.pop %v1489
      %v1522 = vtanh.pop %v1490
      %v1523 = vtanh.pop %v1491
      %v1524 = vtanh.pop %v1492
      %v1525 = vtanh.pop %v1493
      %v1526 = vtanh.pop %v1494
      %v1527 = vtanh.pop %v1495
      %v1528 = vtanh.pop %v1496
      %v1529 = vtanh.pop %v1497
      %v1530 = vtanh.pop %v1498
      %v1531 = vtanh.pop %v1499
      %v1532 = vtanh.pop %v1500
      %v1533 = vpack.c.bf16 %v1501, %v1501
      %v1534 = vpack.c.bf16 %v1502, %v1502
      %v1535 = vpack.c.bf16 %v1503, %v1503
      %v1536 = vpack.c.bf16 %v1504, %v1504
      %v1537 = vpack.c.bf16 %v1505, %v1505
      %v1538 = vpack.c.bf16 %v1506, %v1506
      %v1539 = vpack.c.bf16 %v1507, %v1507
      %v1540 = vpack.c.bf16 %v1508, %v1508
      %v1541 = vpack.c.bf16 %v1509, %v1509
      %v1542 = vpack.c.bf16 %v1510, %v1510
      %v1543 = vpack.c.bf16 %v1511, %v1511
      %v1544 = vpack.c.bf16 %v1512, %v1512
      %v1545 = vpack.c.bf16 %v1513, %v1513
      %v1546 = vpack.c.bf16 %v1514, %v1514
      %v1547 = vpack.c.bf16 %v1515, %v1515
      %v1548 = vpack.c.bf16 %v1516, %v1516
      %v1549 = vpack.c.bf16 %v1517, %v1517
      %v1550 = vpack.c.bf16 %v1518, %v1518
      %v1551 = vpack.c.bf16 %v1519, %v1519
      %v1552 = vpack.c.bf16 %v1520, %v1520
      %v1553 = vpack.c.bf16 %v1521, %v1521
      %v1554 = vpack.c.bf16 %v1522, %v1522
      %v1555 = vpack.c.bf16 %v1523, %v1523
      %v1556 = vpack.c.bf16 %v1524, %v1524
      %v1557 = vpack.c.bf16 %v1525, %v1525
      %v1558 = vpack.c.bf16 %v1526, %v1526
      %v1559 = vpack.c.bf16 %v1527, %v1527
      %v1560 = vpack.c.bf16 %v1528, %v1528
      %v1561 = vpack.c.bf16 %v1529, %v1529
      %v1562 = vpack.c.bf16 %v1530, %v1530
      %v1563 = vpack.c.bf16 %v1531, %v1531
      %v1564 = vpack.c.bf16 %v1532, %v1532
      %v1565 = vunpack.c.l.bf16 %v1533
      %v1566 = vunpack.c.l.bf16 %v1534
      %v1567 = vunpack.c.l.bf16 %v1535
      %v1568 = vunpack.c.l.bf16 %v1536
      %v1569 = vunpack.c.l.bf16 %v1537
      %v1570 = vunpack.c.l.bf16 %v1538
      %v1571 = vunpack.c.l.bf16 %v1539
      %v1572 = vunpack.c.l.bf16 %v1540
      %v1573 = vunpack.c.l.bf16 %v1541
      %v1574 = vunpack.c.l.bf16 %v1542
      %v1575 = vunpack.c.l.bf16 %v1543
      %v1576 = vunpack.c.l.bf16 %v1544
      %v1577 = vunpack.c.l.bf16 %v1545
      %v1578 = vunpack.c.l.bf16 %v1546
      %v1579 = vunpack.c.l.bf16 %v1547
      %v1580 = vunpack.c.l.bf16 %v1548
      %v1581 = vunpack.c.l.bf16 %v1549
      %v1582 = vunpack.c.l.bf16 %v1550
      %v1583 = vunpack.c.l.bf16 %v1551
      %v1584 = vunpack.c.l.bf16 %v1552
      %v1585 = vunpack.c.l.bf16 %v1553
      %v1586 = vunpack.c.l.bf16 %v1554
      %v1587 = vunpack.c.l.bf16 %v1555
      %v1588 = vunpack.c.l.bf16 %v1556
      %v1589 = vunpack.c.l.bf16 %v1557
      %v1590 = vunpack.c.l.bf16 %v1558
      %v1591 = vunpack.c.l.bf16 %v1559
      %v1592 = vunpack.c.l.bf16 %v1560
      %v1593 = vunpack.c.l.bf16 %v1561
      %v1594 = vunpack.c.l.bf16 %v1562
      %v1595 = vunpack.c.l.bf16 %v1563
      %v1596 = vunpack.c.l.bf16 %v1564
      %v1597 = vadd.f32 %v1565, 1.0
      %v1598 = vadd.f32 %v1566, 1.0
      %v1599 = vadd.f32 %v1567, 1.0
      %v1600 = vadd.f32 %v1568, 1.0
      %v1601 = vadd.f32 %v1569, 1.0
      %v1602 = vadd.f32 %v1570, 1.0
      %v1603 = vadd.f32 %v1571, 1.0
      %v1604 = vadd.f32 %v1572, 1.0
      %v1605 = vadd.f32 %v1573, 1.0
      %v1606 = vadd.f32 %v1574, 1.0
      %v1607 = vadd.f32 %v1575, 1.0
      %v1608 = vadd.f32 %v1576, 1.0
      %v1609 = vadd.f32 %v1577, 1.0
      %v1610 = vadd.f32 %v1578, 1.0
      %v1611 = vadd.f32 %v1579, 1.0
      %v1612 = vadd.f32 %v1580, 1.0
      %v1613 = vadd.f32 %v1581, 1.0
      %v1614 = vadd.f32 %v1582, 1.0
      %v1615 = vadd.f32 %v1583, 1.0
      %v1616 = vadd.f32 %v1584, 1.0
      %v1617 = vadd.f32 %v1585, 1.0
      %v1618 = vadd.f32 %v1586, 1.0
      %v1619 = vadd.f32 %v1587, 1.0
      %v1620 = vadd.f32 %v1588, 1.0
      %v1621 = vadd.f32 %v1589, 1.0
      %v1622 = vadd.f32 %v1590, 1.0
      %v1623 = vadd.f32 %v1591, 1.0
      %v1624 = vadd.f32 %v1592, 1.0
      %v1625 = vadd.f32 %v1593, 1.0
      %v1626 = vadd.f32 %v1594, 1.0
      %v1627 = vadd.f32 %v1595, 1.0
      %v1628 = vadd.f32 %v1596, 1.0
      %v1629 = vpack.c.bf16 %v1597, %v1597
      %v1630 = vpack.c.bf16 %v1598, %v1598
      %v1631 = vpack.c.bf16 %v1599, %v1599
      %v1632 = vpack.c.bf16 %v1600, %v1600
      %v1633 = vpack.c.bf16 %v1601, %v1601
      %v1634 = vpack.c.bf16 %v1602, %v1602
      %v1635 = vpack.c.bf16 %v1603, %v1603
      %v1636 = vpack.c.bf16 %v1604, %v1604
      %v1637 = vpack.c.bf16 %v1605, %v1605
      %v1638 = vpack.c.bf16 %v1606, %v1606
      %v1639 = vpack.c.bf16 %v1607, %v1607
      %v1640 = vpack.c.bf16 %v1608, %v1608
      %v1641 = vpack.c.bf16 %v1609, %v1609
      %v1642 = vpack.c.bf16 %v1610, %v1610
      %v1643 = vpack.c.bf16 %v1611, %v1611
      %v1644 = vpack.c.bf16 %v1612, %v1612
      %v1645 = vpack.c.bf16 %v1613, %v1613
      %v1646 = vpack.c.bf16 %v1614, %v1614
      %v1647 = vpack.c.bf16 %v1615, %v1615
      %v1648 = vpack.c.bf16 %v1616, %v1616
      %v1649 = vpack.c.bf16 %v1617, %v1617
      %v1650 = vpack.c.bf16 %v1618, %v1618
      %v1651 = vpack.c.bf16 %v1619, %v1619
      %v1652 = vpack.c.bf16 %v1620, %v1620
      %v1653 = vpack.c.bf16 %v1621, %v1621
      %v1654 = vpack.c.bf16 %v1622, %v1622
      %v1655 = vpack.c.bf16 %v1623, %v1623
      %v1656 = vpack.c.bf16 %v1624, %v1624
      %v1657 = vpack.c.bf16 %v1625, %v1625
      %v1658 = vpack.c.bf16 %v1626, %v1626
      %v1659 = vpack.c.bf16 %v1627, %v1627
      %v1660 = vpack.c.bf16 %v1628, %v1628
      %v1661 = vunpack.c.l.bf16 %v989
      %v1662 = vunpack.c.l.bf16 %v990
      %v1663 = vunpack.c.l.bf16 %v991
      %v1664 = vunpack.c.l.bf16 %v992
      %v1665 = vunpack.c.l.bf16 %v993
      %v1666 = vunpack.c.l.bf16 %v994
      %v1667 = vunpack.c.l.bf16 %v995
      %v1668 = vunpack.c.l.bf16 %v996
      %v1669 = vunpack.c.l.bf16 %v997
      %v1670 = vunpack.c.l.bf16 %v998
      %v1671 = vunpack.c.l.bf16 %v999
      %v1672 = vunpack.c.l.bf16 %v1000
      %v1673 = vunpack.c.l.bf16 %v1001
      %v1674 = vunpack.c.l.bf16 %v1002
      %v1675 = vunpack.c.l.bf16 %v1003
      %v1676 = vunpack.c.l.bf16 %v1004
      %v1677 = vunpack.c.l.bf16 %v1005
      %v1678 = vunpack.c.l.bf16 %v1006
      %v1679 = vunpack.c.l.bf16 %v1007
      %v1680 = vunpack.c.l.bf16 %v1008
      %v1681 = vunpack.c.l.bf16 %v1009
      %v1682 = vunpack.c.l.bf16 %v1010
      %v1683 = vunpack.c.l.bf16 %v1011
      %v1684 = vunpack.c.l.bf16 %v1012
      %v1685 = vunpack.c.l.bf16 %v1013
      %v1686 = vunpack.c.l.bf16 %v1014
      %v1687 = vunpack.c.l.bf16 %v1015
      %v1688 = vunpack.c.l.bf16 %v1016
      %v1689 = vunpack.c.l.bf16 %v1017
      %v1690 = vunpack.c.l.bf16 %v1018
      %v1691 = vunpack.c.l.bf16 %v1019
      %v1692 = vunpack.c.l.bf16 %v1020
      %v1693 = vunpack.c.l.bf16 %v1629
      %v1694 = vunpack.c.l.bf16 %v1630
      %v1695 = vunpack.c.l.bf16 %v1631
      %v1696 = vunpack.c.l.bf16 %v1632
      %v1697 = vunpack.c.l.bf16 %v1633
      %v1698 = vunpack.c.l.bf16 %v1634
      %v1699 = vunpack.c.l.bf16 %v1635
      %v1700 = vunpack.c.l.bf16 %v1636
      %v1701 = vunpack.c.l.bf16 %v1637
      %v1702 = vunpack.c.l.bf16 %v1638
      %v1703 = vunpack.c.l.bf16 %v1639
      %v1704 = vunpack.c.l.bf16 %v1640
      %v1705 = vunpack.c.l.bf16 %v1641
      %v1706 = vunpack.c.l.bf16 %v1642
      %v1707 = vunpack.c.l.bf16 %v1643
      %v1708 = vunpack.c.l.bf16 %v1644
      %v1709 = vunpack.c.l.bf16 %v1645
      %v1710 = vunpack.c.l.bf16 %v1646
      %v1711 = vunpack.c.l.bf16 %v1647
      %v1712 = vunpack.c.l.bf16 %v1648
      %v1713 = vunpack.c.l.bf16 %v1649
      %v1714 = vunpack.c.l.bf16 %v1650
      %v1715 = vunpack.c.l.bf16 %v1651
      %v1716 = vunpack.c.l.bf16 %v1652
      %v1717 = vunpack.c.l.bf16 %v1653
      %v1718 = vunpack.c.l.bf16 %v1654
      %v1719 = vunpack.c.l.bf16 %v1655
      %v1720 = vunpack.c.l.bf16 %v1656
      %v1721 = vunpack.c.l.bf16 %v1657
      %v1722 = vunpack.c.l.bf16 %v1658
      %v1723 = vunpack.c.l.bf16 %v1659
      %v1724 = vunpack.c.l.bf16 %v1660
      %v1725 = vmul.f32 %v1661, %v1693
      %v1726 = vmul.f32 %v1662, %v1694
      %v1727 = vmul.f32 %v1663, %v1695
      %v1728 = vmul.f32 %v1664, %v1696
      %v1729 = vmul.f32 %v1665, %v1697
      %v1730 = vmul.f32 %v1666, %v1698
      %v1731 = vmul.f32 %v1667, %v1699
      %v1732 = vmul.f32 %v1668, %v1700
      %v1733 = vmul.f32 %v1669, %v1701
      %v1734 = vmul.f32 %v1670, %v1702
      %v1735 = vmul.f32 %v1671, %v1703
      %v1736 = vmul.f32 %v1672, %v1704
      %v1737 = vmul.f32 %v1673, %v1705
      %v1738 = vmul.f32 %v1674, %v1706
      %v1739 = vmul.f32 %v1675, %v1707
      %v1740 = vmul.f32 %v1676, %v1708
      %v1741 = vmul.f32 %v1677, %v1709
      %v1742 = vmul.f32 %v1678, %v1710
      %v1743 = vmul.f32 %v1679, %v1711
      %v1744 = vmul.f32 %v1680, %v1712
      %v1745 = vmul.f32 %v1681, %v1713
      %v1746 = vmul.f32 %v1682, %v1714
      %v1747 = vmul.f32 %v1683, %v1715
      %v1748 = vmul.f32 %v1684, %v1716
      %v1749 = vmul.f32 %v1685, %v1717
      %v1750 = vmul.f32 %v1686, %v1718
      %v1751 = vmul.f32 %v1687, %v1719
      %v1752 = vmul.f32 %v1688, %v1720
      %v1753 = vmul.f32 %v1689, %v1721
      %v1754 = vmul.f32 %v1690, %v1722
      %v1755 = vmul.f32 %v1691, %v1723
      %v1756 = vmul.f32 %v1692, %v1724
      %v1757 = vpack.c.bf16 %v1726, %v1725
      %v1758 = vpack.c.bf16 %v1728, %v1727
      %v1759 = vpack.c.bf16 %v1730, %v1729
      %v1760 = vpack.c.bf16 %v1732, %v1731
      %v1761 = vpack.c.bf16 %v1734, %v1733
      %v1762 = vpack.c.bf16 %v1736, %v1735
      %v1763 = vpack.c.bf16 %v1738, %v1737
      %v1764 = vpack.c.bf16 %v1740, %v1739
      %v1765 = vpack.c.bf16 %v1742, %v1741
      %v1766 = vpack.c.bf16 %v1744, %v1743
      %v1767 = vpack.c.bf16 %v1746, %v1745
      %v1768 = vpack.c.bf16 %v1748, %v1747
      %v1769 = vpack.c.bf16 %v1750, %v1749
      %v1770 = vpack.c.bf16 %v1752, %v1751
      %v1771 = vpack.c.bf16 %v1754, %v1753
      %v1772 = vpack.c.bf16 %v1756, %v1755
      %v1773 = vld [vmem:[%s4] sm:$0xf]
      %v1774 = vld [vmem:[%s4 + $0x4] sm:$0xf]
      %v1775 = vld [vmem:[%s4 + $0x8] sm:$0xf]
      %v1776 = vld [vmem:[%s4 + $0xc] sm:$0xf]
      %v1777 = vld [vmem:[%s4 + $0x10] sm:$0xf]
      %v1778 = vld [vmem:[%s4 + $0x14] sm:$0xf]
      %v1779 = vld [vmem:[%s4 + $0x18] sm:$0xf]
      %v1780 = vld [vmem:[%s4 + $0x1c] sm:$0xf]
      %v1781 = vld [vmem:[%s4 + $0x20] sm:$0xf]
      %v1782 = vld [vmem:[%s4 + $0x24] sm:$0xf]
      %v1783 = vld [vmem:[%s4 + $0x28] sm:$0xf]
      %v1784 = vld [vmem:[%s4 + $0x2c] sm:$0xf]
      %v1785 = vld [vmem:[%s4 + $0x30] sm:$0xf]
      %v1786 = vld [vmem:[%s4 + $0x34] sm:$0xf]
      %v1787 = vld [vmem:[%s4 + $0x38] sm:$0xf]
      %v1788 = vld [vmem:[%s4 + $0x3c] sm:$0xf]
      %v1789 = vld [vmem:[%s5] sm:$0x1]
      %v1791 = vperm.slane %v1789, 0
      %v1809 = vunpack.c.l.b16 %v1773
      %v1810 = vunpack.c.l.b16 %v1774
      %v1811 = vunpack.c.l.b16 %v1775
      %v1812 = vunpack.c.l.b16 %v1776
      %v1813 = vunpack.c.l.b16 %v1777
      %v1814 = vunpack.c.l.b16 %v1778
      %v1815 = vunpack.c.l.b16 %v1779
      %v1816 = vunpack.c.l.b16 %v1780
      %v1817 = vunpack.c.l.b16 %v1781
      %v1818 = vunpack.c.l.b16 %v1782
      %v1819 = vunpack.c.l.b16 %v1783
      %v1820 = vunpack.c.l.b16 %v1784
      %v1821 = vunpack.c.l.b16 %v1785
      %v1822 = vunpack.c.l.b16 %v1786
      %v1823 = vunpack.c.l.b16 %v1787
      %v1824 = vunpack.c.l.b16 %v1788
      %v1825 = vpack.c.b16 %v1810, %v1809
      %v1826 = vpack.c.b16 %v1812, %v1811
      %v1827 = vpack.c.b16 %v1814, %v1813
      %v1828 = vpack.c.b16 %v1816, %v1815
      %v1829 = vpack.c.b16 %v1818, %v1817
      %v1830 = vpack.c.b16 %v1820, %v1819
      %v1831 = vpack.c.b16 %v1822, %v1821
      %v1832 = vpack.c.b16 %v1824, %v1823
      %1841 = vmatpush.bf16.msra.mxu0 %v1832
      %1842 = vmatpush.bf16.msra.mxu0 %v1831
      %1843 = vmatpush.bf16.msra.mxu0 %v1830
      %1844 = vmatpush.bf16.msra.mxu0 %v1829
      %1845 = vmatpush.bf16.msra.mxu0 %v1828
      %1846 = vmatpush.bf16.msra.mxu0 %v1827
      %1847 = vmatpush.bf16.msra.mxu0 %v1826
      %1848 = vmatpush.bf16.msra.mxu0 %v1825
      %1849 = vmatmul.bf16.gmra.mxu0 %v1757
      %v1850 = vpop.f32.mrf.mxu0
      %v1851 = vadd.f32 %v1791, %v1850
      %v1852 = vpop.f32.mrf.mxu0
      %v1853 = vadd.f32 %v1791, %v1852
      %1854 = vmatmul.bf16.gmra.mxu0 %v1758
      %v1855 = vpop.f32.mrf.mxu0
      %v1856 = vadd.f32 %v1791, %v1855
      %v1857 = vpop.f32.mrf.mxu0
      %v1858 = vadd.f32 %v1791, %v1857
      %1859 = vmatmul.bf16.gmra.mxu0 %v1759
      %v1860 = vpop.f32.mrf.mxu0
      %v1861 = vadd.f32 %v1791, %v1860
      %v1862 = vpop.f32.mrf.mxu0
      %v1863 = vadd.f32 %v1791, %v1862
      %1864 = vmatmul.bf16.gmra.mxu0 %v1760
      %v1865 = vpop.f32.mrf.mxu0
      %v1866 = vadd.f32 %v1791, %v1865
      %v1867 = vpop.f32.mrf.mxu0
      %v1868 = vadd.f32 %v1791, %v1867
      %1869 = vmatmul.bf16.gmra.mxu0 %v1761
      %v1870 = vpop.f32.mrf.mxu0
      %v1871 = vadd.f32 %v1791, %v1870
      %v1872 = vpop.f32.mrf.mxu0
      %v1873 = vadd.f32 %v1791, %v1872
      %1874 = vmatmul.bf16.gmra.mxu0 %v1762
      %v1875 = vpop.f32.mrf.mxu0
      %v1876 = vadd.f32 %v1791, %v1875
      %v1877 = vpop.f32.mrf.mxu0
      %v1878 = vadd.f32 %v1791, %v1877
      %1879 = vmatmul.bf16.gmra.mxu0 %v1763
      %v1880 = vpop.f32.mrf.mxu0
      %v1881 = vadd.f32 %v1791, %v1880
      %v1882 = vpop.f32.mrf.mxu0
      %v1883 = vadd.f32 %v1791, %v1882
      %1884 = vmatmul.bf16.gmra.mxu0 %v1764
      %v1885 = vpop.f32.mrf.mxu0
      %v1886 = vadd.f32 %v1791, %v1885
      %v1887 = vpop.f32.mrf.mxu0
      %v1888 = vadd.f32 %v1791, %v1887
      %1889 = vmatmul.bf16.gmra.mxu0 %v1765
      %v1890 = vpop.f32.mrf.mxu0
      %v1891 = vadd.f32 %v1791, %v1890
      %v1892 = vpop.f32.mrf.mxu0
      %v1893 = vadd.f32 %v1791, %v1892
      %1894 = vmatmul.bf16.gmra.mxu0 %v1766
      %v1895 = vpop.f32.mrf.mxu0
      %v1896 = vadd.f32 %v1791, %v1895
      %v1897 = vpop.f32.mrf.mxu0
      %v1898 = vadd.f32 %v1791, %v1897
      %1899 = vmatmul.bf16.gmra.mxu0 %v1767
      %v1900 = vpop.f32.mrf.mxu0
      %v1901 = vadd.f32 %v1791, %v1900
      %v1902 = vpop.f32.mrf.mxu0
      %v1903 = vadd.f32 %v1791, %v1902
      %1904 = vmatmul.bf16.gmra.mxu0 %v1768
      %v1905 = vpop.f32.mrf.mxu0
      %v1906 = vadd.f32 %v1791, %v1905
      %v1907 = vpop.f32.mrf.mxu0
      %v1908 = vadd.f32 %v1791, %v1907
      %1909 = vmatmul.bf16.gmra.mxu0 %v1769
      %v1910 = vpop.f32.mrf.mxu0
      %v1911 = vadd.f32 %v1791, %v1910
      %v1912 = vpop.f32.mrf.mxu0
      %v1913 = vadd.f32 %v1791, %v1912
      %1914 = vmatmul.bf16.gmra.mxu0 %v1770
      %v1915 = vpop.f32.mrf.mxu0
      %v1916 = vadd.f32 %v1791, %v1915
      %v1917 = vpop.f32.mrf.mxu0
      %v1918 = vadd.f32 %v1791, %v1917
      %1919 = vmatmul.bf16.gmra.mxu0 %v1771
      %v1920 = vpop.f32.mrf.mxu0
      %v1921 = vadd.f32 %v1791, %v1920
      %v1922 = vpop.f32.mrf.mxu0
      %v1923 = vadd.f32 %v1791, %v1922
      %1924 = vmatmul.bf16.gmra.mxu0 %v1772
      %v1925 = vpop.f32.mrf.mxu0
      %v1926 = vadd.f32 %v1791, %v1925
      %v1927 = vpop.f32.mrf.mxu0
      %v1928 = vadd.f32 %v1791, %v1927
      %1929 = vdwg.mxu0
      %1962 = vrot.lane.b32.xlu0 %v1851, 4
      %v1963 = vpop.permute.xlu0 %1962
      %1964 = vrot.lane.b32.xlu0 %v1853, 4
      %v1965 = vpop.permute.xlu0 %1964
      %1966 = vrot.lane.b32.xlu0 %v1856, 4
      %v1967 = vpop.permute.xlu0 %1966
      %1968 = vrot.lane.b32.xlu0 %v1858, 4
      %v1969 = vpop.permute.xlu0 %1968
      %1970 = vrot.lane.b32.xlu0 %v1861, 4
      %v1971 = vpop.permute.xlu0 %1970
      %1972 = vrot.lane.b32.xlu0 %v1863, 4
      %v1973 = vpop.permute.xlu0 %1972
      %1974 = vrot.lane.b32.xlu0 %v1866, 4
      %v1975 = vpop.permute.xlu0 %1974
      %1976 = vrot.lane.b32.xlu0 %v1868, 4
      %v1977 = vpop.permute.xlu0 %1976
      %1978 = vrot.lane.b32.xlu0 %v1871, 4
      %v1979 = vpop.permute.xlu0 %1978
      %1980 = vrot.lane.b32.xlu0 %v1873, 4
      %v1981 = vpop.permute.xlu0 %1980
      %1982 = vrot.lane.b32.xlu0 %v1876, 4
      %v1983 = vpop.permute.xlu0 %1982
      %1984 = vrot.lane.b32.xlu0 %v1878, 4
      %v1985 = vpop.permute.xlu0 %1984
      %1986 = vrot.lane.b32.xlu0 %v1881, 4
      %v1987 = vpop.permute.xlu0 %1986
      %1988 = vrot.lane.b32.xlu0 %v1883, 4
      %v1989 = vpop.permute.xlu0 %1988
      %1990 = vrot.lane.b32.xlu0 %v1886, 4
      %v1991 = vpop.permute.xlu0 %1990
      %1992 = vrot.lane.b32.xlu0 %v1888, 4
      %v1993 = vpop.permute.xlu0 %1992
      %1994 = vrot.lane.b32.xlu0 %v1891, 4
      %v1995 = vpop.permute.xlu0 %1994
      %1996 = vrot.lane.b32.xlu0 %v1893, 4
      %v1997 = vpop.permute.xlu0 %1996
      %1998 = vrot.lane.b32.xlu0 %v1896, 4
      %v1999 = vpop.permute.xlu0 %1998
      %2000 = vrot.lane.b32.xlu0 %v1898, 4
      %v2001 = vpop.permute.xlu0 %2000
      %2002 = vrot.lane.b32.xlu0 %v1901, 4
      %v2003 = vpop.permute.xlu0 %2002
      %2004 = vrot.lane.b32.xlu0 %v1903, 4
      %v2005 = vpop.permute.xlu0 %2004
      %2006 = vrot.lane.b32.xlu0 %v1906, 4
      %v2007 = vpop.permute.xlu0 %2006
      %2008 = vrot.lane.b32.xlu0 %v1908, 4
      %v2009 = vpop.permute.xlu0 %2008
      %2010 = vrot.lane.b32.xlu0 %v1911, 4
      %v2011 = vpop.permute.xlu0 %2010
      %2012 = vrot.lane.b32.xlu0 %v1913, 4
      %v2013 = vpop.permute.xlu0 %2012
      %2014 = vrot.lane.b32.xlu0 %v1916, 4
      %v2015 = vpop.permute.xlu0 %2014
      %2016 = vrot.lane.b32.xlu0 %v1918, 4
      %v2017 = vpop.permute.xlu0 %2016
      %2018 = vrot.lane.b32.xlu0 %v1921, 4
      %v2019 = vpop.permute.xlu0 %2018
      %2020 = vrot.lane.b32.xlu0 %v1923, 4
      %v2021 = vpop.permute.xlu0 %2020
      %2022 = vrot.lane.b32.xlu0 %v1926, 4
      %v2023 = vpop.permute.xlu0 %2022
      %2024 = vrot.lane.b32.xlu0 %v1928, 4
      %v2025 = vpop.permute.xlu0 %2024
      %v2058 = vmul.f32 %v1851, %v1963
      %v2059 = vmul.f32 %v1853, %v1965
      %v2060 = vmul.f32 %v1856, %v1967
      %v2061 = vmul.f32 %v1858, %v1969
      %v2062 = vmul.f32 %v1861, %v1971
      %v2063 = vmul.f32 %v1863, %v1973
      %v2064 = vmul.f32 %v1866, %v1975
      %v2065 = vmul.f32 %v1868, %v1977
      %v2066 = vmul.f32 %v1871, %v1979
      %v2067 = vmul.f32 %v1873, %v1981
      %v2068 = vmul.f32 %v1876, %v1983
      %v2069 = vmul.f32 %v1878, %v1985
      %v2070 = vmul.f32 %v1881, %v1987
      %v2071 = vmul.f32 %v1883, %v1989
      %v2072 = vmul.f32 %v1886, %v1991
      %v2073 = vmul.f32 %v1888, %v1993
      %v2074 = vmul.f32 %v1891, %v1995
      %v2075 = vmul.f32 %v1893, %v1997
      %v2076 = vmul.f32 %v1896, %v1999
      %v2077 = vmul.f32 %v1898, %v2001
      %v2078 = vmul.f32 %v1901, %v2003
      %v2079 = vmul.f32 %v1903, %v2005
      %v2080 = vmul.f32 %v1906, %v2007
      %v2081 = vmul.f32 %v1908, %v2009
      %v2082 = vmul.f32 %v1911, %v2011
      %v2083 = vmul.f32 %v1913, %v2013
      %v2084 = vmul.f32 %v1916, %v2015
      %v2085 = vmul.f32 %v1918, %v2017
      %v2086 = vmul.f32 %v1921, %v2019
      %v2087 = vmul.f32 %v1923, %v2021
      %v2088 = vmul.f32 %v1926, %v2023
      %v2089 = vmul.f32 %v1928, %v2025
      %2090 = vrot.lane.b32.xlu0 %v1861, 8
      %v2091 = vpop.permute.xlu0 %2090
      %2092 = vrot.lane.b32.xlu0 %v1863, 8
      %v2093 = vpop.permute.xlu0 %2092
      %2094 = vrot.lane.b32.xlu0 %v1866, 8
      %v2095 = vpop.permute.xlu0 %2094
      %2096 = vrot.lane.b32.xlu0 %v1868, 8
      %v2097 = vpop.permute.xlu0 %2096
      %2098 = vrot.lane.b32.xlu0 %v1871, 8
      %v2099 = vpop.permute.xlu0 %2098
      %2100 = vrot.lane.b32.xlu0 %v1873, 8
      %v2101 = vpop.permute.xlu0 %2100
      %2102 = vrot.lane.b32.xlu0 %v1876, 8
      %v2103 = vpop.permute.xlu0 %2102
      %2104 = vrot.lane.b32.xlu0 %v1878, 8
      %v2105 = vpop.permute.xlu0 %2104
      %2106 = vrot.lane.b32.xlu0 %v1881, 8
      %v2107 = vpop.permute.xlu0 %2106
      %2108 = vrot.lane.b32.xlu0 %v1883, 8
      %v2109 = vpop.permute.xlu0 %2108
      %2110 = vrot.lane.b32.xlu0 %v1886, 8
      %v2111 = vpop.permute.xlu0 %2110
      %2112 = vrot.lane.b32.xlu0 %v1888, 8
      %v2113 = vpop.permute.xlu0 %2112
      %2114 = vrot.lane.b32.xlu0 %v1891, 8
      %v2115 = vpop.permute.xlu0 %2114
      %2116 = vrot.lane.b32.xlu0 %v1893, 8
      %v2117 = vpop.permute.xlu0 %2116
      %2118 = vrot.lane.b32.xlu0 %v1896, 8
      %v2119 = vpop.permute.xlu0 %2118
      %2120 = vrot.lane.b32.xlu0 %v1898, 8
      %v2121 = vpop.permute.xlu0 %2120
      %2122 = vrot.lane.b32.xlu0 %v1901, 8
      %v2123 = vpop.permute.xlu0 %2122
      %2124 = vrot.lane.b32.xlu0 %v1903, 8
      %v2125 = vpop.permute.xlu0 %2124
      %2126 = vrot.lane.b32.xlu0 %v1906, 8
      %v2127 = vpop.permute.xlu0 %2126
      %2128 = vrot.lane.b32.xlu0 %v1908, 8
      %v2129 = vpop.permute.xlu0 %2128
      %2130 = vrot.lane.b32.xlu0 %v1911, 8
      %v2131 = vpop.permute.xlu0 %2130
      %2132 = vrot.lane.b32.xlu0 %v1913, 8
      %v2133 = vpop.permute.xlu0 %2132
      %2134 = vrot.lane.b32.xlu0 %v1916, 8
      %v2135 = vpop.permute.xlu0 %2134
      %2136 = vrot.lane.b32.xlu0 %v1918, 8
      %v2137 = vpop.permute.xlu0 %2136
      %2138 = vrot.lane.b32.xlu0 %v1921, 8
      %v2139 = vpop.permute.xlu0 %2138
      %2140 = vrot.lane.b32.xlu0 %v1923, 8
      %v2141 = vpop.permute.xlu0 %2140
      %2142 = vrot.lane.b32.xlu0 %v1926, 8
      %v2143 = vpop.permute.xlu0 %2142
      %2144 = vrot.lane.b32.xlu0 %v1928, 8
      %v2145 = vpop.permute.xlu0 %2144
      %2146 = vrot.lane.b32.xlu0 %v1851, 8
      %v2147 = vpop.permute.xlu0 %2146
      %2148 = vrot.lane.b32.xlu0 %v1853, 8
      %v2149 = vpop.permute.xlu0 %2148
      %2150 = vrot.lane.b32.xlu0 %v1856, 8
      %v2151 = vpop.permute.xlu0 %2150
      %2152 = vrot.lane.b32.xlu0 %v1858, 8
      %v2153 = vpop.permute.xlu0 %2152
      %v2186 = vmul.f32 %v1851, %v2091
      %v2187 = vmul.f32 %v1853, %v2093
      %v2188 = vmul.f32 %v1856, %v2095
      %v2189 = vmul.f32 %v1858, %v2097
      %v2190 = vmul.f32 %v1861, %v2099
      %v2191 = vmul.f32 %v1863, %v2101
      %v2192 = vmul.f32 %v1866, %v2103
      %v2193 = vmul.f32 %v1868, %v2105
      %v2194 = vmul.f32 %v1871, %v2107
      %v2195 = vmul.f32 %v1873, %v2109
      %v2196 = vmul.f32 %v1876, %v2111
      %v2197 = vmul.f32 %v1878, %v2113
      %v2198 = vmul.f32 %v1881, %v2115
      %v2199 = vmul.f32 %v1883, %v2117
      %v2200 = vmul.f32 %v1886, %v2119
      %v2201 = vmul.f32 %v1888, %v2121
      %v2202 = vmul.f32 %v1891, %v2123
      %v2203 = vmul.f32 %v1893, %v2125
      %v2204 = vmul.f32 %v1896, %v2127
      %v2205 = vmul.f32 %v1898, %v2129
      %v2206 = vmul.f32 %v1901, %v2131
      %v2207 = vmul.f32 %v1903, %v2133
      %v2208 = vmul.f32 %v1906, %v2135
      %v2209 = vmul.f32 %v1908, %v2137
      %v2210 = vmul.f32 %v1911, %v2139
      %v2211 = vmul.f32 %v1913, %v2141
      %v2212 = vmul.f32 %v1916, %v2143
      %v2213 = vmul.f32 %v1918, %v2145
      %v2214 = vmul.f32 %v1921, %v2147
      %v2215 = vmul.f32 %v1923, %v2149
      %v2216 = vmul.f32 %v1926, %v2151
      %v2217 = vmul.f32 %v1928, %v2153
      %2250 = vrot.lane.b32.xlu0 %v2186, 124
      %v2251 = vpop.permute.xlu0 %2250
      %2252 = vrot.lane.b32.xlu0 %v2187, 124
      %v2253 = vpop.permute.xlu0 %2252
      %2254 = vrot.lane.b32.xlu0 %v2188, 124
      %v2255 = vpop.permute.xlu0 %2254
      %2256 = vrot.lane.b32.xlu0 %v2189, 124
      %v2257 = vpop.permute.xlu0 %2256
      %2258 = vrot.lane.b32.xlu0 %v2190, 124
      %v2259 = vpop.permute.xlu0 %2258
      %2260 = vrot.lane.b32.xlu0 %v2191, 124
      %v2261 = vpop.permute.xlu0 %2260
      %2262 = vrot.lane.b32.xlu0 %v2192, 124
      %v2263 = vpop.permute.xlu0 %2262
      %2264 = vrot.lane.b32.xlu0 %v2193, 124
      %v2265 = vpop.permute.xlu0 %2264
      %2266 = vrot.lane.b32.xlu0 %v2194, 124
      %v2267 = vpop.permute.xlu0 %2266
      %2268 = vrot.lane.b32.xlu0 %v2195, 124
      %v2269 = vpop.permute.xlu0 %2268
      %2270 = vrot.lane.b32.xlu0 %v2196, 124
      %v2271 = vpop.permute.xlu0 %2270
      %2272 = vrot.lane.b32.xlu0 %v2197, 124
      %v2273 = vpop.permute.xlu0 %2272
      %2274 = vrot.lane.b32.xlu0 %v2198, 124
      %v2275 = vpop.permute.xlu0 %2274
      %2276 = vrot.lane.b32.xlu0 %v2199, 124
      %v2277 = vpop.permute.xlu0 %2276
      %2278 = vrot.lane.b32.xlu0 %v2200, 124
      %v2279 = vpop.permute.xlu0 %2278
      %2280 = vrot.lane.b32.xlu0 %v2201, 124
      %v2281 = vpop.permute.xlu0 %2280
      %2282 = vrot.lane.b32.xlu0 %v2202, 124
      %v2283 = vpop.permute.xlu0 %2282
      %2284 = vrot.lane.b32.xlu0 %v2203, 124
      %v2285 = vpop.permute.xlu0 %2284
      %2286 = vrot.lane.b32.xlu0 %v2204, 124
      %v2287 = vpop.permute.xlu0 %2286
      %2288 = vrot.lane.b32.xlu0 %v2205, 124
      %v2289 = vpop.permute.xlu0 %2288
      %2290 = vrot.lane.b32.xlu0 %v2206, 124
      %v2291 = vpop.permute.xlu0 %2290
      %2292 = vrot.lane.b32.xlu0 %v2207, 124
      %v2293 = vpop.permute.xlu0 %2292
      %2294 = vrot.lane.b32.xlu0 %v2208, 124
      %v2295 = vpop.permute.xlu0 %2294
      %2296 = vrot.lane.b32.xlu0 %v2209, 124
      %v2297 = vpop.permute.xlu0 %2296
      %2298 = vrot.lane.b32.xlu0 %v2210, 124
      %v2299 = vpop.permute.xlu0 %2298
      %2300 = vrot.lane.b32.xlu0 %v2211, 124
      %v2301 = vpop.permute.xlu0 %2300
      %2302 = vrot.lane.b32.xlu0 %v2212, 124
      %v2303 = vpop.permute.xlu0 %2302
      %2304 = vrot.lane.b32.xlu0 %v2213, 124
      %v2305 = vpop.permute.xlu0 %2304
      %2306 = vrot.lane.b32.xlu0 %v2214, 124
      %v2307 = vpop.permute.xlu0 %2306
      %2308 = vrot.lane.b32.xlu0 %v2215, 124
      %v2309 = vpop.permute.xlu0 %2308
      %2310 = vrot.lane.b32.xlu0 %v2216, 124
      %v2311 = vpop.permute.xlu0 %2310
      %2312 = vrot.lane.b32.xlu0 %v2217, 124
      %v2313 = vpop.permute.xlu0 %2312
      %v2346 = vadd.f32 %v2058, %v2251
      %v2347 = vadd.f32 %v2059, %v2253
      %v2348 = vadd.f32 %v2060, %v2255
      %v2349 = vadd.f32 %v2061, %v2257
      %v2350 = vadd.f32 %v2062, %v2259
      %v2351 = vadd.f32 %v2063, %v2261
      %v2352 = vadd.f32 %v2064, %v2263
      %v2353 = vadd.f32 %v2065, %v2265
      %v2354 = vadd.f32 %v2066, %v2267
      %v2355 = vadd.f32 %v2067, %v2269
      %v2356 = vadd.f32 %v2068, %v2271
      %v2357 = vadd.f32 %v2069, %v2273
      %v2358 = vadd.f32 %v2070, %v2275
      %v2359 = vadd.f32 %v2071, %v2277
      %v2360 = vadd.f32 %v2072, %v2279
      %v2361 = vadd.f32 %v2073, %v2281
      %v2362 = vadd.f32 %v2074, %v2283
      %v2363 = vadd.f32 %v2075, %v2285
      %v2364 = vadd.f32 %v2076, %v2287
      %v2365 = vadd.f32 %v2077, %v2289
      %v2366 = vadd.f32 %v2078, %v2291
      %v2367 = vadd.f32 %v2079, %v2293
      %v2368 = vadd.f32 %v2080, %v2295
      %v2369 = vadd.f32 %v2081, %v2297
      %v2370 = vadd.f32 %v2082, %v2299
      %v2371 = vadd.f32 %v2083, %v2301
      %v2372 = vadd.f32 %v2084, %v2303
      %v2373 = vadd.f32 %v2085, %v2305
      %v2374 = vadd.f32 %v2086, %v2307
      %v2375 = vadd.f32 %v2087, %v2309
      %v2376 = vadd.f32 %v2088, %v2311
      %v2377 = vadd.f32 %v2089, %v2313
      %2378 = vrot.lane.b32.xlu0 %v1871, 12
      %v2379 = vpop.permute.xlu0 %2378
      %2380 = vrot.lane.b32.xlu0 %v1873, 12
      %v2381 = vpop.permute.xlu0 %2380
      %2382 = vrot.lane.b32.xlu0 %v1876, 12
      %v2383 = vpop.permute.xlu0 %2382
      %2384 = vrot.lane.b32.xlu0 %v1878, 12
      %v2385 = vpop.permute.xlu0 %2384
      %2386 = vrot.lane.b32.xlu0 %v1881, 12
      %v2387 = vpop.permute.xlu0 %2386
      %2388 = vrot.lane.b32.xlu0 %v1883, 12
      %v2389 = vpop.permute.xlu0 %2388
      %2390 = vrot.lane.b32.xlu0 %v1886, 12
      %v2391 = vpop.permute.xlu0 %2390
      %2392 = vrot.lane.b32.xlu0 %v1888, 12
      %v2393 = vpop.permute.xlu0 %2392
      %2394 = vrot.lane.b32.xlu0 %v1891, 12
      %v2395 = vpop.permute.xlu0 %2394
      %2396 = vrot.lane.b32.xlu0 %v1893, 12
      %v2397 = vpop.permute.xlu0 %2396
      %2398 = vrot.lane.b32.xlu0 %v1896, 12
      %v2399 = vpop.permute.xlu0 %2398
      %2400 = vrot.lane.b32.xlu0 %v1898, 12
      %v2401 = vpop.permute.xlu0 %2400
      %2402 = vrot.lane.b32.xlu0 %v1901, 12
      %v2403 = vpop.permute.xlu0 %2402
      %2404 = vrot.lane.b32.xlu0 %v1903, 12
      %v2405 = vpop.permute.xlu0 %2404
      %2406 = vrot.lane.b32.xlu0 %v1906, 12
      %v2407 = vpop.permute.xlu0 %2406
      %2408 = vrot.lane.b32.xlu0 %v1908, 12
      %v2409 = vpop.permute.xlu0 %2408
      %2410 = vrot.lane.b32.xlu0 %v1911, 12
      %v2411 = vpop.permute.xlu0 %2410
      %2412 = vrot.lane.b32.xlu0 %v1913, 12
      %v2413 = vpop.permute.xlu0 %2412
      %2414 = vrot.lane.b32.xlu0 %v1916, 12
      %v2415 = vpop.permute.xlu0 %2414
      %2416 = vrot.lane.b32.xlu0 %v1918, 12
      %v2417 = vpop.permute.xlu0 %2416
      %2418 = vrot.lane.b32.xlu0 %v1921, 12
      %v2419 = vpop.permute.xlu0 %2418
      %2420 = vrot.lane.b32.xlu0 %v1923, 12
      %v2421 = vpop.permute.xlu0 %2420
      %2422 = vrot.lane.b32.xlu0 %v1926, 12
      %v2423 = vpop.permute.xlu0 %2422
      %2424 = vrot.lane.b32.xlu0 %v1928, 12
      %v2425 = vpop.permute.xlu0 %2424
      %2426 = vrot.lane.b32.xlu0 %v1851, 12
      %v2427 = vpop.permute.xlu0 %2426
      %2428 = vrot.lane.b32.xlu0 %v1853, 12
      %v2429 = vpop.permute.xlu0 %2428
      %2430 = vrot.lane.b32.xlu0 %v1856, 12
      %v2431 = vpop.permute.xlu0 %2430
      %2432 = vrot.lane.b32.xlu0 %v1858, 12
      %v2433 = vpop.permute.xlu0 %2432
      %2434 = vrot.lane.b32.xlu0 %v1861, 12
      %v2435 = vpop.permute.xlu0 %2434
      %2436 = vrot.lane.b32.xlu0 %v1863, 12
      %v2437 = vpop.permute.xlu0 %2436
      %2438 = vrot.lane.b32.xlu0 %v1866, 12
      %v2439 = vpop.permute.xlu0 %2438
      %2440 = vrot.lane.b32.xlu0 %v1868, 12
      %v2441 = vpop.permute.xlu0 %2440
      %v2474 = vmul.f32 %v1851, %v2379
      %v2475 = vmul.f32 %v1853, %v2381
      %v2476 = vmul.f32 %v1856, %v2383
      %v2477 = vmul.f32 %v1858, %v2385
      %v2478 = vmul.f32 %v1861, %v2387
      %v2479 = vmul.f32 %v1863, %v2389
      %v2480 = vmul.f32 %v1866, %v2391
      %v2481 = vmul.f32 %v1868, %v2393
      %v2482 = vmul.f32 %v1871, %v2395
      %v2483 = vmul.f32 %v1873, %v2397
      %v2484 = vmul.f32 %v1876, %v2399
      %v2485 = vmul.f32 %v1878, %v2401
      %v2486 = vmul.f32 %v1881, %v2403
      %v2487 = vmul.f32 %v1883, %v2405
      %v2488 = vmul.f32 %v1886, %v2407
      %v2489 = vmul.f32 %v1888, %v2409
      %v2490 = vmul.f32 %v1891, %v2411
      %v2491 = vmul.f32 %v1893, %v2413
      %v2492 = vmul.f32 %v1896, %v2415
      %v2493 = vmul.f32 %v1898, %v2417
      %v2494 = vmul.f32 %v1901, %v2419
      %v2495 = vmul.f32 %v1903, %v2421
      %v2496 = vmul.f32 %v1906, %v2423
      %v2497 = vmul.f32 %v1908, %v2425
      %v2498 = vmul.f32 %v1911, %v2427
      %v2499 = vmul.f32 %v1913, %v2429
      %v2500 = vmul.f32 %v1916, %v2431
      %v2501 = vmul.f32 %v1918, %v2433
      %v2502 = vmul.f32 %v1921, %v2435
      %v2503 = vmul.f32 %v1923, %v2437
      %v2504 = vmul.f32 %v1926, %v2439
      %v2505 = vmul.f32 %v1928, %v2441
      %2538 = vrot.lane.b32.xlu0 %v2474, 120
      %v2539 = vpop.permute.xlu0 %2538
      %2540 = vrot.lane.b32.xlu0 %v2475, 120
      %v2541 = vpop.permute.xlu0 %2540
      %2542 = vrot.lane.b32.xlu0 %v2476, 120
      %v2543 = vpop.permute.xlu0 %2542
      %2544 = vrot.lane.b32.xlu0 %v2477, 120
      %v2545 = vpop.permute.xlu0 %2544
      %2546 = vrot.lane.b32.xlu0 %v2478, 120
      %v2547 = vpop.permute.xlu0 %2546
      %2548 = vrot.lane.b32.xlu0 %v2479, 120
      %v2549 = vpop.permute.xlu0 %2548
      %2550 = vrot.lane.b32.xlu0 %v2480, 120
      %v2551 = vpop.permute.xlu0 %2550
      %2552 = vrot.lane.b32.xlu0 %v2481, 120
      %v2553 = vpop.permute.xlu0 %2552
      %2554 = vrot.lane.b32.xlu0 %v2482, 120
      %v2555 = vpop.permute.xlu0 %2554
      %2556 = vrot.lane.b32.xlu0 %v2483, 120
      %v2557 = vpop.permute.xlu0 %2556
      %2558 = vrot.lane.b32.xlu0 %v2484, 120
      %v2559 = vpop.permute.xlu0 %2558
      %2560 = vrot.lane.b32.xlu0 %v2485, 120
      %v2561 = vpop.permute.xlu0 %2560
      %2562 = vrot.lane.b32.xlu0 %v2486, 120
      %v2563 = vpop.permute.xlu0 %2562
      %2564 = vrot.lane.b32.xlu0 %v2487, 120
      %v2565 = vpop.permute.xlu0 %2564
      %2566 = vrot.lane.b32.xlu0 %v2488, 120
      %v2567 = vpop.permute.xlu0 %2566
      %2568 = vrot.lane.b32.xlu0 %v2489, 120
      %v2569 = vpop.permute.xlu0 %2568
      %2570 = vrot.lane.b32.xlu0 %v2490, 120
      %v2571 = vpop.permute.xlu0 %2570
      %2572 = vrot.lane.b32.xlu0 %v2491, 120
      %v2573 = vpop.permute.xlu0 %2572
      %2574 = vrot.lane.b32.xlu0 %v2492, 120
      %v2575 = vpop.permute.xlu0 %2574
      %2576 = vrot.lane.b32.xlu0 %v2493, 120
      %v2577 = vpop.permute.xlu0 %2576
      %2578 = vrot.lane.b32.xlu0 %v2494, 120
      %v2579 = vpop.permute.xlu0 %2578
      %2580 = vrot.lane.b32.xlu0 %v2495, 120
      %v2581 = vpop.permute.xlu0 %2580
      %2582 = vrot.lane.b32.xlu0 %v2496, 120
      %v2583 = vpop.permute.xlu0 %2582
      %2584 = vrot.lane.b32.xlu0 %v2497, 120
      %v2585 = vpop.permute.xlu0 %2584
      %2586 = vrot.lane.b32.xlu0 %v2498, 120
      %v2587 = vpop.permute.xlu0 %2586
      %2588 = vrot.lane.b32.xlu0 %v2499, 120
      %v2589 = vpop.permute.xlu0 %2588
      %2590 = vrot.lane.b32.xlu0 %v2500, 120
      %v2591 = vpop.permute.xlu0 %2590
      %2592 = vrot.lane.b32.xlu0 %v2501, 120
      %v2593 = vpop.permute.xlu0 %2592
      %2594 = vrot.lane.b32.xlu0 %v2502, 120
      %v2595 = vpop.permute.xlu0 %2594
      %2596 = vrot.lane.b32.xlu0 %v2503, 120
      %v2597 = vpop.permute.xlu0 %2596
      %2598 = vrot.lane.b32.xlu0 %v2504, 120
      %v2599 = vpop.permute.xlu0 %2598
      %2600 = vrot.lane.b32.xlu0 %v2505, 120
      %v2601 = vpop.permute.xlu0 %2600
      %v2634 = vadd.f32 %v2346, %v2539
      %v2635 = vadd.f32 %v2347, %v2541
      %v2636 = vadd.f32 %v2348, %v2543
      %v2637 = vadd.f32 %v2349, %v2545
      %v2638 = vadd.f32 %v2350, %v2547
      %v2639 = vadd.f32 %v2351, %v2549
      %v2640 = vadd.f32 %v2352, %v2551
      %v2641 = vadd.f32 %v2353, %v2553
      %v2642 = vadd.f32 %v2354, %v2555
      %v2643 = vadd.f32 %v2355, %v2557
      %v2644 = vadd.f32 %v2356, %v2559
      %v2645 = vadd.f32 %v2357, %v2561
      %v2646 = vadd.f32 %v2358, %v2563
      %v2647 = vadd.f32 %v2359, %v2565
      %v2648 = vadd.f32 %v2360, %v2567
      %v2649 = vadd.f32 %v2361, %v2569
      %v2650 = vadd.f32 %v2362, %v2571
      %v2651 = vadd.f32 %v2363, %v2573
      %v2652 = vadd.f32 %v2364, %v2575
      %v2653 = vadd.f32 %v2365, %v2577
      %v2654 = vadd.f32 %v2366, %v2579
      %v2655 = vadd.f32 %v2367, %v2581
      %v2656 = vadd.f32 %v2368, %v2583
      %v2657 = vadd.f32 %v2369, %v2585
      %v2658 = vadd.f32 %v2370, %v2587
      %v2659 = vadd.f32 %v2371, %v2589
      %v2660 = vadd.f32 %v2372, %v2591
      %v2661 = vadd.f32 %v2373, %v2593
      %v2662 = vadd.f32 %v2374, %v2595
      %v2663 = vadd.f32 %v2375, %v2597
      %v2664 = vadd.f32 %v2376, %v2599
      %v2665 = vadd.f32 %v2377, %v2601
      %2666 = vrot.lane.b32.xlu0 %v1891, 16
      %v2667 = vpop.permute.xlu0 %2666
      %2668 = vrot.lane.b32.xlu0 %v1893, 16
      %v2669 = vpop.permute.xlu0 %2668
      %2670 = vrot.lane.b32.xlu0 %v1896, 16
      %v2671 = vpop.permute.xlu0 %2670
      %2672 = vrot.lane.b32.xlu0 %v1898, 16
      %v2673 = vpop.permute.xlu0 %2672
      %2674 = vrot.lane.b32.xlu0 %v1901, 16
      %v2675 = vpop.permute.xlu0 %2674
      %2676 = vrot.lane.b32.xlu0 %v1903, 16
      %v2677 = vpop.permute.xlu0 %2676
      %2678 = vrot.lane.b32.xlu0 %v1906, 16
      %v2679 = vpop.permute.xlu0 %2678
      %2680 = vrot.lane.b32.xlu0 %v1908, 16
      %v2681 = vpop.permute.xlu0 %2680
      %2682 = vrot.lane.b32.xlu0 %v1911, 16
      %v2683 = vpop.permute.xlu0 %2682
      %2684 = vrot.lane.b32.xlu0 %v1913, 16
      %v2685 = vpop.permute.xlu0 %2684
      %2686 = vrot.lane.b32.xlu0 %v1916, 16
      %v2687 = vpop.permute.xlu0 %2686
      %2688 = vrot.lane.b32.xlu0 %v1918, 16
      %v2689 = vpop.permute.xlu0 %2688
      %2690 = vrot.lane.b32.xlu0 %v1921, 16
      %v2691 = vpop.permute.xlu0 %2690
      %2692 = vrot.lane.b32.xlu0 %v1923, 16
      %v2693 = vpop.permute.xlu0 %2692
      %2694 = vrot.lane.b32.xlu0 %v1926, 16
      %v2695 = vpop.permute.xlu0 %2694
      %2696 = vrot.lane.b32.xlu0 %v1928, 16
      %v2697 = vpop.permute.xlu0 %2696
      %2698 = vrot.lane.b32.xlu0 %v1851, 16
      %v2699 = vpop.permute.xlu0 %2698
      %2700 = vrot.lane.b32.xlu0 %v1853, 16
      %v2701 = vpop.permute.xlu0 %2700
      %2702 = vrot.lane.b32.xlu0 %v1856, 16
      %v2703 = vpop.permute.xlu0 %2702
      %2704 = vrot.lane.b32.xlu0 %v1858, 16
      %v2705 = vpop.permute.xlu0 %2704
      %2706 = vrot.lane.b32.xlu0 %v1861, 16
      %v2707 = vpop.permute.xlu0 %2706
      %2708 = vrot.lane.b32.xlu0 %v1863, 16
      %v2709 = vpop.permute.xlu0 %2708
      %2710 = vrot.lane.b32.xlu0 %v1866, 16
      %v2711 = vpop.permute.xlu0 %2710
      %2712 = vrot.lane.b32.xlu0 %v1868, 16
      %v2713 = vpop.permute.xlu0 %2712
      %2714 = vrot.lane.b32.xlu0 %v1871, 16
      %v2715 = vpop.permute.xlu0 %2714
      %2716 = vrot.lane.b32.xlu0 %v1873, 16
      %v2717 = vpop.permute.xlu0 %2716
      %2718 = vrot.lane.b32.xlu0 %v1876, 16
      %v2719 = vpop.permute.xlu0 %2718
      %2720 = vrot.lane.b32.xlu0 %v1878, 16
      %v2721 = vpop.permute.xlu0 %2720
      %2722 = vrot.lane.b32.xlu0 %v1881, 16
      %v2723 = vpop.permute.xlu0 %2722
      %2724 = vrot.lane.b32.xlu0 %v1883, 16
      %v2725 = vpop.permute.xlu0 %2724
      %2726 = vrot.lane.b32.xlu0 %v1886, 16
      %v2727 = vpop.permute.xlu0 %2726
      %2728 = vrot.lane.b32.xlu0 %v1888, 16
      %v2729 = vpop.permute.xlu0 %2728
      %v2762 = vmul.f32 %v1851, %v2667
      %v2763 = vmul.f32 %v1853, %v2669
      %v2764 = vmul.f32 %v1856, %v2671
      %v2765 = vmul.f32 %v1858, %v2673
      %v2766 = vmul.f32 %v1861, %v2675
      %v2767 = vmul.f32 %v1863, %v2677
      %v2768 = vmul.f32 %v1866, %v2679
      %v2769 = vmul.f32 %v1868, %v2681
      %v2770 = vmul.f32 %v1871, %v2683
      %v2771 = vmul.f32 %v1873, %v2685
      %v2772 = vmul.f32 %v1876, %v2687
      %v2773 = vmul.f32 %v1878, %v2689
      %v2774 = vmul.f32 %v1881, %v2691
      %v2775 = vmul.f32 %v1883, %v2693
      %v2776 = vmul.f32 %v1886, %v2695
      %v2777 = vmul.f32 %v1888, %v2697
      %v2778 = vmul.f32 %v1891, %v2699
      %v2779 = vmul.f32 %v1893, %v2701
      %v2780 = vmul.f32 %v1896, %v2703
      %v2781 = vmul.f32 %v1898, %v2705
      %v2782 = vmul.f32 %v1901, %v2707
      %v2783 = vmul.f32 %v1903, %v2709
      %v2784 = vmul.f32 %v1906, %v2711
      %v2785 = vmul.f32 %v1908, %v2713
      %v2786 = vmul.f32 %v1911, %v2715
      %v2787 = vmul.f32 %v1913, %v2717
      %v2788 = vmul.f32 %v1916, %v2719
      %v2789 = vmul.f32 %v1918, %v2721
      %v2790 = vmul.f32 %v1921, %v2723
      %v2791 = vmul.f32 %v1923, %v2725
      %v2792 = vmul.f32 %v1926, %v2727
      %v2793 = vmul.f32 %v1928, %v2729
      %2826 = vrot.lane.b32.xlu0 %v2762, 116
      %v2827 = vpop.permute.xlu0 %2826
      %2828 = vrot.lane.b32.xlu0 %v2763, 116
      %v2829 = vpop.permute.xlu0 %2828
      %2830 = vrot.lane.b32.xlu0 %v2764, 116
      %v2831 = vpop.permute.xlu0 %2830
      %2832 = vrot.lane.b32.xlu0 %v2765, 116
      %v2833 = vpop.permute.xlu0 %2832
      %2834 = vrot.lane.b32.xlu0 %v2766, 116
      %v2835 = vpop.permute.xlu0 %2834
      %2836 = vrot.lane.b32.xlu0 %v2767, 116
      %v2837 = vpop.permute.xlu0 %2836
      %2838 = vrot.lane.b32.xlu0 %v2768, 116
      %v2839 = vpop.permute.xlu0 %2838
      %2840 = vrot.lane.b32.xlu0 %v2769, 116
      %v2841 = vpop.permute.xlu0 %2840
      %2842 = vrot.lane.b32.xlu0 %v2770, 116
      %v2843 = vpop.permute.xlu0 %2842
      %2844 = vrot.lane.b32.xlu0 %v2771, 116
      %v2845 = vpop.permute.xlu0 %2844
      %2846 = vrot.lane.b32.xlu0 %v2772, 116
      %v2847 = vpop.permute.xlu0 %2846
      %2848 = vrot.lane.b32.xlu0 %v2773, 116
      %v2849 = vpop.permute.xlu0 %2848
      %2850 = vrot.lane.b32.xlu0 %v2774, 116
      %v2851 = vpop.permute.xlu0 %2850
      %2852 = vrot.lane.b32.xlu0 %v2775, 116
      %v2853 = vpop.permute.xlu0 %2852
      %2854 = vrot.lane.b32.xlu0 %v2776, 116
      %v2855 = vpop.permute.xlu0 %2854
      %2856 = vrot.lane.b32.xlu0 %v2777, 116
      %v2857 = vpop.permute.xlu0 %2856
      %2858 = vrot.lane.b32.xlu0 %v2778, 116
      %v2859 = vpop.permute.xlu0 %2858
      %2860 = vrot.lane.b32.xlu0 %v2779, 116
      %v2861 = vpop.permute.xlu0 %2860
      %2862 = vrot.lane.b32.xlu0 %v2780, 116
      %v2863 = vpop.permute.xlu0 %2862
      %2864 = vrot.lane.b32.xlu0 %v2781, 116
      %v2865 = vpop.permute.xlu0 %2864
      %2866 = vrot.lane.b32.xlu0 %v2782, 116
      %v2867 = vpop.permute.xlu0 %2866
      %2868 = vrot.lane.b32.xlu0 %v2783, 116
      %v2869 = vpop.permute.xlu0 %2868
      %2870 = vrot.lane.b32.xlu0 %v2784, 116
      %v2871 = vpop.permute.xlu0 %2870
      %2872 = vrot.lane.b32.xlu0 %v2785, 116
      %v2873 = vpop.permute.xlu0 %2872
      %2874 = vrot.lane.b32.xlu0 %v2786, 116
      %v2875 = vpop.permute.xlu0 %2874
      %2876 = vrot.lane.b32.xlu0 %v2787, 116
      %v2877 = vpop.permute.xlu0 %2876
      %2878 = vrot.lane.b32.xlu0 %v2788, 116
      %v2879 = vpop.permute.xlu0 %2878
      %2880 = vrot.lane.b32.xlu0 %v2789, 116
      %v2881 = vpop.permute.xlu0 %2880
      %2882 = vrot.lane.b32.xlu0 %v2790, 116
      %v2883 = vpop.permute.xlu0 %2882
      %2884 = vrot.lane.b32.xlu0 %v2791, 116
      %v2885 = vpop.permute.xlu0 %2884
      %2886 = vrot.lane.b32.xlu0 %v2792, 116
      %v2887 = vpop.permute.xlu0 %2886
      %2888 = vrot.lane.b32.xlu0 %v2793, 116
      %v2889 = vpop.permute.xlu0 %2888
      %v2922 = vadd.f32 %v2634, %v2827
      %v2923 = vadd.f32 %v2635, %v2829
      %v2924 = vadd.f32 %v2636, %v2831
      %v2925 = vadd.f32 %v2637, %v2833
      %v2926 = vadd.f32 %v2638, %v2835
      %v2927 = vadd.f32 %v2639, %v2837
      %v2928 = vadd.f32 %v2640, %v2839
      %v2929 = vadd.f32 %v2641, %v2841
      %v2930 = vadd.f32 %v2642, %v2843
      %v2931 = vadd.f32 %v2643, %v2845
      %v2932 = vadd.f32 %v2644, %v2847
      %v2933 = vadd.f32 %v2645, %v2849
      %v2934 = vadd.f32 %v2646, %v2851
      %v2935 = vadd.f32 %v2647, %v2853
      %v2936 = vadd.f32 %v2648, %v2855
      %v2937 = vadd.f32 %v2649, %v2857
      %v2938 = vadd.f32 %v2650, %v2859
      %v2939 = vadd.f32 %v2651, %v2861
      %v2940 = vadd.f32 %v2652, %v2863
      %v2941 = vadd.f32 %v2653, %v2865
      %v2942 = vadd.f32 %v2654, %v2867
      %v2943 = vadd.f32 %v2655, %v2869
      %v2944 = vadd.f32 %v2656, %v2871
      %v2945 = vadd.f32 %v2657, %v2873
      %v2946 = vadd.f32 %v2658, %v2875
      %v2947 = vadd.f32 %v2659, %v2877
      %v2948 = vadd.f32 %v2660, %v2879
      %v2949 = vadd.f32 %v2661, %v2881
      %v2950 = vadd.f32 %v2662, %v2883
      %v2951 = vadd.f32 %v2663, %v2885
      %v2952 = vadd.f32 %v2664, %v2887
      %v2953 = vadd.f32 %v2665, %v2889
      %v2954 = vadd.f32 %v2922, %v1963
      %v2955 = vadd.f32 %v2923, %v1965
      %v2956 = vadd.f32 %v2924, %v1967
      %v2957 = vadd.f32 %v2925, %v1969
      %v2958 = vadd.f32 %v2926, %v1971
      %v2959 = vadd.f32 %v2927, %v1973
      %v2960 = vadd.f32 %v2928, %v1975
      %v2961 = vadd.f32 %v2929, %v1977
      %v2962 = vadd.f32 %v2930, %v1979
      %v2963 = vadd.f32 %v2931, %v1981
      %v2964 = vadd.f32 %v2932, %v1983
      %v2965 = vadd.f32 %v2933, %v1985
      %v2966 = vadd.f32 %v2934, %v1987
      %v2967 = vadd.f32 %v2935, %v1989
      %v2968 = vadd.f32 %v2936, %v1991
      %v2969 = vadd.f32 %v2937, %v1993
      %v2970 = vadd.f32 %v2938, %v1995
      %v2971 = vadd.f32 %v2939, %v1997
      %v2972 = vadd.f32 %v2940, %v1999
      %v2973 = vadd.f32 %v2941, %v2001
      %v2974 = vadd.f32 %v2942, %v2003
      %v2975 = vadd.f32 %v2943, %v2005
      %v2976 = vadd.f32 %v2944, %v2007
      %v2977 = vadd.f32 %v2945, %v2009
      %v2978 = vadd.f32 %v2946, %v2011
      %v2979 = vadd.f32 %v2947, %v2013
      %v2980 = vadd.f32 %v2948, %v2015
      %v2981 = vadd.f32 %v2949, %v2017
      %v2982 = vadd.f32 %v2950, %v2019
      %v2983 = vadd.f32 %v2951, %v2021
      %v2984 = vadd.f32 %v2952, %v2023
      %v2985 = vadd.f32 %v2953, %v2025
      %3018 = vrot.lane.b32.xlu0 %v2954, 16
      %v3019 = vpop.permute.xlu0 %3018
      %3020 = vrot.lane.b32.xlu0 %v2955, 16
      %v3021 = vpop.permute.xlu0 %3020
      %3022 = vrot.lane.b32.xlu0 %v2956, 16
      %v3023 = vpop.permute.xlu0 %3022
      %3024 = vrot.lane.b32.xlu0 %v2957, 16
      %v3025 = vpop.permute.xlu0 %3024
      %3026 = vrot.lane.b32.xlu0 %v2958, 16
      %v3027 = vpop.permute.xlu0 %3026
      %3028 = vrot.lane.b32.xlu0 %v2959, 16
      %v3029 = vpop.permute.xlu0 %3028
      %3030 = vrot.lane.b32.xlu0 %v2960, 16
      %v3031 = vpop.permute.xlu0 %3030
      %3032 = vrot.lane.b32.xlu0 %v2961, 16
      %v3033 = vpop.permute.xlu0 %3032
      %3034 = vrot.lane.b32.xlu0 %v2962, 16
      %v3035 = vpop.permute.xlu0 %3034
      %3036 = vrot.lane.b32.xlu0 %v2963, 16
      %v3037 = vpop.permute.xlu0 %3036
      %3038 = vrot.lane.b32.xlu0 %v2964, 16
      %v3039 = vpop.permute.xlu0 %3038
      %3040 = vrot.lane.b32.xlu0 %v2965, 16
      %v3041 = vpop.permute.xlu0 %3040
      %3042 = vrot.lane.b32.xlu0 %v2966, 16
      %v3043 = vpop.permute.xlu0 %3042
      %3044 = vrot.lane.b32.xlu0 %v2967, 16
      %v3045 = vpop.permute.xlu0 %3044
      %3046 = vrot.lane.b32.xlu0 %v2968, 16
      %v3047 = vpop.permute.xlu0 %3046
      %3048 = vrot.lane.b32.xlu0 %v2969, 16
      %v3049 = vpop.permute.xlu0 %3048
      %3050 = vrot.lane.b32.xlu0 %v2970, 16
      %v3051 = vpop.permute.xlu0 %3050
      %3052 = vrot.lane.b32.xlu0 %v2971, 16
      %v3053 = vpop.permute.xlu0 %3052
      %3054 = vrot.lane.b32.xlu0 %v2972, 16
      %v3055 = vpop.permute.xlu0 %3054
      %3056 = vrot.lane.b32.xlu0 %v2973, 16
      %v3057 = vpop.permute.xlu0 %3056
      %3058 = vrot.lane.b32.xlu0 %v2974, 16
      %v3059 = vpop.permute.xlu0 %3058
      %3060 = vrot.lane.b32.xlu0 %v2975, 16
      %v3061 = vpop.permute.xlu0 %3060
      %3062 = vrot.lane.b32.xlu0 %v2976, 16
      %v3063 = vpop.permute.xlu0 %3062
      %3064 = vrot.lane.b32.xlu0 %v2977, 16
      %v3065 = vpop.permute.xlu0 %3064
      %3066 = vrot.lane.b32.xlu0 %v2978, 16
      %v3067 = vpop.permute.xlu0 %3066
      %3068 = vrot.lane.b32.xlu0 %v2979, 16
      %v3069 = vpop.permute.xlu0 %3068
      %3070 = vrot.lane.b32.xlu0 %v2980, 16
      %v3071 = vpop.permute.xlu0 %3070
      %3072 = vrot.lane.b32.xlu0 %v2981, 16
      %v3073 = vpop.permute.xlu0 %3072
      %3074 = vrot.lane.b32.xlu0 %v2982, 16
      %v3075 = vpop.permute.xlu0 %3074
      %3076 = vrot.lane.b32.xlu0 %v2983, 16
      %v3077 = vpop.permute.xlu0 %3076
      %3078 = vrot.lane.b32.xlu0 %v2984, 16
      %v3079 = vpop.permute.xlu0 %3078
      %3080 = vrot.lane.b32.xlu0 %v2985, 16
      %v3081 = vpop.permute.xlu0 %3080
      %v3114 = vmul.f32 %v1851, %v3019
      %v3115 = vmul.f32 %v1853, %v3021
      %v3116 = vmul.f32 %v1856, %v3023
      %v3117 = vmul.f32 %v1858, %v3025
      %v3118 = vmul.f32 %v1861, %v3027
      %v3119 = vmul.f32 %v1863, %v3029
      %v3120 = vmul.f32 %v1866, %v3031
      %v3121 = vmul.f32 %v1868, %v3033
      %v3122 = vmul.f32 %v1871, %v3035
      %v3123 = vmul.f32 %v1873, %v3037
      %v3124 = vmul.f32 %v1876, %v3039
      %v3125 = vmul.f32 %v1878, %v3041
      %v3126 = vmul.f32 %v1881, %v3043
      %v3127 = vmul.f32 %v1883, %v3045
      %v3128 = vmul.f32 %v1886, %v3047
      %v3129 = vmul.f32 %v1888, %v3049
      %v3130 = vmul.f32 %v1891, %v3051
      %v3131 = vmul.f32 %v1893, %v3053
      %v3132 = vmul.f32 %v1896, %v3055
      %v3133 = vmul.f32 %v1898, %v3057
      %v3134 = vmul.f32 %v1901, %v3059
      %v3135 = vmul.f32 %v1903, %v3061
      %v3136 = vmul.f32 %v1906, %v3063
      %v3137 = vmul.f32 %v1908, %v3065
      %v3138 = vmul.f32 %v1911, %v3067
      %v3139 = vmul.f32 %v1913, %v3069
      %v3140 = vmul.f32 %v1916, %v3071
      %v3141 = vmul.f32 %v1918, %v3073
      %v3142 = vmul.f32 %v1921, %v3075
      %v3143 = vmul.f32 %v1923, %v3077
      %v3144 = vmul.f32 %v1926, %v3079
      %v3145 = vmul.f32 %v1928, %v3081
      %3146 = vrot.lane.b32.xlu0 %v2954, 124
      %v3147 = vpop.permute.xlu0 %3146
      %3148 = vrot.lane.b32.xlu0 %v2955, 124
      %v3149 = vpop.permute.xlu0 %3148
      %3150 = vrot.lane.b32.xlu0 %v2956, 124
      %v3151 = vpop.permute.xlu0 %3150
      %3152 = vrot.lane.b32.xlu0 %v2957, 124
      %v3153 = vpop.permute.xlu0 %3152
      %3154 = vrot.lane.b32.xlu0 %v2958, 124
      %v3155 = vpop.permute.xlu0 %3154
      %3156 = vrot.lane.b32.xlu0 %v2959, 124
      %v3157 = vpop.permute.xlu0 %3156
      %3158 = vrot.lane.b32.xlu0 %v2960, 124
      %v3159 = vpop.permute.xlu0 %3158
      %3160 = vrot.lane.b32.xlu0 %v2961, 124
      %v3161 = vpop.permute.xlu0 %3160
      %3162 = vrot.lane.b32.xlu0 %v2962, 124
      %v3163 = vpop.permute.xlu0 %3162
      %3164 = vrot.lane.b32.xlu0 %v2963, 124
      %v3165 = vpop.permute.xlu0 %3164
      %3166 = vrot.lane.b32.xlu0 %v2964, 124
      %v3167 = vpop.permute.xlu0 %3166
      %3168 = vrot.lane.b32.xlu0 %v2965, 124
      %v3169 = vpop.permute.xlu0 %3168
      %3170 = vrot.lane.b32.xlu0 %v2966, 124
      %v3171 = vpop.permute.xlu0 %3170
      %3172 = vrot.lane.b32.xlu0 %v2967, 124
      %v3173 = vpop.permute.xlu0 %3172
      %3174 = vrot.lane.b32.xlu0 %v2968, 124
      %v3175 = vpop.permute.xlu0 %3174
      %3176 = vrot.lane.b32.xlu0 %v2969, 124
      %v3177 = vpop.permute.xlu0 %3176
      %3178 = vrot.lane.b32.xlu0 %v2970, 124
      %v3179 = vpop.permute.xlu0 %3178
      %3180 = vrot.lane.b32.xlu0 %v2971, 124
      %v3181 = vpop.permute.xlu0 %3180
      %3182 = vrot.lane.b32.xlu0 %v2972, 124
      %v3183 = vpop.permute.xlu0 %3182
      %3184 = vrot.lane.b32.xlu0 %v2973, 124
      %v3185 = vpop.permute.xlu0 %3184
      %3186 = vrot.lane.b32.xlu0 %v2974, 124
      %v3187 = vpop.permute.xlu0 %3186
      %3188 = vrot.lane.b32.xlu0 %v2975, 124
      %v3189 = vpop.permute.xlu0 %3188
      %3190 = vrot.lane.b32.xlu0 %v2976, 124
      %v3191 = vpop.permute.xlu0 %3190
      %3192 = vrot.lane.b32.xlu0 %v2977, 124
      %v3193 = vpop.permute.xlu0 %3192
      %3194 = vrot.lane.b32.xlu0 %v2978, 124
      %v3195 = vpop.permute.xlu0 %3194
      %3196 = vrot.lane.b32.xlu0 %v2979, 124
      %v3197 = vpop.permute.xlu0 %3196
      %3198 = vrot.lane.b32.xlu0 %v2980, 124
      %v3199 = vpop.permute.xlu0 %3198
      %3200 = vrot.lane.b32.xlu0 %v2981, 124
      %v3201 = vpop.permute.xlu0 %3200
      %3202 = vrot.lane.b32.xlu0 %v2982, 124
      %v3203 = vpop.permute.xlu0 %3202
      %3204 = vrot.lane.b32.xlu0 %v2983, 124
      %v3205 = vpop.permute.xlu0 %3204
      %3206 = vrot.lane.b32.xlu0 %v2984, 124
      %v3207 = vpop.permute.xlu0 %3206
      %3208 = vrot.lane.b32.xlu0 %v2985, 124
      %v3209 = vpop.permute.xlu0 %3208
      %3210 = vrot.lane.b32.xlu0 %v3155, 24
      %v3211 = vpop.permute.xlu0 %3210
      %3212 = vrot.lane.b32.xlu0 %v3157, 24
      %v3213 = vpop.permute.xlu0 %3212
      %3214 = vrot.lane.b32.xlu0 %v3159, 24
      %v3215 = vpop.permute.xlu0 %3214
      %3216 = vrot.lane.b32.xlu0 %v3161, 24
      %v3217 = vpop.permute.xlu0 %3216
      %3218 = vrot.lane.b32.xlu0 %v3163, 24
      %v3219 = vpop.permute.xlu0 %3218
      %3220 = vrot.lane.b32.xlu0 %v3165, 24
      %v3221 = vpop.permute.xlu0 %3220
      %3222 = vrot.lane.b32.xlu0 %v3167, 24
      %v3223 = vpop.permute.xlu0 %3222
      %3224 = vrot.lane.b32.xlu0 %v3169, 24
      %v3225 = vpop.permute.xlu0 %3224
      %3226 = vrot.lane.b32.xlu0 %v3171, 24
      %v3227 = vpop.permute.xlu0 %3226
      %3228 = vrot.lane.b32.xlu0 %v3173, 24
      %v3229 = vpop.permute.xlu0 %3228
      %3230 = vrot.lane.b32.xlu0 %v3175, 24
      %v3231 = vpop.permute.xlu0 %3230
      %3232 = vrot.lane.b32.xlu0 %v3177, 24
      %v3233 = vpop.permute.xlu0 %3232
      %3234 = vrot.lane.b32.xlu0 %v3179, 24
      %v3235 = vpop.permute.xlu0 %3234
      %3236 = vrot.lane.b32.xlu0 %v3181, 24
      %v3237 = vpop.permute.xlu0 %3236
      %3238 = vrot.lane.b32.xlu0 %v3183, 24
      %v3239 = vpop.permute.xlu0 %3238
      %3240 = vrot.lane.b32.xlu0 %v3185, 24
      %v3241 = vpop.permute.xlu0 %3240
      %3242 = vrot.lane.b32.xlu0 %v3187, 24
      %v3243 = vpop.permute.xlu0 %3242
      %3244 = vrot.lane.b32.xlu0 %v3189, 24
      %v3245 = vpop.permute.xlu0 %3244
      %3246 = vrot.lane.b32.xlu0 %v3191, 24
      %v3247 = vpop.permute.xlu0 %3246
      %3248 = vrot.lane.b32.xlu0 %v3193, 24
      %v3249 = vpop.permute.xlu0 %3248
      %3250 = vrot.lane.b32.xlu0 %v3195, 24
      %v3251 = vpop.permute.xlu0 %3250
      %3252 = vrot.lane.b32.xlu0 %v3197, 24
      %v3253 = vpop.permute.xlu0 %3252
      %3254 = vrot.lane.b32.xlu0 %v3199, 24
      %v3255 = vpop.permute.xlu0 %3254
      %3256 = vrot.lane.b32.xlu0 %v3201, 24
      %v3257 = vpop.permute.xlu0 %3256
      %3258 = vrot.lane.b32.xlu0 %v3203, 24
      %v3259 = vpop.permute.xlu0 %3258
      %3260 = vrot.lane.b32.xlu0 %v3205, 24
      %v3261 = vpop.permute.xlu0 %3260
      %3262 = vrot.lane.b32.xlu0 %v3207, 24
      %v3263 = vpop.permute.xlu0 %3262
      %3264 = vrot.lane.b32.xlu0 %v3209, 24
      %v3265 = vpop.permute.xlu0 %3264
      %3266 = vrot.lane.b32.xlu0 %v3147, 24
      %v3267 = vpop.permute.xlu0 %3266
      %3268 = vrot.lane.b32.xlu0 %v3149, 24
      %v3269 = vpop.permute.xlu0 %3268
      %3270 = vrot.lane.b32.xlu0 %v3151, 24
      %v3271 = vpop.permute.xlu0 %3270
      %3272 = vrot.lane.b32.xlu0 %v3153, 24
      %v3273 = vpop.permute.xlu0 %3272
      %v3306 = vmul.f32 %v1851, %v3211
      %v3307 = vmul.f32 %v1853, %v3213
      %v3308 = vmul.f32 %v1856, %v3215
      %v3309 = vmul.f32 %v1858, %v3217
      %v3310 = vmul.f32 %v1861, %v3219
      %v3311 = vmul.f32 %v1863, %v3221
      %v3312 = vmul.f32 %v1866, %v3223
      %v3313 = vmul.f32 %v1868, %v3225
      %v3314 = vmul.f32 %v1871, %v3227
      %v3315 = vmul.f32 %v1873, %v3229
      %v3316 = vmul.f32 %v1876, %v3231
      %v3317 = vmul.f32 %v1878, %v3233
      %v3318 = vmul.f32 %v1881, %v3235
      %v3319 = vmul.f32 %v1883, %v3237
      %v3320 = vmul.f32 %v1886, %v3239
      %v3321 = vmul.f32 %v1888, %v3241
      %v3322 = vmul.f32 %v1891, %v3243
      %v3323 = vmul.f32 %v1893, %v3245
      %v3324 = vmul.f32 %v1896, %v3247
      %v3325 = vmul.f32 %v1898, %v3249
      %v3326 = vmul.f32 %v1901, %v3251
      %v3327 = vmul.f32 %v1903, %v3253
      %v3328 = vmul.f32 %v1906, %v3255
      %v3329 = vmul.f32 %v1908, %v3257
      %v3330 = vmul.f32 %v1911, %v3259
      %v3331 = vmul.f32 %v1913, %v3261
      %v3332 = vmul.f32 %v1916, %v3263
      %v3333 = vmul.f32 %v1918, %v3265
      %v3334 = vmul.f32 %v1921, %v3267
      %v3335 = vmul.f32 %v1923, %v3269
      %v3336 = vmul.f32 %v1926, %v3271
      %v3337 = vmul.f32 %v1928, %v3273
      %3370 = vrot.lane.b32.xlu0 %v3306, 124
      %v3371 = vpop.permute.xlu0 %3370
      %3372 = vrot.lane.b32.xlu0 %v3307, 124
      %v3373 = vpop.permute.xlu0 %3372
      %3374 = vrot.lane.b32.xlu0 %v3308, 124
      %v3375 = vpop.permute.xlu0 %3374
      %3376 = vrot.lane.b32.xlu0 %v3309, 124
      %v3377 = vpop.permute.xlu0 %3376
      %3378 = vrot.lane.b32.xlu0 %v3310, 124
      %v3379 = vpop.permute.xlu0 %3378
      %3380 = vrot.lane.b32.xlu0 %v3311, 124
      %v3381 = vpop.permute.xlu0 %3380
      %3382 = vrot.lane.b32.xlu0 %v3312, 124
      %v3383 = vpop.permute.xlu0 %3382
      %3384 = vrot.lane.b32.xlu0 %v3313, 124
      %v3385 = vpop.permute.xlu0 %3384
      %3386 = vrot.lane.b32.xlu0 %v3314, 124
      %v3387 = vpop.permute.xlu0 %3386
      %3388 = vrot.lane.b32.xlu0 %v3315, 124
      %v3389 = vpop.permute.xlu0 %3388
      %3390 = vrot.lane.b32.xlu0 %v3316, 124
      %v3391 = vpop.permute.xlu0 %3390
      %3392 = vrot.lane.b32.xlu0 %v3317, 124
      %v3393 = vpop.permute.xlu0 %3392
      %3394 = vrot.lane.b32.xlu0 %v3318, 124
      %v3395 = vpop.permute.xlu0 %3394
      %3396 = vrot.lane.b32.xlu0 %v3319, 124
      %v3397 = vpop.permute.xlu0 %3396
      %3398 = vrot.lane.b32.xlu0 %v3320, 124
      %v3399 = vpop.permute.xlu0 %3398
      %3400 = vrot.lane.b32.xlu0 %v3321, 124
      %v3401 = vpop.permute.xlu0 %3400
      %3402 = vrot.lane.b32.xlu0 %v3322, 124
      %v3403 = vpop.permute.xlu0 %3402
      %3404 = vrot.lane.b32.xlu0 %v3323, 124
      %v3405 = vpop.permute.xlu0 %3404
      %3406 = vrot.lane.b32.xlu0 %v3324, 124
      %v3407 = vpop.permute.xlu0 %3406
      %3408 = vrot.lane.b32.xlu0 %v3325, 124
      %v3409 = vpop.permute.xlu0 %3408
      %3410 = vrot.lane.b32.xlu0 %v3326, 124
      %v3411 = vpop.permute.xlu0 %3410
      %3412 = vrot.lane.b32.xlu0 %v3327, 124
      %v3413 = vpop.permute.xlu0 %3412
      %3414 = vrot.lane.b32.xlu0 %v3328, 124
      %v3415 = vpop.permute.xlu0 %3414
      %3416 = vrot.lane.b32.xlu0 %v3329, 124
      %v3417 = vpop.permute.xlu0 %3416
      %3418 = vrot.lane.b32.xlu0 %v3330, 124
      %v3419 = vpop.permute.xlu0 %3418
      %3420 = vrot.lane.b32.xlu0 %v3331, 124
      %v3421 = vpop.permute.xlu0 %3420
      %3422 = vrot.lane.b32.xlu0 %v3332, 124
      %v3423 = vpop.permute.xlu0 %3422
      %3424 = vrot.lane.b32.xlu0 %v3333, 124
      %v3425 = vpop.permute.xlu0 %3424
      %3426 = vrot.lane.b32.xlu0 %v3334, 124
      %v3427 = vpop.permute.xlu0 %3426
      %3428 = vrot.lane.b32.xlu0 %v3335, 124
      %v3429 = vpop.permute.xlu0 %3428
      %3430 = vrot.lane.b32.xlu0 %v3336, 124
      %v3431 = vpop.permute.xlu0 %3430
      %3432 = vrot.lane.b32.xlu0 %v3337, 124
      %v3433 = vpop.permute.xlu0 %3432
      %v3466 = vadd.f32 %v3114, %v3371
      %v3467 = vadd.f32 %v3115, %v3373
      %v3468 = vadd.f32 %v3116, %v3375
      %v3469 = vadd.f32 %v3117, %v3377
      %v3470 = vadd.f32 %v3118, %v3379
      %v3471 = vadd.f32 %v3119, %v3381
      %v3472 = vadd.f32 %v3120, %v3383
      %v3473 = vadd.f32 %v3121, %v3385
      %v3474 = vadd.f32 %v3122, %v3387
      %v3475 = vadd.f32 %v3123, %v3389
      %v3476 = vadd.f32 %v3124, %v3391
      %v3477 = vadd.f32 %v3125, %v3393
      %v3478 = vadd.f32 %v3126, %v3395
      %v3479 = vadd.f32 %v3127, %v3397
      %v3480 = vadd.f32 %v3128, %v3399
      %v3481 = vadd.f32 %v3129, %v3401
      %v3482 = vadd.f32 %v3130, %v3403
      %v3483 = vadd.f32 %v3131, %v3405
      %v3484 = vadd.f32 %v3132, %v3407
      %v3485 = vadd.f32 %v3133, %v3409
      %v3486 = vadd.f32 %v3134, %v3411
      %v3487 = vadd.f32 %v3135, %v3413
      %v3488 = vadd.f32 %v3136, %v3415
      %v3489 = vadd.f32 %v3137, %v3417
      %v3490 = vadd.f32 %v3138, %v3419
      %v3491 = vadd.f32 %v3139, %v3421
      %v3492 = vadd.f32 %v3140, %v3423
      %v3493 = vadd.f32 %v3141, %v3425
      %v3494 = vadd.f32 %v3142, %v3427
      %v3495 = vadd.f32 %v3143, %v3429
      %v3496 = vadd.f32 %v3144, %v3431
      %v3497 = vadd.f32 %v3145, %v3433
      %3498 = vrot.lane.b32.xlu0 %v3163, 28
      %v3499 = vpop.permute.xlu0 %3498
      %3500 = vrot.lane.b32.xlu0 %v3165, 28
      %v3501 = vpop.permute.xlu0 %3500
      %3502 = vrot.lane.b32.xlu0 %v3167, 28
      %v3503 = vpop.permute.xlu0 %3502
      %3504 = vrot.lane.b32.xlu0 %v3169, 28
      %v3505 = vpop.permute.xlu0 %3504
      %3506 = vrot.lane.b32.xlu0 %v3171, 28
      %v3507 = vpop.permute.xlu0 %3506
      %3508 = vrot.lane.b32.xlu0 %v3173, 28
      %v3509 = vpop.permute.xlu0 %3508
      %3510 = vrot.lane.b32.xlu0 %v3175, 28
      %v3511 = vpop.permute.xlu0 %3510
      %3512 = vrot.lane.b32.xlu0 %v3177, 28
      %v3513 = vpop.permute.xlu0 %3512
      %3514 = vrot.lane.b32.xlu0 %v3179, 28
      %v3515 = vpop.permute.xlu0 %3514
      %3516 = vrot.lane.b32.xlu0 %v3181, 28
      %v3517 = vpop.permute.xlu0 %3516
      %3518 = vrot.lane.b32.xlu0 %v3183, 28
      %v3519 = vpop.permute.xlu0 %3518
      %3520 = vrot.lane.b32.xlu0 %v3185, 28
      %v3521 = vpop.permute.xlu0 %3520
      %3522 = vrot.lane.b32.xlu0 %v3187, 28
      %v3523 = vpop.permute.xlu0 %3522
      %3524 = vrot.lane.b32.xlu0 %v3189, 28
      %v3525 = vpop.permute.xlu0 %3524
      %3526 = vrot.lane.b32.xlu0 %v3191, 28
      %v3527 = vpop.permute.xlu0 %3526
      %3528 = vrot.lane.b32.xlu0 %v3193, 28
      %v3529 = vpop.permute.xlu0 %3528
      %3530 = vrot.lane.b32.xlu0 %v3195, 28
      %v3531 = vpop.permute.xlu0 %3530
      %3532 = vrot.lane.b32.xlu0 %v3197, 28
      %v3533 = vpop.permute.xlu0 %3532
      %3534 = vrot.lane.b32.xlu0 %v3199, 28
      %v3535 = vpop.permute.xlu0 %3534
      %3536 = vrot.lane.b32.xlu0 %v3201, 28
      %v3537 = vpop.permute.xlu0 %3536
      %3538 = vrot.lane.b32.xlu0 %v3203, 28
      %v3539 = vpop.permute.xlu0 %3538
      %3540 = vrot.lane.b32.xlu0 %v3205, 28
      %v3541 = vpop.permute.xlu0 %3540
      %3542 = vrot.lane.b32.xlu0 %v3207, 28
      %v3543 = vpop.permute.xlu0 %3542
      %3544 = vrot.lane.b32.xlu0 %v3209, 28
      %v3545 = vpop.permute.xlu0 %3544
      %3546 = vrot.lane.b32.xlu0 %v3147, 28
      %v3547 = vpop.permute.xlu0 %3546
      %3548 = vrot.lane.b32.xlu0 %v3149, 28
      %v3549 = vpop.permute.xlu0 %3548
      %3550 = vrot.lane.b32.xlu0 %v3151, 28
      %v3551 = vpop.permute.xlu0 %3550
      %3552 = vrot.lane.b32.xlu0 %v3153, 28
      %v3553 = vpop.permute.xlu0 %3552
      %3554 = vrot.lane.b32.xlu0 %v3155, 28
      %v3555 = vpop.permute.xlu0 %3554
      %3556 = vrot.lane.b32.xlu0 %v3157, 28
      %v3557 = vpop.permute.xlu0 %3556
      %3558 = vrot.lane.b32.xlu0 %v3159, 28
      %v3559 = vpop.permute.xlu0 %3558
      %3560 = vrot.lane.b32.xlu0 %v3161, 28
      %v3561 = vpop.permute.xlu0 %3560
      %v3594 = vmul.f32 %v1851, %v3499
      %v3595 = vmul.f32 %v1853, %v3501
      %v3596 = vmul.f32 %v1856, %v3503
      %v3597 = vmul.f32 %v1858, %v3505
      %v3598 = vmul.f32 %v1861, %v3507
      %v3599 = vmul.f32 %v1863, %v3509
      %v3600 = vmul.f32 %v1866, %v3511
      %v3601 = vmul.f32 %v1868, %v3513
      %v3602 = vmul.f32 %v1871, %v3515
      %v3603 = vmul.f32 %v1873, %v3517
      %v3604 = vmul.f32 %v1876, %v3519
      %v3605 = vmul.f32 %v1878, %v3521
      %v3606 = vmul.f32 %v1881, %v3523
      %v3607 = vmul.f32 %v1883, %v3525
      %v3608 = vmul.f32 %v1886, %v3527
      %v3609 = vmul.f32 %v1888, %v3529
      %v3610 = vmul.f32 %v1891, %v3531
      %v3611 = vmul.f32 %v1893, %v3533
      %v3612 = vmul.f32 %v1896, %v3535
      %v3613 = vmul.f32 %v1898, %v3537
      %v3614 = vmul.f32 %v1901, %v3539
      %v3615 = vmul.f32 %v1903, %v3541
      %v3616 = vmul.f32 %v1906, %v3543
      %v3617 = vmul.f32 %v1908, %v3545
      %v3618 = vmul.f32 %v1911, %v3547
      %v3619 = vmul.f32 %v1913, %v3549
      %v3620 = vmul.f32 %v1916, %v3551
      %v3621 = vmul.f32 %v1918, %v3553
      %v3622 = vmul.f32 %v1921, %v3555
      %v3623 = vmul.f32 %v1923, %v3557
      %v3624 = vmul.f32 %v1926, %v3559
      %v3625 = vmul.f32 %v1928, %v3561
      %3658 = vrot.lane.b32.xlu0 %v3594, 120
      %v3659 = vpop.permute.xlu0 %3658
      %3660 = vrot.lane.b32.xlu0 %v3595, 120
      %v3661 = vpop.permute.xlu0 %3660
      %3662 = vrot.lane.b32.xlu0 %v3596, 120
      %v3663 = vpop.permute.xlu0 %3662
      %3664 = vrot.lane.b32.xlu0 %v3597, 120
      %v3665 = vpop.permute.xlu0 %3664
      %3666 = vrot.lane.b32.xlu0 %v3598, 120
      %v3667 = vpop.permute.xlu0 %3666
      %3668 = vrot.lane.b32.xlu0 %v3599, 120
      %v3669 = vpop.permute.xlu0 %3668
      %3670 = vrot.lane.b32.xlu0 %v3600, 120
      %v3671 = vpop.permute.xlu0 %3670
      %3672 = vrot.lane.b32.xlu0 %v3601, 120
      %v3673 = vpop.permute.xlu0 %3672
      %3674 = vrot.lane.b32.xlu0 %v3602, 120
      %v3675 = vpop.permute.xlu0 %3674
      %3676 = vrot.lane.b32.xlu0 %v3603, 120
      %v3677 = vpop.permute.xlu0 %3676
      %3678 = vrot.lane.b32.xlu0 %v3604, 120
      %v3679 = vpop.permute.xlu0 %3678
      %3680 = vrot.lane.b32.xlu0 %v3605, 120
      %v3681 = vpop.permute.xlu0 %3680
      %3682 = vrot.lane.b32.xlu0 %v3606, 120
      %v3683 = vpop.permute.xlu0 %3682
      %3684 = vrot.lane.b32.xlu0 %v3607, 120
      %v3685 = vpop.permute.xlu0 %3684
      %3686 = vrot.lane.b32.xlu0 %v3608, 120
      %v3687 = vpop.permute.xlu0 %3686
      %3688 = vrot.lane.b32.xlu0 %v3609, 120
      %v3689 = vpop.permute.xlu0 %3688
      %3690 = vrot.lane.b32.xlu0 %v3610, 120
      %v3691 = vpop.permute.xlu0 %3690
      %3692 = vrot.lane.b32.xlu0 %v3611, 120
      %v3693 = vpop.permute.xlu0 %3692
      %3694 = vrot.lane.b32.xlu0 %v3612, 120
      %v3695 = vpop.permute.xlu0 %3694
      %3696 = vrot.lane.b32.xlu0 %v3613, 120
      %v3697 = vpop.permute.xlu0 %3696
      %3698 = vrot.lane.b32.xlu0 %v3614, 120
      %v3699 = vpop.permute.xlu0 %3698
      %3700 = vrot.lane.b32.xlu0 %v3615, 120
      %v3701 = vpop.permute.xlu0 %3700
      %3702 = vrot.lane.b32.xlu0 %v3616, 120
      %v3703 = vpop.permute.xlu0 %3702
      %3704 = vrot.lane.b32.xlu0 %v3617, 120
      %v3705 = vpop.permute.xlu0 %3704
      %3706 = vrot.lane.b32.xlu0 %v3618, 120
      %v3707 = vpop.permute.xlu0 %3706
      %3708 = vrot.lane.b32.xlu0 %v3619, 120
      %v3709 = vpop.permute.xlu0 %3708
      %3710 = vrot.lane.b32.xlu0 %v3620, 120
      %v3711 = vpop.permute.xlu0 %3710
      %3712 = vrot.lane.b32.xlu0 %v3621, 120
      %v3713 = vpop.permute.xlu0 %3712
      %3714 = vrot.lane.b32.xlu0 %v3622, 120
      %v3715 = vpop.permute.xlu0 %3714
      %3716 = vrot.lane.b32.xlu0 %v3623, 120
      %v3717 = vpop.permute.xlu0 %3716
      %3718 = vrot.lane.b32.xlu0 %v3624, 120
      %v3719 = vpop.permute.xlu0 %3718
      %3720 = vrot.lane.b32.xlu0 %v3625, 120
      %v3721 = vpop.permute.xlu0 %3720
      %v3754 = vadd.f32 %v3466, %v3659
      %v3755 = vadd.f32 %v3467, %v3661
      %v3756 = vadd.f32 %v3468, %v3663
      %v3757 = vadd.f32 %v3469, %v3665
      %v3758 = vadd.f32 %v3470, %v3667
      %v3759 = vadd.f32 %v3471, %v3669
      %v3760 = vadd.f32 %v3472, %v3671
      %v3761 = vadd.f32 %v3473, %v3673
      %v3762 = vadd.f32 %v3474, %v3675
      %v3763 = vadd.f32 %v3475, %v3677
      %v3764 = vadd.f32 %v3476, %v3679
      %v3765 = vadd.f32 %v3477, %v3681
      %v3766 = vadd.f32 %v3478, %v3683
      %v3767 = vadd.f32 %v3479, %v3685
      %v3768 = vadd.f32 %v3480, %v3687
      %v3769 = vadd.f32 %v3481, %v3689
      %v3770 = vadd.f32 %v3482, %v3691
      %v3771 = vadd.f32 %v3483, %v3693
      %v3772 = vadd.f32 %v3484, %v3695
      %v3773 = vadd.f32 %v3485, %v3697
      %v3774 = vadd.f32 %v3486, %v3699
      %v3775 = vadd.f32 %v3487, %v3701
      %v3776 = vadd.f32 %v3488, %v3703
      %v3777 = vadd.f32 %v3489, %v3705
      %v3778 = vadd.f32 %v3490, %v3707
      %v3779 = vadd.f32 %v3491, %v3709
      %v3780 = vadd.f32 %v3492, %v3711
      %v3781 = vadd.f32 %v3493, %v3713
      %v3782 = vadd.f32 %v3494, %v3715
      %v3783 = vadd.f32 %v3495, %v3717
      %v3784 = vadd.f32 %v3496, %v3719
      %v3785 = vadd.f32 %v3497, %v3721
      %3786 = vrot.lane.b32.xlu0 %v3179, 32
      %v3787 = vpop.permute.xlu0 %3786
      %3788 = vrot.lane.b32.xlu0 %v3181, 32
      %v3789 = vpop.permute.xlu0 %3788
      %3790 = vrot.lane.b32.xlu0 %v3183, 32
      %v3791 = vpop.permute.xlu0 %3790
      %3792 = vrot.lane.b32.xlu0 %v3185, 32
      %v3793 = vpop.permute.xlu0 %3792
      %3794 = vrot.lane.b32.xlu0 %v3187, 32
      %v3795 = vpop.permute.xlu0 %3794
      %3796 = vrot.lane.b32.xlu0 %v3189, 32
      %v3797 = vpop.permute.xlu0 %3796
      %3798 = vrot.lane.b32.xlu0 %v3191, 32
      %v3799 = vpop.permute.xlu0 %3798
      %3800 = vrot.lane.b32.xlu0 %v3193, 32
      %v3801 = vpop.permute.xlu0 %3800
      %3802 = vrot.lane.b32.xlu0 %v3195, 32
      %v3803 = vpop.permute.xlu0 %3802
      %3804 = vrot.lane.b32.xlu0 %v3197, 32
      %v3805 = vpop.permute.xlu0 %3804
      %3806 = vrot.lane.b32.xlu0 %v3199, 32
      %v3807 = vpop.permute.xlu0 %3806
      %3808 = vrot.lane.b32.xlu0 %v3201, 32
      %v3809 = vpop.permute.xlu0 %3808
      %3810 = vrot.lane.b32.xlu0 %v3203, 32
      %v3811 = vpop.permute.xlu0 %3810
      %3812 = vrot.lane.b32.xlu0 %v3205, 32
      %v3813 = vpop.permute.xlu0 %3812
      %3814 = vrot.lane.b32.xlu0 %v3207, 32
      %v3815 = vpop.permute.xlu0 %3814
      %3816 = vrot.lane.b32.xlu0 %v3209, 32
      %v3817 = vpop.permute.xlu0 %3816
      %3818 = vrot.lane.b32.xlu0 %v3147, 32
      %v3819 = vpop.permute.xlu0 %3818
      %3820 = vrot.lane.b32.xlu0 %v3149, 32
      %v3821 = vpop.permute.xlu0 %3820
      %3822 = vrot.lane.b32.xlu0 %v3151, 32
      %v3823 = vpop.permute.xlu0 %3822
      %3824 = vrot.lane.b32.xlu0 %v3153, 32
      %v3825 = vpop.permute.xlu0 %3824
      %3826 = vrot.lane.b32.xlu0 %v3155, 32
      %v3827 = vpop.permute.xlu0 %3826
      %3828 = vrot.lane.b32.xlu0 %v3157, 32
      %v3829 = vpop.permute.xlu0 %3828
      %3830 = vrot.lane.b32.xlu0 %v3159, 32
      %v3831 = vpop.permute.xlu0 %3830
      %3832 = vrot.lane.b32.xlu0 %v3161, 32
      %v3833 = vpop.permute.xlu0 %3832
      %3834 = vrot.lane.b32.xlu0 %v3163, 32
      %v3835 = vpop.permute.xlu0 %3834
      %3836 = vrot.lane.b32.xlu0 %v3165, 32
      %v3837 = vpop.permute.xlu0 %3836
      %3838 = vrot.lane.b32.xlu0 %v3167, 32
      %v3839 = vpop.permute.xlu0 %3838
      %3840 = vrot.lane.b32.xlu0 %v3169, 32
      %v3841 = vpop.permute.xlu0 %3840
      %3842 = vrot.lane.b32.xlu0 %v3171, 32
      %v3843 = vpop.permute.xlu0 %3842
      %3844 = vrot.lane.b32.xlu0 %v3173, 32
      %v3845 = vpop.permute.xlu0 %3844
      %3846 = vrot.lane.b32.xlu0 %v3175, 32
      %v3847 = vpop.permute.xlu0 %3846
      %3848 = vrot.lane.b32.xlu0 %v3177, 32
      %v3849 = vpop.permute.xlu0 %3848
      %v3882 = vmul.f32 %v1851, %v3787
      %v3883 = vmul.f32 %v1853, %v3789
      %v3884 = vmul.f32 %v1856, %v3791
      %v3885 = vmul.f32 %v1858, %v3793
      %v3886 = vmul.f32 %v1861, %v3795
      %v3887 = vmul.f32 %v1863, %v3797
      %v3888 = vmul.f32 %v1866, %v3799
      %v3889 = vmul.f32 %v1868, %v3801
      %v3890 = vmul.f32 %v1871, %v3803
      %v3891 = vmul.f32 %v1873, %v3805
      %v3892 = vmul.f32 %v1876, %v3807
      %v3893 = vmul.f32 %v1878, %v3809
      %v3894 = vmul.f32 %v1881, %v3811
      %v3895 = vmul.f32 %v1883, %v3813
      %v3896 = vmul.f32 %v1886, %v3815
      %v3897 = vmul.f32 %v1888, %v3817
      %v3898 = vmul.f32 %v1891, %v3819
      %v3899 = vmul.f32 %v1893, %v3821
      %v3900 = vmul.f32 %v1896, %v3823
      %v3901 = vmul.f32 %v1898, %v3825
      %v3902 = vmul.f32 %v1901, %v3827
      %v3903 = vmul.f32 %v1903, %v3829
      %v3904 = vmul.f32 %v1906, %v3831
      %v3905 = vmul.f32 %v1908, %v3833
      %v3906 = vmul.f32 %v1911, %v3835
      %v3907 = vmul.f32 %v1913, %v3837
      %v3908 = vmul.f32 %v1916, %v3839
      %v3909 = vmul.f32 %v1918, %v3841
      %v3910 = vmul.f32 %v1921, %v3843
      %v3911 = vmul.f32 %v1923, %v3845
      %v3912 = vmul.f32 %v1926, %v3847
      %v3913 = vmul.f32 %v1928, %v3849
      %3946 = vrot.lane.b32.xlu0 %v3882, 116
      %v3947 = vpop.permute.xlu0 %3946
      %3948 = vrot.lane.b32.xlu0 %v3883, 116
      %v3949 = vpop.permute.xlu0 %3948
      %3950 = vrot.lane.b32.xlu0 %v3884, 116
      %v3951 = vpop.permute.xlu0 %3950
      %3952 = vrot.lane.b32.xlu0 %v3885, 116
      %v3953 = vpop.permute.xlu0 %3952
      %3954 = vrot.lane.b32.xlu0 %v3886, 116
      %v3955 = vpop.permute.xlu0 %3954
      %3956 = vrot.lane.b32.xlu0 %v3887, 116
      %v3957 = vpop.permute.xlu0 %3956
      %3958 = vrot.lane.b32.xlu0 %v3888, 116
      %v3959 = vpop.permute.xlu0 %3958
      %3960 = vrot.lane.b32.xlu0 %v3889, 116
      %v3961 = vpop.permute.xlu0 %3960
      %3962 = vrot.lane.b32.xlu0 %v3890, 116
      %v3963 = vpop.permute.xlu0 %3962
      %3964 = vrot.lane.b32.xlu0 %v3891, 116
      %v3965 = vpop.permute.xlu0 %3964
      %3966 = vrot.lane.b32.xlu0 %v3892, 116
      %v3967 = vpop.permute.xlu0 %3966
      %3968 = vrot.lane.b32.xlu0 %v3893, 116
      %v3969 = vpop.permute.xlu0 %3968
      %3970 = vrot.lane.b32.xlu0 %v3894, 116
      %v3971 = vpop.permute.xlu0 %3970
      %3972 = vrot.lane.b32.xlu0 %v3895, 116
      %v3973 = vpop.permute.xlu0 %3972
      %3974 = vrot.lane.b32.xlu0 %v3896, 116
      %v3975 = vpop.permute.xlu0 %3974
      %3976 = vrot.lane.b32.xlu0 %v3897, 116
      %v3977 = vpop.permute.xlu0 %3976
      %3978 = vrot.lane.b32.xlu0 %v3898, 116
      %v3979 = vpop.permute.xlu0 %3978
      %3980 = vrot.lane.b32.xlu0 %v3899, 116
      %v3981 = vpop.permute.xlu0 %3980
      %3982 = vrot.lane.b32.xlu0 %v3900, 116
      %v3983 = vpop.permute.xlu0 %3982
      %3984 = vrot.lane.b32.xlu0 %v3901, 116
      %v3985 = vpop.permute.xlu0 %3984
      %3986 = vrot.lane.b32.xlu0 %v3902, 116
      %v3987 = vpop.permute.xlu0 %3986
      %3988 = vrot.lane.b32.xlu0 %v3903, 116
      %v3989 = vpop.permute.xlu0 %3988
      %3990 = vrot.lane.b32.xlu0 %v3904, 116
      %v3991 = vpop.permute.xlu0 %3990
      %3992 = vrot.lane.b32.xlu0 %v3905, 116
      %v3993 = vpop.permute.xlu0 %3992
      %3994 = vrot.lane.b32.xlu0 %v3906, 116
      %v3995 = vpop.permute.xlu0 %3994
      %3996 = vrot.lane.b32.xlu0 %v3907, 116
      %v3997 = vpop.permute.xlu0 %3996
      %3998 = vrot.lane.b32.xlu0 %v3908, 116
      %v3999 = vpop.permute.xlu0 %3998
      %4000 = vrot.lane.b32.xlu0 %v3909, 116
      %v4001 = vpop.permute.xlu0 %4000
      %4002 = vrot.lane.b32.xlu0 %v3910, 116
      %v4003 = vpop.permute.xlu0 %4002
      %4004 = vrot.lane.b32.xlu0 %v3911, 116
      %v4005 = vpop.permute.xlu0 %4004
      %4006 = vrot.lane.b32.xlu0 %v3912, 116
      %v4007 = vpop.permute.xlu0 %4006
      %4008 = vrot.lane.b32.xlu0 %v3913, 116
      %v4009 = vpop.permute.xlu0 %4008
      %v4042 = vadd.f32 %v3754, %v3947
      %v4043 = vadd.f32 %v3755, %v3949
      %v4044 = vadd.f32 %v3756, %v3951
      %v4045 = vadd.f32 %v3757, %v3953
      %v4046 = vadd.f32 %v3758, %v3955
      %v4047 = vadd.f32 %v3759, %v3957
      %v4048 = vadd.f32 %v3760, %v3959
      %v4049 = vadd.f32 %v3761, %v3961
      %v4050 = vadd.f32 %v3762, %v3963
      %v4051 = vadd.f32 %v3763, %v3965
      %v4052 = vadd.f32 %v3764, %v3967
      %v4053 = vadd.f32 %v3765, %v3969
      %v4054 = vadd.f32 %v3766, %v3971
      %v4055 = vadd.f32 %v3767, %v3973
      %v4056 = vadd.f32 %v3768, %v3975
      %v4057 = vadd.f32 %v3769, %v3977
      %v4058 = vadd.f32 %v3770, %v3979
      %v4059 = vadd.f32 %v3771, %v3981
      %v4060 = vadd.f32 %v3772, %v3983
      %v4061 = vadd.f32 %v3773, %v3985
      %v4062 = vadd.f32 %v3774, %v3987
      %v4063 = vadd.f32 %v3775, %v3989
      %v4064 = vadd.f32 %v3776, %v3991
      %v4065 = vadd.f32 %v3777, %v3993
      %v4066 = vadd.f32 %v3778, %v3995
      %v4067 = vadd.f32 %v3779, %v3997
      %v4068 = vadd.f32 %v3780, %v3999
      %v4069 = vadd.f32 %v3781, %v4001
      %v4070 = vadd.f32 %v3782, %v4003
      %v4071 = vadd.f32 %v3783, %v4005
      %v4072 = vadd.f32 %v3784, %v4007
      %v4073 = vadd.f32 %v3785, %v4009
      %4074 = vrot.lane.b32.xlu0 %v1851, 20
      %v4075 = vpop.permute.xlu0 %4074
      %4076 = vrot.lane.b32.xlu0 %v1853, 20
      %v4077 = vpop.permute.xlu0 %4076
      %4078 = vrot.lane.b32.xlu0 %v1856, 20
      %v4079 = vpop.permute.xlu0 %4078
      %4080 = vrot.lane.b32.xlu0 %v1858, 20
      %v4081 = vpop.permute.xlu0 %4080
      %4082 = vrot.lane.b32.xlu0 %v1861, 20
      %v4083 = vpop.permute.xlu0 %4082
      %4084 = vrot.lane.b32.xlu0 %v1863, 20
      %v4085 = vpop.permute.xlu0 %4084
      %4086 = vrot.lane.b32.xlu0 %v1866, 20
      %v4087 = vpop.permute.xlu0 %4086
      %4088 = vrot.lane.b32.xlu0 %v1868, 20
      %v4089 = vpop.permute.xlu0 %4088
      %4090 = vrot.lane.b32.xlu0 %v1871, 20
      %v4091 = vpop.permute.xlu0 %4090
      %4092 = vrot.lane.b32.xlu0 %v1873, 20
      %v4093 = vpop.permute.xlu0 %4092
      %4094 = vrot.lane.b32.xlu0 %v1876, 20
      %v4095 = vpop.permute.xlu0 %4094
      %4096 = vrot.lane.b32.xlu0 %v1878, 20
      %v4097 = vpop.permute.xlu0 %4096
      %4098 = vrot.lane.b32.xlu0 %v1881, 20
      %v4099 = vpop.permute.xlu0 %4098
      %4100 = vrot.lane.b32.xlu0 %v1883, 20
      %v4101 = vpop.permute.xlu0 %4100
      %4102 = vrot.lane.b32.xlu0 %v1886, 20
      %v4103 = vpop.permute.xlu0 %4102
      %4104 = vrot.lane.b32.xlu0 %v1888, 20
      %v4105 = vpop.permute.xlu0 %4104
      %4106 = vrot.lane.b32.xlu0 %v1891, 20
      %v4107 = vpop.permute.xlu0 %4106
      %4108 = vrot.lane.b32.xlu0 %v1893, 20
      %v4109 = vpop.permute.xlu0 %4108
      %4110 = vrot.lane.b32.xlu0 %v1896, 20
      %v4111 = vpop.permute.xlu0 %4110
      %4112 = vrot.lane.b32.xlu0 %v1898, 20
      %v4113 = vpop.permute.xlu0 %4112
      %4114 = vrot.lane.b32.xlu0 %v1901, 20
      %v4115 = vpop.permute.xlu0 %4114
      %4116 = vrot.lane.b32.xlu0 %v1903, 20
      %v4117 = vpop.permute.xlu0 %4116
      %4118 = vrot.lane.b32.xlu0 %v1906, 20
      %v4119 = vpop.permute.xlu0 %4118
      %4120 = vrot.lane.b32.xlu0 %v1908, 20
      %v4121 = vpop.permute.xlu0 %4120
      %4122 = vrot.lane.b32.xlu0 %v1911, 20
      %v4123 = vpop.permute.xlu0 %4122
      %4124 = vrot.lane.b32.xlu0 %v1913, 20
      %v4125 = vpop.permute.xlu0 %4124
      %4126 = vrot.lane.b32.xlu0 %v1916, 20
      %v4127 = vpop.permute.xlu0 %4126
      %4128 = vrot.lane.b32.xlu0 %v1918, 20
      %v4129 = vpop.permute.xlu0 %4128
      %4130 = vrot.lane.b32.xlu0 %v1921, 20
      %v4131 = vpop.permute.xlu0 %4130
      %4132 = vrot.lane.b32.xlu0 %v1923, 20
      %v4133 = vpop.permute.xlu0 %4132
      %4134 = vrot.lane.b32.xlu0 %v1926, 20
      %v4135 = vpop.permute.xlu0 %4134
      %4136 = vrot.lane.b32.xlu0 %v1928, 20
      %v4137 = vpop.permute.xlu0 %4136
      %v4170 = vadd.f32 %v4042, %v4075
      %v4171 = vadd.f32 %v4043, %v4077
      %v4172 = vadd.f32 %v4044, %v4079
      %v4173 = vadd.f32 %v4045, %v4081
      %v4174 = vadd.f32 %v4046, %v4083
      %v4175 = vadd.f32 %v4047, %v4085
      %v4176 = vadd.f32 %v4048, %v4087
      %v4177 = vadd.f32 %v4049, %v4089
      %v4178 = vadd.f32 %v4050, %v4091
      %v4179 = vadd.f32 %v4051, %v4093
      %v4180 = vadd.f32 %v4052, %v4095
      %v4181 = vadd.f32 %v4053, %v4097
      %v4182 = vadd.f32 %v4054, %v4099
      %v4183 = vadd.f32 %v4055, %v4101
      %v4184 = vadd.f32 %v4056, %v4103
      %v4185 = vadd.f32 %v4057, %v4105
      %v4186 = vadd.f32 %v4058, %v4107
      %v4187 = vadd.f32 %v4059, %v4109
      %v4188 = vadd.f32 %v4060, %v4111
      %v4189 = vadd.f32 %v4061, %v4113
      %v4190 = vadd.f32 %v4062, %v4115
      %v4191 = vadd.f32 %v4063, %v4117
      %v4192 = vadd.f32 %v4064, %v4119
      %v4193 = vadd.f32 %v4065, %v4121
      %v4194 = vadd.f32 %v4066, %v4123
      %v4195 = vadd.f32 %v4067, %v4125
      %v4196 = vadd.f32 %v4068, %v4127
      %v4197 = vadd.f32 %v4069, %v4129
      %v4198 = vadd.f32 %v4070, %v4131
      %v4199 = vadd.f32 %v4071, %v4133
      %v4200 = vadd.f32 %v4072, %v4135
      %v4201 = vadd.f32 %v4073, %v4137
      %4234 = vrot.lane.b32.xlu0 %v4170, 16
      %v4235 = vpop.permute.xlu0 %4234
      %4236 = vrot.lane.b32.xlu0 %v4171, 16
      %v4237 = vpop.permute.xlu0 %4236
      %4238 = vrot.lane.b32.xlu0 %v4172, 16
      %v4239 = vpop.permute.xlu0 %4238
      %4240 = vrot.lane.b32.xlu0 %v4173, 16
      %v4241 = vpop.permute.xlu0 %4240
      %4242 = vrot.lane.b32.xlu0 %v4174, 16
      %v4243 = vpop.permute.xlu0 %4242
      %4244 = vrot.lane.b32.xlu0 %v4175, 16
      %v4245 = vpop.permute.xlu0 %4244
      %4246 = vrot.lane.b32.xlu0 %v4176, 16
      %v4247 = vpop.permute.xlu0 %4246
      %4248 = vrot.lane.b32.xlu0 %v4177, 16
      %v4249 = vpop.permute.xlu0 %4248
      %4250 = vrot.lane.b32.xlu0 %v4178, 16
      %v4251 = vpop.permute.xlu0 %4250
      %4252 = vrot.lane.b32.xlu0 %v4179, 16
      %v4253 = vpop.permute.xlu0 %4252
      %4254 = vrot.lane.b32.xlu0 %v4180, 16
      %v4255 = vpop.permute.xlu0 %4254
      %4256 = vrot.lane.b32.xlu0 %v4181, 16
      %v4257 = vpop.permute.xlu0 %4256
      %4258 = vrot.lane.b32.xlu0 %v4182, 16
      %v4259 = vpop.permute.xlu0 %4258
      %4260 = vrot.lane.b32.xlu0 %v4183, 16
      %v4261 = vpop.permute.xlu0 %4260
      %4262 = vrot.lane.b32.xlu0 %v4184, 16
      %v4263 = vpop.permute.xlu0 %4262
      %4264 = vrot.lane.b32.xlu0 %v4185, 16
      %v4265 = vpop.permute.xlu0 %4264
      %4266 = vrot.lane.b32.xlu0 %v4186, 16
      %v4267 = vpop.permute.xlu0 %4266
      %4268 = vrot.lane.b32.xlu0 %v4187, 16
      %v4269 = vpop.permute.xlu0 %4268
      %4270 = vrot.lane.b32.xlu0 %v4188, 16
      %v4271 = vpop.permute.xlu0 %4270
      %4272 = vrot.lane.b32.xlu0 %v4189, 16
      %v4273 = vpop.permute.xlu0 %4272
      %4274 = vrot.lane.b32.xlu0 %v4190, 16
      %v4275 = vpop.permute.xlu0 %4274
      %4276 = vrot.lane.b32.xlu0 %v4191, 16
      %v4277 = vpop.permute.xlu0 %4276
      %4278 = vrot.lane.b32.xlu0 %v4192, 16
      %v4279 = vpop.permute.xlu0 %4278
      %4280 = vrot.lane.b32.xlu0 %v4193, 16
      %v4281 = vpop.permute.xlu0 %4280
      %4282 = vrot.lane.b32.xlu0 %v4194, 16
      %v4283 = vpop.permute.xlu0 %4282
      %4284 = vrot.lane.b32.xlu0 %v4195, 16
      %v4285 = vpop.permute.xlu0 %4284
      %4286 = vrot.lane.b32.xlu0 %v4196, 16
      %v4287 = vpop.permute.xlu0 %4286
      %4288 = vrot.lane.b32.xlu0 %v4197, 16
      %v4289 = vpop.permute.xlu0 %4288
      %4290 = vrot.lane.b32.xlu0 %v4198, 16
      %v4291 = vpop.permute.xlu0 %4290
      %4292 = vrot.lane.b32.xlu0 %v4199, 16
      %v4293 = vpop.permute.xlu0 %4292
      %4294 = vrot.lane.b32.xlu0 %v4200, 16
      %v4295 = vpop.permute.xlu0 %4294
      %4296 = vrot.lane.b32.xlu0 %v4201, 16
      %v4297 = vpop.permute.xlu0 %4296
      %v4330 = vmul.f32 %v1851, %v4235
      %v4331 = vmul.f32 %v1853, %v4237
      %v4332 = vmul.f32 %v1856, %v4239
      %v4333 = vmul.f32 %v1858, %v4241
      %v4334 = vmul.f32 %v1861, %v4243
      %v4335 = vmul.f32 %v1863, %v4245
      %v4336 = vmul.f32 %v1866, %v4247
      %v4337 = vmul.f32 %v1868, %v4249
      %v4338 = vmul.f32 %v1871, %v4251
      %v4339 = vmul.f32 %v1873, %v4253
      %v4340 = vmul.f32 %v1876, %v4255
      %v4341 = vmul.f32 %v1878, %v4257
      %v4342 = vmul.f32 %v1881, %v4259
      %v4343 = vmul.f32 %v1883, %v4261
      %v4344 = vmul.f32 %v1886, %v4263
      %v4345 = vmul.f32 %v1888, %v4265
      %v4346 = vmul.f32 %v1891, %v4267
      %v4347 = vmul.f32 %v1893, %v4269
      %v4348 = vmul.f32 %v1896, %v4271
      %v4349 = vmul.f32 %v1898, %v4273
      %v4350 = vmul.f32 %v1901, %v4275
      %v4351 = vmul.f32 %v1903, %v4277
      %v4352 = vmul.f32 %v1906, %v4279
      %v4353 = vmul.f32 %v1908, %v4281
      %v4354 = vmul.f32 %v1911, %v4283
      %v4355 = vmul.f32 %v1913, %v4285
      %v4356 = vmul.f32 %v1916, %v4287
      %v4357 = vmul.f32 %v1918, %v4289
      %v4358 = vmul.f32 %v1921, %v4291
      %v4359 = vmul.f32 %v1923, %v4293
      %v4360 = vmul.f32 %v1926, %v4295
      %v4361 = vmul.f32 %v1928, %v4297
      %4362 = vrot.lane.b32.xlu0 %v4170, 108
      %v4363 = vpop.permute.xlu0 %4362
      %4364 = vrot.lane.b32.xlu0 %v4171, 108
      %v4365 = vpop.permute.xlu0 %4364
      %4366 = vrot.lane.b32.xlu0 %v4172, 108
      %v4367 = vpop.permute.xlu0 %4366
      %4368 = vrot.lane.b32.xlu0 %v4173, 108
      %v4369 = vpop.permute.xlu0 %4368
      %4370 = vrot.lane.b32.xlu0 %v4174, 108
      %v4371 = vpop.permute.xlu0 %4370
      %4372 = vrot.lane.b32.xlu0 %v4175, 108
      %v4373 = vpop.permute.xlu0 %4372
      %4374 = vrot.lane.b32.xlu0 %v4176, 108
      %v4375 = vpop.permute.xlu0 %4374
      %4376 = vrot.lane.b32.xlu0 %v4177, 108
      %v4377 = vpop.permute.xlu0 %4376
      %4378 = vrot.lane.b32.xlu0 %v4178, 108
      %v4379 = vpop.permute.xlu0 %4378
      %4380 = vrot.lane.b32.xlu0 %v4179, 108
      %v4381 = vpop.permute.xlu0 %4380
      %4382 = vrot.lane.b32.xlu0 %v4180, 108
      %v4383 = vpop.permute.xlu0 %4382
      %4384 = vrot.lane.b32.xlu0 %v4181, 108
      %v4385 = vpop.permute.xlu0 %4384
      %4386 = vrot.lane.b32.xlu0 %v4182, 108
      %v4387 = vpop.permute.xlu0 %4386
      %4388 = vrot.lane.b32.xlu0 %v4183, 108
      %v4389 = vpop.permute.xlu0 %4388
      %4390 = vrot.lane.b32.xlu0 %v4184, 108
      %v4391 = vpop.permute.xlu0 %4390
      %4392 = vrot.lane.b32.xlu0 %v4185, 108
      %v4393 = vpop.permute.xlu0 %4392
      %4394 = vrot.lane.b32.xlu0 %v4186, 108
      %v4395 = vpop.permute.xlu0 %4394
      %4396 = vrot.lane.b32.xlu0 %v4187, 108
      %v4397 = vpop.permute.xlu0 %4396
      %4398 = vrot.lane.b32.xlu0 %v4188, 108
      %v4399 = vpop.permute.xlu0 %4398
      %4400 = vrot.lane.b32.xlu0 %v4189, 108
      %v4401 = vpop.permute.xlu0 %4400
      %4402 = vrot.lane.b32.xlu0 %v4190, 108
      %v4403 = vpop.permute.xlu0 %4402
      %4404 = vrot.lane.b32.xlu0 %v4191, 108
      %v4405 = vpop.permute.xlu0 %4404
      %4406 = vrot.lane.b32.xlu0 %v4192, 108
      %v4407 = vpop.permute.xlu0 %4406
      %4408 = vrot.lane.b32.xlu0 %v4193, 108
      %v4409 = vpop.permute.xlu0 %4408
      %4410 = vrot.lane.b32.xlu0 %v4194, 108
      %v4411 = vpop.permute.xlu0 %4410
      %4412 = vrot.lane.b32.xlu0 %v4195, 108
      %v4413 = vpop.permute.xlu0 %4412
      %4414 = vrot.lane.b32.xlu0 %v4196, 108
      %v4415 = vpop.permute.xlu0 %4414
      %4416 = vrot.lane.b32.xlu0 %v4197, 108
      %v4417 = vpop.permute.xlu0 %4416
      %4418 = vrot.lane.b32.xlu0 %v4198, 108
      %v4419 = vpop.permute.xlu0 %4418
      %4420 = vrot.lane.b32.xlu0 %v4199, 108
      %v4421 = vpop.permute.xlu0 %4420
      %4422 = vrot.lane.b32.xlu0 %v4200, 108
      %v4423 = vpop.permute.xlu0 %4422
      %4424 = vrot.lane.b32.xlu0 %v4201, 108
      %v4425 = vpop.permute.xlu0 %4424
      %4426 = vrot.lane.b32.xlu0 %v4371, 40
      %v4427 = vpop.permute.xlu0 %4426
      %4428 = vrot.lane.b32.xlu0 %v4373, 40
      %v4429 = vpop.permute.xlu0 %4428
      %4430 = vrot.lane.b32.xlu0 %v4375, 40
      %v4431 = vpop.permute.xlu0 %4430
      %4432 = vrot.lane.b32.xlu0 %v4377, 40
      %v4433 = vpop.permute.xlu0 %4432
      %4434 = vrot.lane.b32.xlu0 %v4379, 40
      %v4435 = vpop.permute.xlu0 %4434
      %4436 = vrot.lane.b32.xlu0 %v4381, 40
      %v4437 = vpop.permute.xlu0 %4436
      %4438 = vrot.lane.b32.xlu0 %v4383, 40
      %v4439 = vpop.permute.xlu0 %4438
      %4440 = vrot.lane.b32.xlu0 %v4385, 40
      %v4441 = vpop.permute.xlu0 %4440
      %4442 = vrot.lane.b32.xlu0 %v4387, 40
      %v4443 = vpop.permute.xlu0 %4442
      %4444 = vrot.lane.b32.xlu0 %v4389, 40
      %v4445 = vpop.permute.xlu0 %4444
      %4446 = vrot.lane.b32.xlu0 %v4391, 40
      %v4447 = vpop.permute.xlu0 %4446
      %4448 = vrot.lane.b32.xlu0 %v4393, 40
      %v4449 = vpop.permute.xlu0 %4448
      %4450 = vrot.lane.b32.xlu0 %v4395, 40
      %v4451 = vpop.permute.xlu0 %4450
      %4452 = vrot.lane.b32.xlu0 %v4397, 40
      %v4453 = vpop.permute.xlu0 %4452
      %4454 = vrot.lane.b32.xlu0 %v4399, 40
      %v4455 = vpop.permute.xlu0 %4454
      %4456 = vrot.lane.b32.xlu0 %v4401, 40
      %v4457 = vpop.permute.xlu0 %4456
      %4458 = vrot.lane.b32.xlu0 %v4403, 40
      %v4459 = vpop.permute.xlu0 %4458
      %4460 = vrot.lane.b32.xlu0 %v4405, 40
      %v4461 = vpop.permute.xlu0 %4460
      %4462 = vrot.lane.b32.xlu0 %v4407, 40
      %v4463 = vpop.permute.xlu0 %4462
      %4464 = vrot.lane.b32.xlu0 %v4409, 40
      %v4465 = vpop.permute.xlu0 %4464
      %4466 = vrot.lane.b32.xlu0 %v4411, 40
      %v4467 = vpop.permute.xlu0 %4466
      %4468 = vrot.lane.b32.xlu0 %v4413, 40
      %v4469 = vpop.permute.xlu0 %4468
      %4470 = vrot.lane.b32.xlu0 %v4415, 40
      %v4471 = vpop.permute.xlu0 %4470
      %4472 = vrot.lane.b32.xlu0 %v4417, 40
      %v4473 = vpop.permute.xlu0 %4472
      %4474 = vrot.lane.b32.xlu0 %v4419, 40
      %v4475 = vpop.permute.xlu0 %4474
      %4476 = vrot.lane.b32.xlu0 %v4421, 40
      %v4477 = vpop.permute.xlu0 %4476
      %4478 = vrot.lane.b32.xlu0 %v4423, 40
      %v4479 = vpop.permute.xlu0 %4478
      %4480 = vrot.lane.b32.xlu0 %v4425, 40
      %v4481 = vpop.permute.xlu0 %4480
      %4482 = vrot.lane.b32.xlu0 %v4363, 40
      %v4483 = vpop.permute.xlu0 %4482
      %4484 = vrot.lane.b32.xlu0 %v4365, 40
      %v4485 = vpop.permute.xlu0 %4484
      %4486 = vrot.lane.b32.xlu0 %v4367, 40
      %v4487 = vpop.permute.xlu0 %4486
      %4488 = vrot.lane.b32.xlu0 %v4369, 40
      %v4489 = vpop.permute.xlu0 %4488
      %v4522 = vmul.f32 %v1851, %v4427
      %v4523 = vmul.f32 %v1853, %v4429
      %v4524 = vmul.f32 %v1856, %v4431
      %v4525 = vmul.f32 %v1858, %v4433
      %v4526 = vmul.f32 %v1861, %v4435
      %v4527 = vmul.f32 %v1863, %v4437
      %v4528 = vmul.f32 %v1866, %v4439
      %v4529 = vmul.f32 %v1868, %v4441
      %v4530 = vmul.f32 %v1871, %v4443
      %v4531 = vmul.f32 %v1873, %v4445
      %v4532 = vmul.f32 %v1876, %v4447
      %v4533 = vmul.f32 %v1878, %v4449
      %v4534 = vmul.f32 %v1881, %v4451
      %v4535 = vmul.f32 %v1883, %v4453
      %v4536 = vmul.f32 %v1886, %v4455
      %v4537 = vmul.f32 %v1888, %v4457
      %v4538 = vmul.f32 %v1891, %v4459
      %v4539 = vmul.f32 %v1893, %v4461
      %v4540 = vmul.f32 %v1896, %v4463
      %v4541 = vmul.f32 %v1898, %v4465
      %v4542 = vmul.f32 %v1901, %v4467
      %v4543 = vmul.f32 %v1903, %v4469
      %v4544 = vmul.f32 %v1906, %v4471
      %v4545 = vmul.f32 %v1908, %v4473
      %v4546 = vmul.f32 %v1911, %v4475
      %v4547 = vmul.f32 %v1913, %v4477
      %v4548 = vmul.f32 %v1916, %v4479
      %v4549 = vmul.f32 %v1918, %v4481
      %v4550 = vmul.f32 %v1921, %v4483
      %v4551 = vmul.f32 %v1923, %v4485
      %v4552 = vmul.f32 %v1926, %v4487
      %v4553 = vmul.f32 %v1928, %v4489
      %4586 = vrot.lane.b32.xlu0 %v4522, 124
      %v4587 = vpop.permute.xlu0 %4586
      %4588 = vrot.lane.b32.xlu0 %v4523, 124
      %v4589 = vpop.permute.xlu0 %4588
      %4590 = vrot.lane.b32.xlu0 %v4524, 124
      %v4591 = vpop.permute.xlu0 %4590
      %4592 = vrot.lane.b32.xlu0 %v4525, 124
      %v4593 = vpop.permute.xlu0 %4592
      %4594 = vrot.lane.b32.xlu0 %v4526, 124
      %v4595 = vpop.permute.xlu0 %4594
      %4596 = vrot.lane.b32.xlu0 %v4527, 124
      %v4597 = vpop.permute.xlu0 %4596
      %4598 = vrot.lane.b32.xlu0 %v4528, 124
      %v4599 = vpop.permute.xlu0 %4598
      %4600 = vrot.lane.b32.xlu0 %v4529, 124
      %v4601 = vpop.permute.xlu0 %4600
      %4602 = vrot.lane.b32.xlu0 %v4530, 124
      %v4603 = vpop.permute.xlu0 %4602
      %4604 = vrot.lane.b32.xlu0 %v4531, 124
      %v4605 = vpop.permute.xlu0 %4604
      %4606 = vrot.lane.b32.xlu0 %v4532, 124
      %v4607 = vpop.permute.xlu0 %4606
      %4608 = vrot.lane.b32.xlu0 %v4533, 124
      %v4609 = vpop.permute.xlu0 %4608
      %4610 = vrot.lane.b32.xlu0 %v4534, 124
      %v4611 = vpop.permute.xlu0 %4610
      %4612 = vrot.lane.b32.xlu0 %v4535, 124
      %v4613 = vpop.permute.xlu0 %4612
      %4614 = vrot.lane.b32.xlu0 %v4536, 124
      %v4615 = vpop.permute.xlu0 %4614
      %4616 = vrot.lane.b32.xlu0 %v4537, 124
      %v4617 = vpop.permute.xlu0 %4616
      %4618 = vrot.lane.b32.xlu0 %v4538, 124
      %v4619 = vpop.permute.xlu0 %4618
      %4620 = vrot.lane.b32.xlu0 %v4539, 124
      %v4621 = vpop.permute.xlu0 %4620
      %4622 = vrot.lane.b32.xlu0 %v4540, 124
      %v4623 = vpop.permute.xlu0 %4622
      %4624 = vrot.lane.b32.xlu0 %v4541, 124
      %v4625 = vpop.permute.xlu0 %4624
      %4626 = vrot.lane.b32.xlu0 %v4542, 124
      %v4627 = vpop.permute.xlu0 %4626
      %4628 = vrot.lane.b32.xlu0 %v4543, 124
      %v4629 = vpop.permute.xlu0 %4628
      %4630 = vrot.lane.b32.xlu0 %v4544, 124
      %v4631 = vpop.permute.xlu0 %4630
      %4632 = vrot.lane.b32.xlu0 %v4545, 124
      %v4633 = vpop.permute.xlu0 %4632
      %4634 = vrot.lane.b32.xlu0 %v4546, 124
      %v4635 = vpop.permute.xlu0 %4634
      %4636 = vrot.lane.b32.xlu0 %v4547, 124
      %v4637 = vpop.permute.xlu0 %4636
      %4638 = vrot.lane.b32.xlu0 %v4548, 124
      %v4639 = vpop.permute.xlu0 %4638
      %4640 = vrot.lane.b32.xlu0 %v4549, 124
      %v4641 = vpop.permute.xlu0 %4640
      %4642 = vrot.lane.b32.xlu0 %v4550, 124
      %v4643 = vpop.permute.xlu0 %4642
      %4644 = vrot.lane.b32.xlu0 %v4551, 124
      %v4645 = vpop.permute.xlu0 %4644
      %4646 = vrot.lane.b32.xlu0 %v4552, 124
      %v4647 = vpop.permute.xlu0 %4646
      %4648 = vrot.lane.b32.xlu0 %v4553, 124
      %v4649 = vpop.permute.xlu0 %4648
      %v4682 = vadd.f32 %v4330, %v4587
      %v4683 = vadd.f32 %v4331, %v4589
      %v4684 = vadd.f32 %v4332, %v4591
      %v4685 = vadd.f32 %v4333, %v4593
      %v4686 = vadd.f32 %v4334, %v4595
      %v4687 = vadd.f32 %v4335, %v4597
      %v4688 = vadd.f32 %v4336, %v4599
      %v4689 = vadd.f32 %v4337, %v4601
      %v4690 = vadd.f32 %v4338, %v4603
      %v4691 = vadd.f32 %v4339, %v4605
      %v4692 = vadd.f32 %v4340, %v4607
      %v4693 = vadd.f32 %v4341, %v4609
      %v4694 = vadd.f32 %v4342, %v4611
      %v4695 = vadd.f32 %v4343, %v4613
      %v4696 = vadd.f32 %v4344, %v4615
      %v4697 = vadd.f32 %v4345, %v4617
      %v4698 = vadd.f32 %v4346, %v4619
      %v4699 = vadd.f32 %v4347, %v4621
      %v4700 = vadd.f32 %v4348, %v4623
      %v4701 = vadd.f32 %v4349, %v4625
      %v4702 = vadd.f32 %v4350, %v4627
      %v4703 = vadd.f32 %v4351, %v4629
      %v4704 = vadd.f32 %v4352, %v4631
      %v4705 = vadd.f32 %v4353, %v4633
      %v4706 = vadd.f32 %v4354, %v4635
      %v4707 = vadd.f32 %v4355, %v4637
      %v4708 = vadd.f32 %v4356, %v4639
      %v4709 = vadd.f32 %v4357, %v4641
      %v4710 = vadd.f32 %v4358, %v4643
      %v4711 = vadd.f32 %v4359, %v4645
      %v4712 = vadd.f32 %v4360, %v4647
      %v4713 = vadd.f32 %v4361, %v4649
      %4714 = vrot.lane.b32.xlu0 %v4379, 44
      %v4715 = vpop.permute.xlu0 %4714
      %4716 = vrot.lane.b32.xlu0 %v4381, 44
      %v4717 = vpop.permute.xlu0 %4716
      %4718 = vrot.lane.b32.xlu0 %v4383, 44
      %v4719 = vpop.permute.xlu0 %4718
      %4720 = vrot.lane.b32.xlu0 %v4385, 44
      %v4721 = vpop.permute.xlu0 %4720
      %4722 = vrot.lane.b32.xlu0 %v4387, 44
      %v4723 = vpop.permute.xlu0 %4722
      %4724 = vrot.lane.b32.xlu0 %v4389, 44
      %v4725 = vpop.permute.xlu0 %4724
      %4726 = vrot.lane.b32.xlu0 %v4391, 44
      %v4727 = vpop.permute.xlu0 %4726
      %4728 = vrot.lane.b32.xlu0 %v4393, 44
      %v4729 = vpop.permute.xlu0 %4728
      %4730 = vrot.lane.b32.xlu0 %v4395, 44
      %v4731 = vpop.permute.xlu0 %4730
      %4732 = vrot.lane.b32.xlu0 %v4397, 44
      %v4733 = vpop.permute.xlu0 %4732
      %4734 = vrot.lane.b32.xlu0 %v4399, 44
      %v4735 = vpop.permute.xlu0 %4734
      %4736 = vrot.lane.b32.xlu0 %v4401, 44
      %v4737 = vpop.permute.xlu0 %4736
      %4738 = vrot.lane.b32.xlu0 %v4403, 44
      %v4739 = vpop.permute.xlu0 %4738
      %4740 = vrot.lane.b32.xlu0 %v4405, 44
      %v4741 = vpop.permute.xlu0 %4740
      %4742 = vrot.lane.b32.xlu0 %v4407, 44
      %v4743 = vpop.permute.xlu0 %4742
      %4744 = vrot.lane.b32.xlu0 %v4409, 44
      %v4745 = vpop.permute.xlu0 %4744
      %4746 = vrot.lane.b32.xlu0 %v4411, 44
      %v4747 = vpop.permute.xlu0 %4746
      %4748 = vrot.lane.b32.xlu0 %v4413, 44
      %v4749 = vpop.permute.xlu0 %4748
      %4750 = vrot.lane.b32.xlu0 %v4415, 44
      %v4751 = vpop.permute.xlu0 %4750
      %4752 = vrot.lane.b32.xlu0 %v4417, 44
      %v4753 = vpop.permute.xlu0 %4752
      %4754 = vrot.lane.b32.xlu0 %v4419, 44
      %v4755 = vpop.permute.xlu0 %4754
      %4756 = vrot.lane.b32.xlu0 %v4421, 44
      %v4757 = vpop.permute.xlu0 %4756
      %4758 = vrot.lane.b32.xlu0 %v4423, 44
      %v4759 = vpop.permute.xlu0 %4758
      %4760 = vrot.lane.b32.xlu0 %v4425, 44
      %v4761 = vpop.permute.xlu0 %4760
      %4762 = vrot.lane.b32.xlu0 %v4363, 44
      %v4763 = vpop.permute.xlu0 %4762
      %4764 = vrot.lane.b32.xlu0 %v4365, 44
      %v4765 = vpop.permute.xlu0 %4764
      %4766 = vrot.lane.b32.xlu0 %v4367, 44
      %v4767 = vpop.permute.xlu0 %4766
      %4768 = vrot.lane.b32.xlu0 %v4369, 44
      %v4769 = vpop.permute.xlu0 %4768
      %4770 = vrot.lane.b32.xlu0 %v4371, 44
      %v4771 = vpop.permute.xlu0 %4770
      %4772 = vrot.lane.b32.xlu0 %v4373, 44
      %v4773 = vpop.permute.xlu0 %4772
      %4774 = vrot.lane.b32.xlu0 %v4375, 44
      %v4775 = vpop.permute.xlu0 %4774
      %4776 = vrot.lane.b32.xlu0 %v4377, 44
      %v4777 = vpop.permute.xlu0 %4776
      %v4810 = vmul.f32 %v1851, %v4715
      %v4811 = vmul.f32 %v1853, %v4717
      %v4812 = vmul.f32 %v1856, %v4719
      %v4813 = vmul.f32 %v1858, %v4721
      %v4814 = vmul.f32 %v1861, %v4723
      %v4815 = vmul.f32 %v1863, %v4725
      %v4816 = vmul.f32 %v1866, %v4727
      %v4817 = vmul.f32 %v1868, %v4729
      %v4818 = vmul.f32 %v1871, %v4731
      %v4819 = vmul.f32 %v1873, %v4733
      %v4820 = vmul.f32 %v1876, %v4735
      %v4821 = vmul.f32 %v1878, %v4737
      %v4822 = vmul.f32 %v1881, %v4739
      %v4823 = vmul.f32 %v1883, %v4741
      %v4824 = vmul.f32 %v1886, %v4743
      %v4825 = vmul.f32 %v1888, %v4745
      %v4826 = vmul.f32 %v1891, %v4747
      %v4827 = vmul.f32 %v1893, %v4749
      %v4828 = vmul.f32 %v1896, %v4751
      %v4829 = vmul.f32 %v1898, %v4753
      %v4830 = vmul.f32 %v1901, %v4755
      %v4831 = vmul.f32 %v1903, %v4757
      %v4832 = vmul.f32 %v1906, %v4759
      %v4833 = vmul.f32 %v1908, %v4761
      %v4834 = vmul.f32 %v1911, %v4763
      %v4835 = vmul.f32 %v1913, %v4765
      %v4836 = vmul.f32 %v1916, %v4767
      %v4837 = vmul.f32 %v1918, %v4769
      %v4838 = vmul.f32 %v1921, %v4771
      %v4839 = vmul.f32 %v1923, %v4773
      %v4840 = vmul.f32 %v1926, %v4775
      %v4841 = vmul.f32 %v1928, %v4777
      %4874 = vrot.lane.b32.xlu0 %v4810, 120
      %v4875 = vpop.permute.xlu0 %4874
      %4876 = vrot.lane.b32.xlu0 %v4811, 120
      %v4877 = vpop.permute.xlu0 %4876
      %4878 = vrot.lane.b32.xlu0 %v4812, 120
      %v4879 = vpop.permute.xlu0 %4878
      %4880 = vrot.lane.b32.xlu0 %v4813, 120
      %v4881 = vpop.permute.xlu0 %4880
      %4882 = vrot.lane.b32.xlu0 %v4814, 120
      %v4883 = vpop.permute.xlu0 %4882
      %4884 = vrot.lane.b32.xlu0 %v4815, 120
      %v4885 = vpop.permute.xlu0 %4884
      %4886 = vrot.lane.b32.xlu0 %v4816, 120
      %v4887 = vpop.permute.xlu0 %4886
      %4888 = vrot.lane.b32.xlu0 %v4817, 120
      %v4889 = vpop.permute.xlu0 %4888
      %4890 = vrot.lane.b32.xlu0 %v4818, 120
      %v4891 = vpop.permute.xlu0 %4890
      %4892 = vrot.lane.b32.xlu0 %v4819, 120
      %v4893 = vpop.permute.xlu0 %4892
      %4894 = vrot.lane.b32.xlu0 %v4820, 120
      %v4895 = vpop.permute.xlu0 %4894
      %4896 = vrot.lane.b32.xlu0 %v4821, 120
      %v4897 = vpop.permute.xlu0 %4896
      %4898 = vrot.lane.b32.xlu0 %v4822, 120
      %v4899 = vpop.permute.xlu0 %4898
      %4900 = vrot.lane.b32.xlu0 %v4823, 120
      %v4901 = vpop.permute.xlu0 %4900
      %4902 = vrot.lane.b32.xlu0 %v4824, 120
      %v4903 = vpop.permute.xlu0 %4902
      %4904 = vrot.lane.b32.xlu0 %v4825, 120
      %v4905 = vpop.permute.xlu0 %4904
      %4906 = vrot.lane.b32.xlu0 %v4826, 120
      %v4907 = vpop.permute.xlu0 %4906
      %4908 = vrot.lane.b32.xlu0 %v4827, 120
      %v4909 = vpop.permute.xlu0 %4908
      %4910 = vrot.lane.b32.xlu0 %v4828, 120
      %v4911 = vpop.permute.xlu0 %4910
      %4912 = vrot.lane.b32.xlu0 %v4829, 120
      %v4913 = vpop.permute.xlu0 %4912
      %4914 = vrot.lane.b32.xlu0 %v4830, 120
      %v4915 = vpop.permute.xlu0 %4914
      %4916 = vrot.lane.b32.xlu0 %v4831, 120
      %v4917 = vpop.permute.xlu0 %4916
      %4918 = vrot.lane.b32.xlu0 %v4832, 120
      %v4919 = vpop.permute.xlu0 %4918
      %4920 = vrot.lane.b32.xlu0 %v4833, 120
      %v4921 = vpop.permute.xlu0 %4920
      %4922 = vrot.lane.b32.xlu0 %v4834, 120
      %v4923 = vpop.permute.xlu0 %4922
      %4924 = vrot.lane.b32.xlu0 %v4835, 120
      %v4925 = vpop.permute.xlu0 %4924
      %4926 = vrot.lane.b32.xlu0 %v4836, 120
      %v4927 = vpop.permute.xlu0 %4926
      %4928 = vrot.lane.b32.xlu0 %v4837, 120
      %v4929 = vpop.permute.xlu0 %4928
      %4930 = vrot.lane.b32.xlu0 %v4838, 120
      %v4931 = vpop.permute.xlu0 %4930
      %4932 = vrot.lane.b32.xlu0 %v4839, 120
      %v4933 = vpop.permute.xlu0 %4932
      %4934 = vrot.lane.b32.xlu0 %v4840, 120
      %v4935 = vpop.permute.xlu0 %4934
      %4936 = vrot.lane.b32.xlu0 %v4841, 120
      %v4937 = vpop.permute.xlu0 %4936
      %v4970 = vadd.f32 %v4682, %v4875
      %v4971 = vadd.f32 %v4683, %v4877
      %v4972 = vadd.f32 %v4684, %v4879
      %v4973 = vadd.f32 %v4685, %v4881
      %v4974 = vadd.f32 %v4686, %v4883
      %v4975 = vadd.f32 %v4687, %v4885
      %v4976 = vadd.f32 %v4688, %v4887
      %v4977 = vadd.f32 %v4689, %v4889
      %v4978 = vadd.f32 %v4690, %v4891
      %v4979 = vadd.f32 %v4691, %v4893
      %v4980 = vadd.f32 %v4692, %v4895
      %v4981 = vadd.f32 %v4693, %v4897
      %v4982 = vadd.f32 %v4694, %v4899
      %v4983 = vadd.f32 %v4695, %v4901
      %v4984 = vadd.f32 %v4696, %v4903
      %v4985 = vadd.f32 %v4697, %v4905
      %v4986 = vadd.f32 %v4698, %v4907
      %v4987 = vadd.f32 %v4699, %v4909
      %v4988 = vadd.f32 %v4700, %v4911
      %v4989 = vadd.f32 %v4701, %v4913
      %v4990 = vadd.f32 %v4702, %v4915
      %v4991 = vadd.f32 %v4703, %v4917
      %v4992 = vadd.f32 %v4704, %v4919
      %v4993 = vadd.f32 %v4705, %v4921
      %v4994 = vadd.f32 %v4706, %v4923
      %v4995 = vadd.f32 %v4707, %v4925
      %v4996 = vadd.f32 %v4708, %v4927
      %v4997 = vadd.f32 %v4709, %v4929
      %v4998 = vadd.f32 %v4710, %v4931
      %v4999 = vadd.f32 %v4711, %v4933
      %v5000 = vadd.f32 %v4712, %v4935
      %v5001 = vadd.f32 %v4713, %v4937
      %5002 = vrot.lane.b32.xlu0 %v4395, 48
      %v5003 = vpop.permute.xlu0 %5002
      %5004 = vrot.lane.b32.xlu0 %v4397, 48
      %v5005 = vpop.permute.xlu0 %5004
      %5006 = vrot.lane.b32.xlu0 %v4399, 48
      %v5007 = vpop.permute.xlu0 %5006
      %5008 = vrot.lane.b32.xlu0 %v4401, 48
      %v5009 = vpop.permute.xlu0 %5008
      %5010 = vrot.lane.b32.xlu0 %v4403, 48
      %v5011 = vpop.permute.xlu0 %5010
      %5012 = vrot.lane.b32.xlu0 %v4405, 48
      %v5013 = vpop.permute.xlu0 %5012
      %5014 = vrot.lane.b32.xlu0 %v4407, 48
      %v5015 = vpop.permute.xlu0 %5014
      %5016 = vrot.lane.b32.xlu0 %v4409, 48
      %v5017 = vpop.permute.xlu0 %5016
      %5018 = vrot.lane.b32.xlu0 %v4411, 48
      %v5019 = vpop.permute.xlu0 %5018
      %5020 = vrot.lane.b32.xlu0 %v4413, 48
      %v5021 = vpop.permute.xlu0 %5020
      %5022 = vrot.lane.b32.xlu0 %v4415, 48
      %v5023 = vpop.permute.xlu0 %5022
      %5024 = vrot.lane.b32.xlu0 %v4417, 48
      %v5025 = vpop.permute.xlu0 %5024
      %5026 = vrot.lane.b32.xlu0 %v4419, 48
      %v5027 = vpop.permute.xlu0 %5026
      %5028 = vrot.lane.b32.xlu0 %v4421, 48
      %v5029 = vpop.permute.xlu0 %5028
      %5030 = vrot.lane.b32.xlu0 %v4423, 48
      %v5031 = vpop.permute.xlu0 %5030
      %5032 = vrot.lane.b32.xlu0 %v4425, 48
      %v5033 = vpop.permute.xlu0 %5032
      %5034 = vrot.lane.b32.xlu0 %v4363, 48
      %v5035 = vpop.permute.xlu0 %5034
      %5036 = vrot.lane.b32.xlu0 %v4365, 48
      %v5037 = vpop.permute.xlu0 %5036
      %5038 = vrot.lane.b32.xlu0 %v4367, 48
      %v5039 = vpop.permute.xlu0 %5038
      %5040 = vrot.lane.b32.xlu0 %v4369, 48
      %v5041 = vpop.permute.xlu0 %5040
      %5042 = vrot.lane.b32.xlu0 %v4371, 48
      %v5043 = vpop.permute.xlu0 %5042
      %5044 = vrot.lane.b32.xlu0 %v4373, 48
      %v5045 = vpop.permute.xlu0 %5044
      %5046 = vrot.lane.b32.xlu0 %v4375, 48
      %v5047 = vpop.permute.xlu0 %5046
      %5048 = vrot.lane.b32.xlu0 %v4377, 48
      %v5049 = vpop.permute.xlu0 %5048
      %5050 = vrot.lane.b32.xlu0 %v4379, 48
      %v5051 = vpop.permute.xlu0 %5050
      %5052 = vrot.lane.b32.xlu0 %v4381, 48
      %v5053 = vpop.permute.xlu0 %5052
      %5054 = vrot.lane.b32.xlu0 %v4383, 48
      %v5055 = vpop.permute.xlu0 %5054
      %5056 = vrot.lane.b32.xlu0 %v4385, 48
      %v5057 = vpop.permute.xlu0 %5056
      %5058 = vrot.lane.b32.xlu0 %v4387, 48
      %v5059 = vpop.permute.xlu0 %5058
      %5060 = vrot.lane.b32.xlu0 %v4389, 48
      %v5061 = vpop.permute.xlu0 %5060
      %5062 = vrot.lane.b32.xlu0 %v4391, 48
      %v5063 = vpop.permute.xlu0 %5062
      %5064 = vrot.lane.b32.xlu0 %v4393, 48
      %v5065 = vpop.permute.xlu0 %5064
      %v5098 = vmul.f32 %v1851, %v5003
      %v5099 = vmul.f32 %v1853, %v5005
      %v5100 = vmul.f32 %v1856, %v5007
      %v5101 = vmul.f32 %v1858, %v5009
      %v5102 = vmul.f32 %v1861, %v5011
      %v5103 = vmul.f32 %v1863, %v5013
      %v5104 = vmul.f32 %v1866, %v5015
      %v5105 = vmul.f32 %v1868, %v5017
      %v5106 = vmul.f32 %v1871, %v5019
      %v5107 = vmul.f32 %v1873, %v5021
      %v5108 = vmul.f32 %v1876, %v5023
      %v5109 = vmul.f32 %v1878, %v5025
      %v5110 = vmul.f32 %v1881, %v5027
      %v5111 = vmul.f32 %v1883, %v5029
      %v5112 = vmul.f32 %v1886, %v5031
      %v5113 = vmul.f32 %v1888, %v5033
      %v5114 = vmul.f32 %v1891, %v5035
      %v5115 = vmul.f32 %v1893, %v5037
      %v5116 = vmul.f32 %v1896, %v5039
      %v5117 = vmul.f32 %v1898, %v5041
      %v5118 = vmul.f32 %v1901, %v5043
      %v5119 = vmul.f32 %v1903, %v5045
      %v5120 = vmul.f32 %v1906, %v5047
      %v5121 = vmul.f32 %v1908, %v5049
      %v5122 = vmul.f32 %v1911, %v5051
      %v5123 = vmul.f32 %v1913, %v5053
      %v5124 = vmul.f32 %v1916, %v5055
      %v5125 = vmul.f32 %v1918, %v5057
      %v5126 = vmul.f32 %v1921, %v5059
      %v5127 = vmul.f32 %v1923, %v5061
      %v5128 = vmul.f32 %v1926, %v5063
      %v5129 = vmul.f32 %v1928, %v5065
      %5162 = vrot.lane.b32.xlu0 %v5098, 116
      %v5163 = vpop.permute.xlu0 %5162
      %5164 = vrot.lane.b32.xlu0 %v5099, 116
      %v5165 = vpop.permute.xlu0 %5164
      %5166 = vrot.lane.b32.xlu0 %v5100, 116
      %v5167 = vpop.permute.xlu0 %5166
      %5168 = vrot.lane.b32.xlu0 %v5101, 116
      %v5169 = vpop.permute.xlu0 %5168
      %5170 = vrot.lane.b32.xlu0 %v5102, 116
      %v5171 = vpop.permute.xlu0 %5170
      %5172 = vrot.lane.b32.xlu0 %v5103, 116
      %v5173 = vpop.permute.xlu0 %5172
      %5174 = vrot.lane.b32.xlu0 %v5104, 116
      %v5175 = vpop.permute.xlu0 %5174
      %5176 = vrot.lane.b32.xlu0 %v5105, 116
      %v5177 = vpop.permute.xlu0 %5176
      %5178 = vrot.lane.b32.xlu0 %v5106, 116
      %v5179 = vpop.permute.xlu0 %5178
      %5180 = vrot.lane.b32.xlu0 %v5107, 116
      %v5181 = vpop.permute.xlu0 %5180
      %5182 = vrot.lane.b32.xlu0 %v5108, 116
      %v5183 = vpop.permute.xlu0 %5182
      %5184 = vrot.lane.b32.xlu0 %v5109, 116
      %v5185 = vpop.permute.xlu0 %5184
      %5186 = vrot.lane.b32.xlu0 %v5110, 116
      %v5187 = vpop.permute.xlu0 %5186
      %5188 = vrot.lane.b32.xlu0 %v5111, 116
      %v5189 = vpop.permute.xlu0 %5188
      %5190 = vrot.lane.b32.xlu0 %v5112, 116
      %v5191 = vpop.permute.xlu0 %5190
      %5192 = vrot.lane.b32.xlu0 %v5113, 116
      %v5193 = vpop.permute.xlu0 %5192
      %5194 = vrot.lane.b32.xlu0 %v5114, 116
      %v5195 = vpop.permute.xlu0 %5194
      %5196 = vrot.lane.b32.xlu0 %v5115, 116
      %v5197 = vpop.permute.xlu0 %5196
      %5198 = vrot.lane.b32.xlu0 %v5116, 116
      %v5199 = vpop.permute.xlu0 %5198
      %5200 = vrot.lane.b32.xlu0 %v5117, 116
      %v5201 = vpop.permute.xlu0 %5200
      %5202 = vrot.lane.b32.xlu0 %v5118, 116
      %v5203 = vpop.permute.xlu0 %5202
      %5204 = vrot.lane.b32.xlu0 %v5119, 116
      %v5205 = vpop.permute.xlu0 %5204
      %5206 = vrot.lane.b32.xlu0 %v5120, 116
      %v5207 = vpop.permute.xlu0 %5206
      %5208 = vrot.lane.b32.xlu0 %v5121, 116
      %v5209 = vpop.permute.xlu0 %5208
      %5210 = vrot.lane.b32.xlu0 %v5122, 116
      %v5211 = vpop.permute.xlu0 %5210
      %5212 = vrot.lane.b32.xlu0 %v5123, 116
      %v5213 = vpop.permute.xlu0 %5212
      %5214 = vrot.lane.b32.xlu0 %v5124, 116
      %v5215 = vpop.permute.xlu0 %5214
      %5216 = vrot.lane.b32.xlu0 %v5125, 116
      %v5217 = vpop.permute.xlu0 %5216
      %5218 = vrot.lane.b32.xlu0 %v5126, 116
      %v5219 = vpop.permute.xlu0 %5218
      %5220 = vrot.lane.b32.xlu0 %v5127, 116
      %v5221 = vpop.permute.xlu0 %5220
      %5222 = vrot.lane.b32.xlu0 %v5128, 116
      %v5223 = vpop.permute.xlu0 %5222
      %5224 = vrot.lane.b32.xlu0 %v5129, 116
      %v5225 = vpop.permute.xlu0 %5224
      %v5258 = vadd.f32 %v4970, %v5163
      %v5259 = vadd.f32 %v4971, %v5165
      %v5260 = vadd.f32 %v4972, %v5167
      %v5261 = vadd.f32 %v4973, %v5169
      %v5262 = vadd.f32 %v4974, %v5171
      %v5263 = vadd.f32 %v4975, %v5173
      %v5264 = vadd.f32 %v4976, %v5175
      %v5265 = vadd.f32 %v4977, %v5177
      %v5266 = vadd.f32 %v4978, %v5179
      %v5267 = vadd.f32 %v4979, %v5181
      %v5268 = vadd.f32 %v4980, %v5183
      %v5269 = vadd.f32 %v4981, %v5185
      %v5270 = vadd.f32 %v4982, %v5187
      %v5271 = vadd.f32 %v4983, %v5189
      %v5272 = vadd.f32 %v4984, %v5191
      %v5273 = vadd.f32 %v4985, %v5193
      %v5274 = vadd.f32 %v4986, %v5195
      %v5275 = vadd.f32 %v4987, %v5197
      %v5276 = vadd.f32 %v4988, %v5199
      %v5277 = vadd.f32 %v4989, %v5201
      %v5278 = vadd.f32 %v4990, %v5203
      %v5279 = vadd.f32 %v4991, %v5205
      %v5280 = vadd.f32 %v4992, %v5207
      %v5281 = vadd.f32 %v4993, %v5209
      %v5282 = vadd.f32 %v4994, %v5211
      %v5283 = vadd.f32 %v4995, %v5213
      %v5284 = vadd.f32 %v4996, %v5215
      %v5285 = vadd.f32 %v4997, %v5217
      %v5286 = vadd.f32 %v4998, %v5219
      %v5287 = vadd.f32 %v4999, %v5221
      %v5288 = vadd.f32 %v5000, %v5223
      %v5289 = vadd.f32 %v5001, %v5225
      %5290 = vrot.lane.b32.xlu0 %v1851, 36
      %v5291 = vpop.permute.xlu0 %5290
      %5292 = vrot.lane.b32.xlu0 %v1853, 36
      %v5293 = vpop.permute.xlu0 %5292
      %5294 = vrot.lane.b32.xlu0 %v1856, 36
      %v5295 = vpop.permute.xlu0 %5294
      %5296 = vrot.lane.b32.xlu0 %v1858, 36
      %v5297 = vpop.permute.xlu0 %5296
      %5298 = vrot.lane.b32.xlu0 %v1861, 36
      %v5299 = vpop.permute.xlu0 %5298
      %5300 = vrot.lane.b32.xlu0 %v1863, 36
      %v5301 = vpop.permute.xlu0 %5300
      %5302 = vrot.lane.b32.xlu0 %v1866, 36
      %v5303 = vpop.permute.xlu0 %5302
      %5304 = vrot.lane.b32.xlu0 %v1868, 36
      %v5305 = vpop.permute.xlu0 %5304
      %5306 = vrot.lane.b32.xlu0 %v1871, 36
      %v5307 = vpop.permute.xlu0 %5306
      %5308 = vrot.lane.b32.xlu0 %v1873, 36
      %v5309 = vpop.permute.xlu0 %5308
      %5310 = vrot.lane.b32.xlu0 %v1876, 36
      %v5311 = vpop.permute.xlu0 %5310
      %5312 = vrot.lane.b32.xlu0 %v1878, 36
      %v5313 = vpop.permute.xlu0 %5312
      %5314 = vrot.lane.b32.xlu0 %v1881, 36
      %v5315 = vpop.permute.xlu0 %5314
      %5316 = vrot.lane.b32.xlu0 %v1883, 36
      %v5317 = vpop.permute.xlu0 %5316
      %5318 = vrot.lane.b32.xlu0 %v1886, 36
      %v5319 = vpop.permute.xlu0 %5318
      %5320 = vrot.lane.b32.xlu0 %v1888, 36
      %v5321 = vpop.permute.xlu0 %5320
      %5322 = vrot.lane.b32.xlu0 %v1891, 36
      %v5323 = vpop.permute.xlu0 %5322
      %5324 = vrot.lane.b32.xlu0 %v1893, 36
      %v5325 = vpop.permute.xlu0 %5324
      %5326 = vrot.lane.b32.xlu0 %v1896, 36
      %v5327 = vpop.permute.xlu0 %5326
      %5328 = vrot.lane.b32.xlu0 %v1898, 36
      %v5329 = vpop.permute.xlu0 %5328
      %5330 = vrot.lane.b32.xlu0 %v1901, 36
      %v5331 = vpop.permute.xlu0 %5330
      %5332 = vrot.lane.b32.xlu0 %v1903, 36
      %v5333 = vpop.permute.xlu0 %5332
      %5334 = vrot.lane.b32.xlu0 %v1906, 36
      %v5335 = vpop.permute.xlu0 %5334
      %5336 = vrot.lane.b32.xlu0 %v1908, 36
      %v5337 = vpop.permute.xlu0 %5336
      %5338 = vrot.lane.b32.xlu0 %v1911, 36
      %v5339 = vpop.permute.xlu0 %5338
      %5340 = vrot.lane.b32.xlu0 %v1913, 36
      %v5341 = vpop.permute.xlu0 %5340
      %5342 = vrot.lane.b32.xlu0 %v1916, 36
      %v5343 = vpop.permute.xlu0 %5342
      %5344 = vrot.lane.b32.xlu0 %v1918, 36
      %v5345 = vpop.permute.xlu0 %5344
      %5346 = vrot.lane.b32.xlu0 %v1921, 36
      %v5347 = vpop.permute.xlu0 %5346
      %5348 = vrot.lane.b32.xlu0 %v1923, 36
      %v5349 = vpop.permute.xlu0 %5348
      %5350 = vrot.lane.b32.xlu0 %v1926, 36
      %v5351 = vpop.permute.xlu0 %5350
      %5352 = vrot.lane.b32.xlu0 %v1928, 36
      %v5353 = vpop.permute.xlu0 %5352
      %v5386 = vadd.f32 %v5258, %v5291
      %v5387 = vadd.f32 %v5259, %v5293
      %v5388 = vadd.f32 %v5260, %v5295
      %v5389 = vadd.f32 %v5261, %v5297
      %v5390 = vadd.f32 %v5262, %v5299
      %v5391 = vadd.f32 %v5263, %v5301
      %v5392 = vadd.f32 %v5264, %v5303
      %v5393 = vadd.f32 %v5265, %v5305
      %v5394 = vadd.f32 %v5266, %v5307
      %v5395 = vadd.f32 %v5267, %v5309
      %v5396 = vadd.f32 %v5268, %v5311
      %v5397 = vadd.f32 %v5269, %v5313
      %v5398 = vadd.f32 %v5270, %v5315
      %v5399 = vadd.f32 %v5271, %v5317
      %v5400 = vadd.f32 %v5272, %v5319
      %v5401 = vadd.f32 %v5273, %v5321
      %v5402 = vadd.f32 %v5274, %v5323
      %v5403 = vadd.f32 %v5275, %v5325
      %v5404 = vadd.f32 %v5276, %v5327
      %v5405 = vadd.f32 %v5277, %v5329
      %v5406 = vadd.f32 %v5278, %v5331
      %v5407 = vadd.f32 %v5279, %v5333
      %v5408 = vadd.f32 %v5280, %v5335
      %v5409 = vadd.f32 %v5281, %v5337
      %v5410 = vadd.f32 %v5282, %v5339
      %v5411 = vadd.f32 %v5283, %v5341
      %v5412 = vadd.f32 %v5284, %v5343
      %v5413 = vadd.f32 %v5285, %v5345
      %v5414 = vadd.f32 %v5286, %v5347
      %v5415 = vadd.f32 %v5287, %v5349
      %v5416 = vadd.f32 %v5288, %v5351
      %v5417 = vadd.f32 %v5289, %v5353
      %v5418 = vld [vmem:[%s6] sm:$0xff]
      %v5419 = vld [vmem:[%s6 + $0x8] sm:$0xff]
      %v5420 = vld [vmem:[%s6 + $0x10] sm:$0xff]
      %v5421 = vld [vmem:[%s6 + $0x18] sm:$0xff]
      %v5422 = vld [vmem:[%s6 + $0x20] sm:$0xff]
      %v5423 = vld [vmem:[%s6 + $0x28] sm:$0xff]
      %v5424 = vld [vmem:[%s6 + $0x30] sm:$0xff]
      %v5425 = vld [vmem:[%s6 + $0x38] sm:$0xff]
      %v5426 = vld [vmem:[%s6 + $0x40] sm:$0xff]
      %v5427 = vld [vmem:[%s6 + $0x48] sm:$0xff]
      %v5428 = vld [vmem:[%s6 + $0x50] sm:$0xff]
      %v5429 = vld [vmem:[%s6 + $0x58] sm:$0xff]
      %v5430 = vld [vmem:[%s6 + $0x60] sm:$0xff]
      %v5431 = vld [vmem:[%s6 + $0x68] sm:$0xff]
      %v5432 = vld [vmem:[%s6 + $0x70] sm:$0xff]
      %v5433 = vld [vmem:[%s6 + $0x78] sm:$0xff]
      %v5434 = vld [vmem:[%s6 + $0x80] sm:$0xff]
      %v5435 = vld [vmem:[%s6 + $0x88] sm:$0xff]
      %v5436 = vld [vmem:[%s6 + $0x90] sm:$0xff]
      %v5437 = vld [vmem:[%s6 + $0x98] sm:$0xff]
      %v5438 = vld [vmem:[%s6 + $0xa0] sm:$0xff]
      %v5439 = vld [vmem:[%s6 + $0xa8] sm:$0xff]
      %v5440 = vld [vmem:[%s6 + $0xb0] sm:$0xff]
      %v5441 = vld [vmem:[%s6 + $0xb8] sm:$0xff]
      %v5442 = vld [vmem:[%s6 + $0xc0] sm:$0xff]
      %v5443 = vld [vmem:[%s6 + $0xc8] sm:$0xff]
      %v5444 = vld [vmem:[%s6 + $0xd0] sm:$0xff]
      %v5445 = vld [vmem:[%s6 + $0xd8] sm:$0xff]
      %v5446 = vld [vmem:[%s6 + $0xe0] sm:$0xff]
      %v5447 = vld [vmem:[%s6 + $0xe8] sm:$0xff]
      %v5448 = vld [vmem:[%s6 + $0xf0] sm:$0xff]
      %v5449 = vld [vmem:[%s6 + $0xf8] sm:$0xff]
      %5451 = vset.pattern.permute.xlu0 36
      %5452 = vperm.xlu0 %5451, %v5386
      %v5453 = vpop.permute.xlu0 %5452
      %5456 = vset.pattern.permute.xlu0 36
      %5457 = vperm.xlu0 %5456, %v5387
      %v5458 = vpop.permute.xlu0 %5457
      %5461 = vset.pattern.permute.xlu0 36
      %5462 = vperm.xlu0 %5461, %v5388
      %v5463 = vpop.permute.xlu0 %5462
      %5466 = vset.pattern.permute.xlu0 36
      %5467 = vperm.xlu0 %5466, %v5389
      %v5468 = vpop.permute.xlu0 %5467
      %5471 = vset.pattern.permute.xlu0 36
      %5472 = vperm.xlu0 %5471, %v5390
      %v5473 = vpop.permute.xlu0 %5472
      %5476 = vset.pattern.permute.xlu0 36
      %5477 = vperm.xlu0 %5476, %v5391
      %v5478 = vpop.permute.xlu0 %5477
      %5481 = vset.pattern.permute.xlu0 36
      %5482 = vperm.xlu0 %5481, %v5392
      %v5483 = vpop.permute.xlu0 %5482
      %5486 = vset.pattern.permute.xlu0 36
      %5487 = vperm.xlu0 %5486, %v5393
      %v5488 = vpop.permute.xlu0 %5487
      %5491 = vset.pattern.permute.xlu0 36
      %5492 = vperm.xlu0 %5491, %v5394
      %v5493 = vpop.permute.xlu0 %5492
      %5496 = vset.pattern.permute.xlu0 36
      %5497 = vperm.xlu0 %5496, %v5395
      %v5498 = vpop.permute.xlu0 %5497
      %5501 = vset.pattern.permute.xlu0 36
      %5502 = vperm.xlu0 %5501, %v5396
      %v5503 = vpop.permute.xlu0 %5502
      %5506 = vset.pattern.permute.xlu0 36
      %5507 = vperm.xlu0 %5506, %v5397
      %v5508 = vpop.permute.xlu0 %5507
      %5511 = vset.pattern.permute.xlu0 36
      %5512 = vperm.xlu0 %5511, %v5398
      %v5513 = vpop.permute.xlu0 %5512
      %5516 = vset.pattern.permute.xlu0 36
      %5517 = vperm.xlu0 %5516, %v5399
      %v5518 = vpop.permute.xlu0 %5517
      %5521 = vset.pattern.permute.xlu0 36
      %5522 = vperm.xlu0 %5521, %v5400
      %v5523 = vpop.permute.xlu0 %5522
      %5526 = vset.pattern.permute.xlu0 36
      %5527 = vperm.xlu0 %5526, %v5401
      %v5528 = vpop.permute.xlu0 %5527
      %5531 = vset.pattern.permute.xlu0 36
      %5532 = vperm.xlu0 %5531, %v5402
      %v5533 = vpop.permute.xlu0 %5532
      %5536 = vset.pattern.permute.xlu0 36
      %5537 = vperm.xlu0 %5536, %v5403
      %v5538 = vpop.permute.xlu0 %5537
      %5541 = vset.pattern.permute.xlu0 36
      %5542 = vperm.xlu0 %5541, %v5404
      %v5543 = vpop.permute.xlu0 %5542
      %5546 = vset.pattern.permute.xlu0 36
      %5547 = vperm.xlu0 %5546, %v5405
      %v5548 = vpop.permute.xlu0 %5547
      %5551 = vset.pattern.permute.xlu0 36
      %5552 = vperm.xlu0 %5551, %v5406
      %v5553 = vpop.permute.xlu0 %5552
      %5556 = vset.pattern.permute.xlu0 36
      %5557 = vperm.xlu0 %5556, %v5407
      %v5558 = vpop.permute.xlu0 %5557
      %5561 = vset.pattern.permute.xlu0 36
      %5562 = vperm.xlu0 %5561, %v5408
      %v5563 = vpop.permute.xlu0 %5562
      %5566 = vset.pattern.permute.xlu0 36
      %5567 = vperm.xlu0 %5566, %v5409
      %v5568 = vpop.permute.xlu0 %5567
      %5571 = vset.pattern.permute.xlu0 36
      %5572 = vperm.xlu0 %5571, %v5410
      %v5573 = vpop.permute.xlu0 %5572
      %5576 = vset.pattern.permute.xlu0 36
      %5577 = vperm.xlu0 %5576, %v5411
      %v5578 = vpop.permute.xlu0 %5577
      %5581 = vset.pattern.permute.xlu0 36
      %5582 = vperm.xlu0 %5581, %v5412
      %v5583 = vpop.permute.xlu0 %5582
      %5586 = vset.pattern.permute.xlu0 36
      %5587 = vperm.xlu0 %5586, %v5413
      %v5588 = vpop.permute.xlu0 %5587
      %5591 = vset.pattern.permute.xlu0 36
      %5592 = vperm.xlu0 %5591, %v5414
      %v5593 = vpop.permute.xlu0 %5592
      %5596 = vset.pattern.permute.xlu0 36
      %5597 = vperm.xlu0 %5596, %v5415
      %v5598 = vpop.permute.xlu0 %5597
      %5601 = vset.pattern.permute.xlu0 36
      %5602 = vperm.xlu0 %5601, %v5416
      %v5603 = vpop.permute.xlu0 %5602
      %5606 = vset.pattern.permute.xlu0 36
      %5607 = vperm.xlu0 %5606, %v5417
      %v5608 = vpop.permute.xlu0 %5607
      %v5610 = vmul.f32 %v5453, %v5418
      %v5611 = vmul.f32 %v5458, %v5419
      %v5612 = vmul.f32 %v5463, %v5420
      %v5613 = vmul.f32 %v5468, %v5421
      %v5614 = vmul.f32 %v5473, %v5422
      %v5615 = vmul.f32 %v5478, %v5423
      %v5616 = vmul.f32 %v5483, %v5424
      %v5617 = vmul.f32 %v5488, %v5425
      %v5618 = vmul.f32 %v5493, %v5426
      %v5619 = vmul.f32 %v5498, %v5427
      %v5620 = vmul.f32 %v5503, %v5428
      %v5621 = vmul.f32 %v5508, %v5429
      %v5622 = vmul.f32 %v5513, %v5430
      %v5623 = vmul.f32 %v5518, %v5431
      %v5624 = vmul.f32 %v5523, %v5432
      %v5625 = vmul.f32 %v5528, %v5433
      %v5626 = vmul.f32 %v5533, %v5434
      %v5627 = vmul.f32 %v5538, %v5435
      %v5628 = vmul.f32 %v5543, %v5436
      %v5629 = vmul.f32 %v5548, %v5437
      %v5630 = vmul.f32 %v5553, %v5438
      %v5631 = vmul.f32 %v5558, %v5439
      %v5632 = vmul.f32 %v5563, %v5440
      %v5633 = vmul.f32 %v5568, %v5441
      %v5634 = vmul.f32 %v5573, %v5442
      %v5635 = vmul.f32 %v5578, %v5443
      %v5636 = vmul.f32 %v5583, %v5444
      %v5637 = vmul.f32 %v5588, %v5445
      %v5638 = vmul.f32 %v5593, %v5446
      %v5639 = vmul.f32 %v5598, %v5447
      %v5640 = vmul.f32 %v5603, %v5448
      %v5641 = vmul.f32 %v5608, %v5449
      %s5642 = scalar_lea.vmem %s6, 256
      %v5643 = vld [vmem:[%s5642] sm:$0xff]
      %v5644 = vld [vmem:[%s5642 + $0x8] sm:$0xff]
      %v5645 = vld [vmem:[%s5642 + $0x10] sm:$0xff]
      %v5646 = vld [vmem:[%s5642 + $0x18] sm:$0xff]
      %v5647 = vld [vmem:[%s5642 + $0x20] sm:$0xff]
      %v5648 = vld [vmem:[%s5642 + $0x28] sm:$0xff]
      %v5649 = vld [vmem:[%s5642 + $0x30] sm:$0xff]
      %v5650 = vld [vmem:[%s5642 + $0x38] sm:$0xff]
      %v5651 = vld [vmem:[%s5642 + $0x40] sm:$0xff]
      %v5652 = vld [vmem:[%s5642 + $0x48] sm:$0xff]
      %v5653 = vld [vmem:[%s5642 + $0x50] sm:$0xff]
      %v5654 = vld [vmem:[%s5642 + $0x58] sm:$0xff]
      %v5655 = vld [vmem:[%s5642 + $0x60] sm:$0xff]
      %v5656 = vld [vmem:[%s5642 + $0x68] sm:$0xff]
      %v5657 = vld [vmem:[%s5642 + $0x70] sm:$0xff]
      %v5658 = vld [vmem:[%s5642 + $0x78] sm:$0xff]
      %v5659 = vld [vmem:[%s5642 + $0x80] sm:$0xff]
      %v5660 = vld [vmem:[%s5642 + $0x88] sm:$0xff]
      %v5661 = vld [vmem:[%s5642 + $0x90] sm:$0xff]
      %v5662 = vld [vmem:[%s5642 + $0x98] sm:$0xff]
      %v5663 = vld [vmem:[%s5642 + $0xa0] sm:$0xff]
      %v5664 = vld [vmem:[%s5642 + $0xa8] sm:$0xff]
      %v5665 = vld [vmem:[%s5642 + $0xb0] sm:$0xff]
      %v5666 = vld [vmem:[%s5642 + $0xb8] sm:$0xff]
      %v5667 = vld [vmem:[%s5642 + $0xc0] sm:$0xff]
      %v5668 = vld [vmem:[%s5642 + $0xc8] sm:$0xff]
      %v5669 = vld [vmem:[%s5642 + $0xd0] sm:$0xff]
      %v5670 = vld [vmem:[%s5642 + $0xd8] sm:$0xff]
      %v5671 = vld [vmem:[%s5642 + $0xe0] sm:$0xff]
      %v5672 = vld [vmem:[%s5642 + $0xe8] sm:$0xff]
      %v5673 = vld [vmem:[%s5642 + $0xf0] sm:$0xff]
      %v5674 = vld [vmem:[%s5642 + $0xf8] sm:$0xff]
      %5675 = vset.pattern.permute.xlu0 37
      %5676 = vperm.xlu0 %5675, %v5386
      %v5677 = vpop.permute.xlu0 %5676
      %5679 = vset.pattern.permute.xlu0 37
      %5680 = vperm.xlu0 %5679, %v5387
      %v5681 = vpop.permute.xlu0 %5680
      %5683 = vset.pattern.permute.xlu0 37
      %5684 = vperm.xlu0 %5683, %v5388
      %v5685 = vpop.permute.xlu0 %5684
      %5687 = vset.pattern.permute.xlu0 37
      %5688 = vperm.xlu0 %5687, %v5389
      %v5689 = vpop.permute.xlu0 %5688
      %5691 = vset.pattern.permute.xlu0 37
      %5692 = vperm.xlu0 %5691, %v5390
      %v5693 = vpop.permute.xlu0 %5692
      %5695 = vset.pattern.permute.xlu0 37
      %5696 = vperm.xlu0 %5695, %v5391
      %v5697 = vpop.permute.xlu0 %5696
      %5699 = vset.pattern.permute.xlu0 37
      %5700 = vperm.xlu0 %5699, %v5392
      %v5701 = vpop.permute.xlu0 %5700
      %5703 = vset.pattern.permute.xlu0 37
      %5704 = vperm.xlu0 %5703, %v5393
      %v5705 = vpop.permute.xlu0 %5704
      %5707 = vset.pattern.permute.xlu0 37
      %5708 = vperm.xlu0 %5707, %v5394
      %v5709 = vpop.permute.xlu0 %5708
      %5711 = vset.pattern.permute.xlu0 37
      %5712 = vperm.xlu0 %5711, %v5395
      %v5713 = vpop.permute.xlu0 %5712
      %5715 = vset.pattern.permute.xlu0 37
      %5716 = vperm.xlu0 %5715, %v5396
      %v5717 = vpop.permute.xlu0 %5716
      %5719 = vset.pattern.permute.xlu0 37
      %5720 = vperm.xlu0 %5719, %v5397
      %v5721 = vpop.permute.xlu0 %5720
      %5723 = vset.pattern.permute.xlu0 37
      %5724 = vperm.xlu0 %5723, %v5398
      %v5725 = vpop.permute.xlu0 %5724
      %5727 = vset.pattern.permute.xlu0 37
      %5728 = vperm.xlu0 %5727, %v5399
      %v5729 = vpop.permute.xlu0 %5728
      %5731 = vset.pattern.permute.xlu0 37
      %5732 = vperm.xlu0 %5731, %v5400
      %v5733 = vpop.permute.xlu0 %5732
      %5735 = vset.pattern.permute.xlu0 37
      %5736 = vperm.xlu0 %5735, %v5401
      %v5737 = vpop.permute.xlu0 %5736
      %5739 = vset.pattern.permute.xlu0 37
      %5740 = vperm.xlu0 %5739, %v5402
      %v5741 = vpop.permute.xlu0 %5740
      %5743 = vset.pattern.permute.xlu0 37
      %5744 = vperm.xlu0 %5743, %v5403
      %v5745 = vpop.permute.xlu0 %5744
      %5747 = vset.pattern.permute.xlu0 37
      %5748 = vperm.xlu0 %5747, %v5404
      %v5749 = vpop.permute.xlu0 %5748
      %5751 = vset.pattern.permute.xlu0 37
      %5752 = vperm.xlu0 %5751, %v5405
      %v5753 = vpop.permute.xlu0 %5752
      %5755 = vset.pattern.permute.xlu0 37
      %5756 = vperm.xlu0 %5755, %v5406
      %v5757 = vpop.permute.xlu0 %5756
      %5759 = vset.pattern.permute.xlu0 37
      %5760 = vperm.xlu0 %5759, %v5407
      %v5761 = vpop.permute.xlu0 %5760
      %5763 = vset.pattern.permute.xlu0 37
      %5764 = vperm.xlu0 %5763, %v5408
      %v5765 = vpop.permute.xlu0 %5764
      %5767 = vset.pattern.permute.xlu0 37
      %5768 = vperm.xlu0 %5767, %v5409
      %v5769 = vpop.permute.xlu0 %5768
      %5771 = vset.pattern.permute.xlu0 37
      %5772 = vperm.xlu0 %5771, %v5410
      %v5773 = vpop.permute.xlu0 %5772
      %5775 = vset.pattern.permute.xlu0 37
      %5776 = vperm.xlu0 %5775, %v5411
      %v5777 = vpop.permute.xlu0 %5776
      %5779 = vset.pattern.permute.xlu0 37
      %5780 = vperm.xlu0 %5779, %v5412
      %v5781 = vpop.permute.xlu0 %5780
      %5783 = vset.pattern.permute.xlu0 37
      %5784 = vperm.xlu0 %5783, %v5413
      %v5785 = vpop.permute.xlu0 %5784
      %5787 = vset.pattern.permute.xlu0 37
      %5788 = vperm.xlu0 %5787, %v5414
      %v5789 = vpop.permute.xlu0 %5788
      %5791 = vset.pattern.permute.xlu0 37
      %5792 = vperm.xlu0 %5791, %v5415
      %v5793 = vpop.permute.xlu0 %5792
      %5795 = vset.pattern.permute.xlu0 37
      %5796 = vperm.xlu0 %5795, %v5416
      %v5797 = vpop.permute.xlu0 %5796
      %5799 = vset.pattern.permute.xlu0 37
      %5800 = vperm.xlu0 %5799, %v5417
      %v5801 = vpop.permute.xlu0 %5800
      %v5803 = vmul.f32 %v5677, %v5643
      %v5804 = vmul.f32 %v5681, %v5644
      %v5805 = vmul.f32 %v5685, %v5645
      %v5806 = vmul.f32 %v5689, %v5646
      %v5807 = vmul.f32 %v5693, %v5647
      %v5808 = vmul.f32 %v5697, %v5648
      %v5809 = vmul.f32 %v5701, %v5649
      %v5810 = vmul.f32 %v5705, %v5650
      %v5811 = vmul.f32 %v5709, %v5651
      %v5812 = vmul.f32 %v5713, %v5652
      %v5813 = vmul.f32 %v5717, %v5653
      %v5814 = vmul.f32 %v5721, %v5654
      %v5815 = vmul.f32 %v5725, %v5655
      %v5816 = vmul.f32 %v5729, %v5656
      %v5817 = vmul.f32 %v5733, %v5657
      %v5818 = vmul.f32 %v5737, %v5658
      %v5819 = vmul.f32 %v5741, %v5659
      %v5820 = vmul.f32 %v5745, %v5660
      %v5821 = vmul.f32 %v5749, %v5661
      %v5822 = vmul.f32 %v5753, %v5662
      %v5823 = vmul.f32 %v5757, %v5663
      %v5824 = vmul.f32 %v5761, %v5664
      %v5825 = vmul.f32 %v5765, %v5665
      %v5826 = vmul.f32 %v5769, %v5666
      %v5827 = vmul.f32 %v5773, %v5667
      %v5828 = vmul.f32 %v5777, %v5668
      %v5829 = vmul.f32 %v5781, %v5669
      %v5830 = vmul.f32 %v5785, %v5670
      %v5831 = vmul.f32 %v5789, %v5671
      %v5832 = vmul.f32 %v5793, %v5672
      %v5833 = vmul.f32 %v5797, %v5673
      %v5834 = vmul.f32 %v5801, %v5674
      %v5835 = vadd.f32 %v5610, %v5803
      %v5836 = vadd.f32 %v5611, %v5804
      %v5837 = vadd.f32 %v5612, %v5805
      %v5838 = vadd.f32 %v5613, %v5806
      %v5839 = vadd.f32 %v5614, %v5807
      %v5840 = vadd.f32 %v5615, %v5808
      %v5841 = vadd.f32 %v5616, %v5809
      %v5842 = vadd.f32 %v5617, %v5810
      %v5843 = vadd.f32 %v5618, %v5811
      %v5844 = vadd.f32 %v5619, %v5812
      %v5845 = vadd.f32 %v5620, %v5813
      %v5846 = vadd.f32 %v5621, %v5814
      %v5847 = vadd.f32 %v5622, %v5815
      %v5848 = vadd.f32 %v5623, %v5816
      %v5849 = vadd.f32 %v5624, %v5817
      %v5850 = vadd.f32 %v5625, %v5818
      %v5851 = vadd.f32 %v5626, %v5819
      %v5852 = vadd.f32 %v5627, %v5820
      %v5853 = vadd.f32 %v5628, %v5821
      %v5854 = vadd.f32 %v5629, %v5822
      %v5855 = vadd.f32 %v5630, %v5823
      %v5856 = vadd.f32 %v5631, %v5824
      %v5857 = vadd.f32 %v5632, %v5825
      %v5858 = vadd.f32 %v5633, %v5826
      %v5859 = vadd.f32 %v5634, %v5827
      %v5860 = vadd.f32 %v5635, %v5828
      %v5861 = vadd.f32 %v5636, %v5829
      %v5862 = vadd.f32 %v5637, %v5830
      %v5863 = vadd.f32 %v5638, %v5831
      %v5864 = vadd.f32 %v5639, %v5832
      %v5865 = vadd.f32 %v5640, %v5833
      %v5866 = vadd.f32 %v5641, %v5834
      %s5867 = scalar_lea.vmem %s6, 512
      %v5868 = vld [vmem:[%s5867] sm:$0xff]
      %v5869 = vld [vmem:[%s5867 + $0x8] sm:$0xff]
      %v5870 = vld [vmem:[%s5867 + $0x10] sm:$0xff]
      %v5871 = vld [vmem:[%s5867 + $0x18] sm:$0xff]
      %v5872 = vld [vmem:[%s5867 + $0x20] sm:$0xff]
      %v5873 = vld [vmem:[%s5867 + $0x28] sm:$0xff]
      %v5874 = vld [vmem:[%s5867 + $0x30] sm:$0xff]
      %v5875 = vld [vmem:[%s5867 + $0x38] sm:$0xff]
      %v5876 = vld [vmem:[%s5867 + $0x40] sm:$0xff]
      %v5877 = vld [vmem:[%s5867 + $0x48] sm:$0xff]
      %v5878 = vld [vmem:[%s5867 + $0x50] sm:$0xff]
      %v5879 = vld [vmem:[%s5867 + $0x58] sm:$0xff]
      %v5880 = vld [vmem:[%s5867 + $0x60] sm:$0xff]
      %v5881 = vld [vmem:[%s5867 + $0x68] sm:$0xff]
      %v5882 = vld [vmem:[%s5867 + $0x70] sm:$0xff]
      %v5883 = vld [vmem:[%s5867 + $0x78] sm:$0xff]
      %v5884 = vld [vmem:[%s5867 + $0x80] sm:$0xff]
      %v5885 = vld [vmem:[%s5867 + $0x88] sm:$0xff]
      %v5886 = vld [vmem:[%s5867 + $0x90] sm:$0xff]
      %v5887 = vld [vmem:[%s5867 + $0x98] sm:$0xff]
      %v5888 = vld [vmem:[%s5867 + $0xa0] sm:$0xff]
      %v5889 = vld [vmem:[%s5867 + $0xa8] sm:$0xff]
      %v5890 = vld [vmem:[%s5867 + $0xb0] sm:$0xff]
      %v5891 = vld [vmem:[%s5867 + $0xb8] sm:$0xff]
      %v5892 = vld [vmem:[%s5867 + $0xc0] sm:$0xff]
      %v5893 = vld [vmem:[%s5867 + $0xc8] sm:$0xff]
      %v5894 = vld [vmem:[%s5867 + $0xd0] sm:$0xff]
      %v5895 = vld [vmem:[%s5867 + $0xd8] sm:$0xff]
      %v5896 = vld [vmem:[%s5867 + $0xe0] sm:$0xff]
      %v5897 = vld [vmem:[%s5867 + $0xe8] sm:$0xff]
      %v5898 = vld [vmem:[%s5867 + $0xf0] sm:$0xff]
      %v5899 = vld [vmem:[%s5867 + $0xf8] sm:$0xff]
      %5900 = vset.pattern.permute.xlu0 38
      %5901 = vperm.xlu0 %5900, %v5386
      %v5902 = vpop.permute.xlu0 %5901
      %5904 = vset.pattern.permute.xlu0 38
      %5905 = vperm.xlu0 %5904, %v5387
      %v5906 = vpop.permute.xlu0 %5905
      %5908 = vset.pattern.permute.xlu0 38
      %5909 = vperm.xlu0 %5908, %v5388
      %v5910 = vpop.permute.xlu0 %5909
      %5912 = vset.pattern.permute.xlu0 38
      %5913 = vperm.xlu0 %5912, %v5389
      %v5914 = vpop.permute.xlu0 %5913
      %5916 = vset.pattern.permute.xlu0 38
      %5917 = vperm.xlu0 %5916, %v5390
      %v5918 = vpop.permute.xlu0 %5917
      %5920 = vset.pattern.permute.xlu0 38
      %5921 = vperm.xlu0 %5920, %v5391
      %v5922 = vpop.permute.xlu0 %5921
      %5924 = vset.pattern.permute.xlu0 38
      %5925 = vperm.xlu0 %5924, %v5392
      %v5926 = vpop.permute.xlu0 %5925
      %5928 = vset.pattern.permute.xlu0 38
      %5929 = vperm.xlu0 %5928, %v5393
      %v5930 = vpop.permute.xlu0 %5929
      %5932 = vset.pattern.permute.xlu0 38
      %5933 = vperm.xlu0 %5932, %v5394
      %v5934 = vpop.permute.xlu0 %5933
      %5936 = vset.pattern.permute.xlu0 38
      %5937 = vperm.xlu0 %5936, %v5395
      %v5938 = vpop.permute.xlu0 %5937
      %5940 = vset.pattern.permute.xlu0 38
      %5941 = vperm.xlu0 %5940, %v5396
      %v5942 = vpop.permute.xlu0 %5941
      %5944 = vset.pattern.permute.xlu0 38
      %5945 = vperm.xlu0 %5944, %v5397
      %v5946 = vpop.permute.xlu0 %5945
      %5948 = vset.pattern.permute.xlu0 38
      %5949 = vperm.xlu0 %5948, %v5398
      %v5950 = vpop.permute.xlu0 %5949
      %5952 = vset.pattern.permute.xlu0 38
      %5953 = vperm.xlu0 %5952, %v5399
      %v5954 = vpop.permute.xlu0 %5953
      %5956 = vset.pattern.permute.xlu0 38
      %5957 = vperm.xlu0 %5956, %v5400
      %v5958 = vpop.permute.xlu0 %5957
      %5960 = vset.pattern.permute.xlu0 38
      %5961 = vperm.xlu0 %5960, %v5401
      %v5962 = vpop.permute.xlu0 %5961
      %5964 = vset.pattern.permute.xlu0 38
      %5965 = vperm.xlu0 %5964, %v5402
      %v5966 = vpop.permute.xlu0 %5965
      %5968 = vset.pattern.permute.xlu0 38
      %5969 = vperm.xlu0 %5968, %v5403
      %v5970 = vpop.permute.xlu0 %5969
      %5972 = vset.pattern.permute.xlu0 38
      %5973 = vperm.xlu0 %5972, %v5404
      %v5974 = vpop.permute.xlu0 %5973
      %5976 = vset.pattern.permute.xlu0 38
      %5977 = vperm.xlu0 %5976, %v5405
      %v5978 = vpop.permute.xlu0 %5977
      %5980 = vset.pattern.permute.xlu0 38
      %5981 = vperm.xlu0 %5980, %v5406
      %v5982 = vpop.permute.xlu0 %5981
      %5984 = vset.pattern.permute.xlu0 38
      %5985 = vperm.xlu0 %5984, %v5407
      %v5986 = vpop.permute.xlu0 %5985
      %5988 = vset.pattern.permute.xlu0 38
      %5989 = vperm.xlu0 %5988, %v5408
      %v5990 = vpop.permute.xlu0 %5989
      %5992 = vset.pattern.permute.xlu0 38
      %5993 = vperm.xlu0 %5992, %v5409
      %v5994 = vpop.permute.xlu0 %5993
      %5996 = vset.pattern.permute.xlu0 38
      %5997 = vperm.xlu0 %5996, %v5410
      %v5998 = vpop.permute.xlu0 %5997
      %6000 = vset.pattern.permute.xlu0 38
      %6001 = vperm.xlu0 %6000, %v5411
      %v6002 = vpop.permute.xlu0 %6001
      %6004 = vset.pattern.permute.xlu0 38
      %6005 = vperm.xlu0 %6004, %v5412
      %v6006 = vpop.permute.xlu0 %6005
      %6008 = vset.pattern.permute.xlu0 38
      %6009 = vperm.xlu0 %6008, %v5413
      %v6010 = vpop.permute.xlu0 %6009
      %6012 = vset.pattern.permute.xlu0 38
      %6013 = vperm.xlu0 %6012, %v5414
      %v6014 = vpop.permute.xlu0 %6013
      %6016 = vset.pattern.permute.xlu0 38
      %6017 = vperm.xlu0 %6016, %v5415
      %v6018 = vpop.permute.xlu0 %6017
      %6020 = vset.pattern.permute.xlu0 38
      %6021 = vperm.xlu0 %6020, %v5416
      %v6022 = vpop.permute.xlu0 %6021
      %6024 = vset.pattern.permute.xlu0 38
      %6025 = vperm.xlu0 %6024, %v5417
      %v6026 = vpop.permute.xlu0 %6025
      %v6028 = vmul.f32 %v5902, %v5868
      %v6029 = vmul.f32 %v5906, %v5869
      %v6030 = vmul.f32 %v5910, %v5870
      %v6031 = vmul.f32 %v5914, %v5871
      %v6032 = vmul.f32 %v5918, %v5872
      %v6033 = vmul.f32 %v5922, %v5873
      %v6034 = vmul.f32 %v5926, %v5874
      %v6035 = vmul.f32 %v5930, %v5875
      %v6036 = vmul.f32 %v5934, %v5876
      %v6037 = vmul.f32 %v5938, %v5877
      %v6038 = vmul.f32 %v5942, %v5878
      %v6039 = vmul.f32 %v5946, %v5879
      %v6040 = vmul.f32 %v5950, %v5880
      %v6041 = vmul.f32 %v5954, %v5881
      %v6042 = vmul.f32 %v5958, %v5882
      %v6043 = vmul.f32 %v5962, %v5883
      %v6044 = vmul.f32 %v5966, %v5884
      %v6045 = vmul.f32 %v5970, %v5885
      %v6046 = vmul.f32 %v5974, %v5886
      %v6047 = vmul.f32 %v5978, %v5887
      %v6048 = vmul.f32 %v5982, %v5888
      %v6049 = vmul.f32 %v5986, %v5889
      %v6050 = vmul.f32 %v5990, %v5890
      %v6051 = vmul.f32 %v5994, %v5891
      %v6052 = vmul.f32 %v5998, %v5892
      %v6053 = vmul.f32 %v6002, %v5893
      %v6054 = vmul.f32 %v6006, %v5894
      %v6055 = vmul.f32 %v6010, %v5895
      %v6056 = vmul.f32 %v6014, %v5896
      %v6057 = vmul.f32 %v6018, %v5897
      %v6058 = vmul.f32 %v6022, %v5898
      %v6059 = vmul.f32 %v6026, %v5899
      %v6060 = vadd.f32 %v5835, %v6028
      %v6061 = vadd.f32 %v5836, %v6029
      %v6062 = vadd.f32 %v5837, %v6030
      %v6063 = vadd.f32 %v5838, %v6031
      %v6064 = vadd.f32 %v5839, %v6032
      %v6065 = vadd.f32 %v5840, %v6033
      %v6066 = vadd.f32 %v5841, %v6034
      %v6067 = vadd.f32 %v5842, %v6035
      %v6068 = vadd.f32 %v5843, %v6036
      %v6069 = vadd.f32 %v5844, %v6037
      %v6070 = vadd.f32 %v5845, %v6038
      %v6071 = vadd.f32 %v5846, %v6039
      %v6072 = vadd.f32 %v5847, %v6040
      %v6073 = vadd.f32 %v5848, %v6041
      %v6074 = vadd.f32 %v5849, %v6042
      %v6075 = vadd.f32 %v5850, %v6043
      %v6076 = vadd.f32 %v5851, %v6044
      %v6077 = vadd.f32 %v5852, %v6045
      %v6078 = vadd.f32 %v5853, %v6046
      %v6079 = vadd.f32 %v5854, %v6047
      %v6080 = vadd.f32 %v5855, %v6048
      %v6081 = vadd.f32 %v5856, %v6049
      %v6082 = vadd.f32 %v5857, %v6050
      %v6083 = vadd.f32 %v5858, %v6051
      %v6084 = vadd.f32 %v5859, %v6052
      %v6085 = vadd.f32 %v5860, %v6053
      %v6086 = vadd.f32 %v5861, %v6054
      %v6087 = vadd.f32 %v5862, %v6055
      %v6088 = vadd.f32 %v5863, %v6056
      %v6089 = vadd.f32 %v5864, %v6057
      %v6090 = vadd.f32 %v5865, %v6058
      %v6091 = vadd.f32 %v5866, %v6059
      %s6092 = scalar_lea.vmem %s6, 768
      %v6093 = vld [vmem:[%s6092] sm:$0xff]
      %v6094 = vld [vmem:[%s6092 + $0x8] sm:$0xff]
      %v6095 = vld [vmem:[%s6092 + $0x10] sm:$0xff]
      %v6096 = vld [vmem:[%s6092 + $0x18] sm:$0xff]
      %v6097 = vld [vmem:[%s6092 + $0x20] sm:$0xff]
      %v6098 = vld [vmem:[%s6092 + $0x28] sm:$0xff]
      %v6099 = vld [vmem:[%s6092 + $0x30] sm:$0xff]
      %v6100 = vld [vmem:[%s6092 + $0x38] sm:$0xff]
      %v6101 = vld [vmem:[%s6092 + $0x40] sm:$0xff]
      %v6102 = vld [vmem:[%s6092 + $0x48] sm:$0xff]
      %v6103 = vld [vmem:[%s6092 + $0x50] sm:$0xff]
      %v6104 = vld [vmem:[%s6092 + $0x58] sm:$0xff]
      %v6105 = vld [vmem:[%s6092 + $0x60] sm:$0xff]
      %v6106 = vld [vmem:[%s6092 + $0x68] sm:$0xff]
      %v6107 = vld [vmem:[%s6092 + $0x70] sm:$0xff]
      %v6108 = vld [vmem:[%s6092 + $0x78] sm:$0xff]
      %v6109 = vld [vmem:[%s6092 + $0x80] sm:$0xff]
      %v6110 = vld [vmem:[%s6092 + $0x88] sm:$0xff]
      %v6111 = vld [vmem:[%s6092 + $0x90] sm:$0xff]
      %v6112 = vld [vmem:[%s6092 + $0x98] sm:$0xff]
      %v6113 = vld [vmem:[%s6092 + $0xa0] sm:$0xff]
      %v6114 = vld [vmem:[%s6092 + $0xa8] sm:$0xff]
      %v6115 = vld [vmem:[%s6092 + $0xb0] sm:$0xff]
      %v6116 = vld [vmem:[%s6092 + $0xb8] sm:$0xff]
      %v6117 = vld [vmem:[%s6092 + $0xc0] sm:$0xff]
      %v6118 = vld [vmem:[%s6092 + $0xc8] sm:$0xff]
      %v6119 = vld [vmem:[%s6092 + $0xd0] sm:$0xff]
      %v6120 = vld [vmem:[%s6092 + $0xd8] sm:$0xff]
      %v6121 = vld [vmem:[%s6092 + $0xe0] sm:$0xff]
      %v6122 = vld [vmem:[%s6092 + $0xe8] sm:$0xff]
      %v6123 = vld [vmem:[%s6092 + $0xf0] sm:$0xff]
      %v6124 = vld [vmem:[%s6092 + $0xf8] sm:$0xff]
      %6125 = vset.pattern.permute.xlu0 39
      %6126 = vperm.xlu0 %6125, %v5386
      %v6127 = vpop.permute.xlu0 %6126
      %6129 = vset.pattern.permute.xlu0 39
      %6130 = vperm.xlu0 %6129, %v5387
      %v6131 = vpop.permute.xlu0 %6130
      %6133 = vset.pattern.permute.xlu0 39
      %6134 = vperm.xlu0 %6133, %v5388
      %v6135 = vpop.permute.xlu0 %6134
      %6137 = vset.pattern.permute.xlu0 39
      %6138 = vperm.xlu0 %6137, %v5389
      %v6139 = vpop.permute.xlu0 %6138
      %6141 = vset.pattern.permute.xlu0 39
      %6142 = vperm.xlu0 %6141, %v5390
      %v6143 = vpop.permute.xlu0 %6142
      %6145 = vset.pattern.permute.xlu0 39
      %6146 = vperm.xlu0 %6145, %v5391
      %v6147 = vpop.permute.xlu0 %6146
      %6149 = vset.pattern.permute.xlu0 39
      %6150 = vperm.xlu0 %6149, %v5392
      %v6151 = vpop.permute.xlu0 %6150
      %6153 = vset.pattern.permute.xlu0 39
      %6154 = vperm.xlu0 %6153, %v5393
      %v6155 = vpop.permute.xlu0 %6154
      %6157 = vset.pattern.permute.xlu0 39
      %6158 = vperm.xlu0 %6157, %v5394
      %v6159 = vpop.permute.xlu0 %6158
      %6161 = vset.pattern.permute.xlu0 39
      %6162 = vperm.xlu0 %6161, %v5395
      %v6163 = vpop.permute.xlu0 %6162
      %6165 = vset.pattern.permute.xlu0 39
      %6166 = vperm.xlu0 %6165, %v5396
      %v6167 = vpop.permute.xlu0 %6166
      %6169 = vset.pattern.permute.xlu0 39
      %6170 = vperm.xlu0 %6169, %v5397
      %v6171 = vpop.permute.xlu0 %6170
      %6173 = vset.pattern.permute.xlu0 39
      %6174 = vperm.xlu0 %6173, %v5398
      %v6175 = vpop.permute.xlu0 %6174
      %6177 = vset.pattern.permute.xlu0 39
      %6178 = vperm.xlu0 %6177, %v5399
      %v6179 = vpop.permute.xlu0 %6178
      %6181 = vset.pattern.permute.xlu0 39
      %6182 = vperm.xlu0 %6181, %v5400
      %v6183 = vpop.permute.xlu0 %6182
      %6185 = vset.pattern.permute.xlu0 39
      %6186 = vperm.xlu0 %6185, %v5401
      %v6187 = vpop.permute.xlu0 %6186
      %6189 = vset.pattern.permute.xlu0 39
      %6190 = vperm.xlu0 %6189, %v5402
      %v6191 = vpop.permute.xlu0 %6190
      %6193 = vset.pattern.permute.xlu0 39
      %6194 = vperm.xlu0 %6193, %v5403
      %v6195 = vpop.permute.xlu0 %6194
      %6197 = vset.pattern.permute.xlu0 39
      %6198 = vperm.xlu0 %6197, %v5404
      %v6199 = vpop.permute.xlu0 %6198
      %6201 = vset.pattern.permute.xlu0 39
      %6202 = vperm.xlu0 %6201, %v5405
      %v6203 = vpop.permute.xlu0 %6202
      %6205 = vset.pattern.permute.xlu0 39
      %6206 = vperm.xlu0 %6205, %v5406
      %v6207 = vpop.permute.xlu0 %6206
      %6209 = vset.pattern.permute.xlu0 39
      %6210 = vperm.xlu0 %6209, %v5407
      %v6211 = vpop.permute.xlu0 %6210
      %6213 = vset.pattern.permute.xlu0 39
      %6214 = vperm.xlu0 %6213, %v5408
      %v6215 = vpop.permute.xlu0 %6214
      %6217 = vset.pattern.permute.xlu0 39
      %6218 = vperm.xlu0 %6217, %v5409
      %v6219 = vpop.permute.xlu0 %6218
      %6221 = vset.pattern.permute.xlu0 39
      %6222 = vperm.xlu0 %6221, %v5410
      %v6223 = vpop.permute.xlu0 %6222
      %6225 = vset.pattern.permute.xlu0 39
      %6226 = vperm.xlu0 %6225, %v5411
      %v6227 = vpop.permute.xlu0 %6226
      %6229 = vset.pattern.permute.xlu0 39
      %6230 = vperm.xlu0 %6229, %v5412
      %v6231 = vpop.permute.xlu0 %6230
      %6233 = vset.pattern.permute.xlu0 39
      %6234 = vperm.xlu0 %6233, %v5413
      %v6235 = vpop.permute.xlu0 %6234
      %6237 = vset.pattern.permute.xlu0 39
      %6238 = vperm.xlu0 %6237, %v5414
      %v6239 = vpop.permute.xlu0 %6238
      %6241 = vset.pattern.permute.xlu0 39
      %6242 = vperm.xlu0 %6241, %v5415
      %v6243 = vpop.permute.xlu0 %6242
      %6245 = vset.pattern.permute.xlu0 39
      %6246 = vperm.xlu0 %6245, %v5416
      %v6247 = vpop.permute.xlu0 %6246
      %6249 = vset.pattern.permute.xlu0 39
      %6250 = vperm.xlu0 %6249, %v5417
      %v6251 = vpop.permute.xlu0 %6250
      %v6253 = vmul.f32 %v6127, %v6093
      %v6254 = vmul.f32 %v6131, %v6094
      %v6255 = vmul.f32 %v6135, %v6095
      %v6256 = vmul.f32 %v6139, %v6096
      %v6257 = vmul.f32 %v6143, %v6097
      %v6258 = vmul.f32 %v6147, %v6098
      %v6259 = vmul.f32 %v6151, %v6099
      %v6260 = vmul.f32 %v6155, %v6100
      %v6261 = vmul.f32 %v6159, %v6101
      %v6262 = vmul.f32 %v6163, %v6102
      %v6263 = vmul.f32 %v6167, %v6103
      %v6264 = vmul.f32 %v6171, %v6104
      %v6265 = vmul.f32 %v6175, %v6105
      %v6266 = vmul.f32 %v6179, %v6106
      %v6267 = vmul.f32 %v6183, %v6107
      %v6268 = vmul.f32 %v6187, %v6108
      %v6269 = vmul.f32 %v6191, %v6109
      %v6270 = vmul.f32 %v6195, %v6110
      %v6271 = vmul.f32 %v6199, %v6111
      %v6272 = vmul.f32 %v6203, %v6112
      %v6273 = vmul.f32 %v6207, %v6113
      %v6274 = vmul.f32 %v6211, %v6114
      %v6275 = vmul.f32 %v6215, %v6115
      %v6276 = vmul.f32 %v6219, %v6116
      %v6277 = vmul.f32 %v6223, %v6117
      %v6278 = vmul.f32 %v6227, %v6118
      %v6279 = vmul.f32 %v6231, %v6119
      %v6280 = vmul.f32 %v6235, %v6120
      %v6281 = vmul.f32 %v6239, %v6121
      %v6282 = vmul.f32 %v6243, %v6122
      %v6283 = vmul.f32 %v6247, %v6123
      %v6284 = vmul.f32 %v6251, %v6124
      %v6285 = vadd.f32 %v6060, %v6253
      %v6286 = vadd.f32 %v6061, %v6254
      %v6287 = vadd.f32 %v6062, %v6255
      %v6288 = vadd.f32 %v6063, %v6256
      %v6289 = vadd.f32 %v6064, %v6257
      %v6290 = vadd.f32 %v6065, %v6258
      %v6291 = vadd.f32 %v6066, %v6259
      %v6292 = vadd.f32 %v6067, %v6260
      %v6293 = vadd.f32 %v6068, %v6261
      %v6294 = vadd.f32 %v6069, %v6262
      %v6295 = vadd.f32 %v6070, %v6263
      %v6296 = vadd.f32 %v6071, %v6264
      %v6297 = vadd.f32 %v6072, %v6265
      %v6298 = vadd.f32 %v6073, %v6266
      %v6299 = vadd.f32 %v6074, %v6267
      %v6300 = vadd.f32 %v6075, %v6268
      %v6301 = vadd.f32 %v6076, %v6269
      %v6302 = vadd.f32 %v6077, %v6270
      %v6303 = vadd.f32 %v6078, %v6271
      %v6304 = vadd.f32 %v6079, %v6272
      %v6305 = vadd.f32 %v6080, %v6273
      %v6306 = vadd.f32 %v6081, %v6274
      %v6307 = vadd.f32 %v6082, %v6275
      %v6308 = vadd.f32 %v6083, %v6276
      %v6309 = vadd.f32 %v6084, %v6277
      %v6310 = vadd.f32 %v6085, %v6278
      %v6311 = vadd.f32 %v6086, %v6279
      %v6312 = vadd.f32 %v6087, %v6280
      %v6313 = vadd.f32 %v6088, %v6281
      %v6314 = vadd.f32 %v6089, %v6282
      %v6315 = vadd.f32 %v6090, %v6283
      %v6316 = vadd.f32 %v6091, %v6284
      %v6317 = vld [vmem:[%s7] sm:$0xff]
      %v6318 = vld [vmem:[%s7 + $0x8] sm:$0xff]
      %v6319 = vld [vmem:[%s7 + $0x10] sm:$0xff]
      %v6320 = vld [vmem:[%s7 + $0x18] sm:$0xff]
      %v6321 = vpack.c.bf16 %v6286, %v6285
      %v6322 = vpack.c.bf16 %v6288, %v6287
      %v6323 = vpack.c.bf16 %v6290, %v6289
      %v6324 = vpack.c.bf16 %v6292, %v6291
      %v6325 = vpack.c.bf16 %v6294, %v6293
      %v6326 = vpack.c.bf16 %v6296, %v6295
      %v6327 = vpack.c.bf16 %v6298, %v6297
      %v6328 = vpack.c.bf16 %v6300, %v6299
      %v6329 = vpack.c.bf16 %v6302, %v6301
      %v6330 = vpack.c.bf16 %v6304, %v6303
      %v6331 = vpack.c.bf16 %v6306, %v6305
      %v6332 = vpack.c.bf16 %v6308, %v6307
      %v6333 = vpack.c.bf16 %v6310, %v6309
      %v6334 = vpack.c.bf16 %v6312, %v6311
      %v6335 = vpack.c.bf16 %v6314, %v6313
      %v6336 = vpack.c.bf16 %v6316, %v6315
      %v6337 = vld [vmem:[%s8] sm:$0x1]
      %v6339 = vperm.slane %v6337, 0
      %v6345 = vunpack.c.l.b16 %v6317
      %v6346 = vunpack.c.h.b16 %v6317
      %v6347 = vunpack.c.l.b16 %v6318
      %v6348 = vunpack.c.h.b16 %v6318
      %v6349 = vunpack.c.l.b16 %v6319
      %v6350 = vunpack.c.h.b16 %v6319
      %v6351 = vunpack.c.l.b16 %v6320
      %v6352 = vunpack.c.h.b16 %v6320
      %v6353 = vpack.c.b16 %v6347, %v6345
      %v6354 = vpack.c.b16 %v6348, %v6346
      %v6355 = vpack.c.b16 %v6351, %v6349
      %v6356 = vpack.c.b16 %v6352, %v6350
      %6361 = vmatpush.bf16.msra.mxu0 %v6328
      %6362 = vmatpush.bf16.msra.mxu0 %v6327
      %6363 = vmatpush.bf16.msra.mxu0 %v6326
      %6364 = vmatpush.bf16.msra.mxu0 %v6325
      %6365 = vmatpush.bf16.msra.mxu0 %v6324
      %6366 = vmatpush.bf16.msra.mxu0 %v6323
      %6367 = vmatpush.bf16.msra.mxu0 %v6322
      %6368 = vmatpush.bf16.msra.mxu0 %v6321
      %6369 = vmatmul.bf16.gmra.mxu0 %v6353
      %v6370 = vpop.f32.mrf.mxu0
      %v6371 = vadd.f32 %v6339, %v6370
      %v6372 = vpop.f32.mrf.mxu0
      %v6373 = vadd.f32 %v6339, %v6372
      %6374 = vmatmul.bf16.gmra.mxu0 %v6355
      %v6375 = vpop.f32.mrf.mxu0
      %v6376 = vadd.f32 %v6339, %v6375
      %v6377 = vpop.f32.mrf.mxu0
      %v6378 = vadd.f32 %v6339, %v6377
      %6379 = vdwg.mxu0
      %6380 = vmatpush.bf16.msra.mxu0 %v6336
      %6381 = vmatpush.bf16.msra.mxu0 %v6335
      %6382 = vmatpush.bf16.msra.mxu0 %v6334
      %6383 = vmatpush.bf16.msra.mxu0 %v6333
      %6384 = vmatpush.bf16.msra.mxu0 %v6332
      %6385 = vmatpush.bf16.msra.mxu0 %v6331
      %6386 = vmatpush.bf16.msra.mxu0 %v6330
      %6387 = vmatpush.bf16.msra.mxu0 %v6329
      %6388 = vmatmul.bf16.gmra.mxu0 %v6354
      %v6389 = vpop.f32.mrf.mxu0
      %v6390 = vadd.f32 %v6371, %v6389
      %v6391 = vpop.f32.mrf.mxu0
      %v6392 = vadd.f32 %v6373, %v6391
      %6393 = vmatmul.bf16.gmra.mxu0 %v6356
      %v6394 = vpop.f32.mrf.mxu0
      %v6395 = vadd.f32 %v6376, %v6394
      %v6396 = vpop.f32.mrf.mxu0
      %v6397 = vadd.f32 %v6378, %v6396
      %6398 = vdwg.mxu0
      %vm6399 = vcmask 64512
      %6400 = vst.msk [vmem:[%s332] sm:$0xff] %vm6399, %v6390
      %6401 = vst.msk [vmem:[%s332 + $0x8] sm:$0xff] %vm6399, %v6392
      %6402 = vst.msk [vmem:[%s332 + $0x10] sm:$0xff] %vm6399, %v6395
      %6403 = vst.msk [vmem:[%s332 + $0x18] sm:$0xff] %vm6399, %v6397
      %s6404 = smul.u32 4, %s20
      %p6405 = scmp.lt.s32.totalorder %s6404, 7
      %s6406 = scalar_select %p6405, %s6404, 7
      %s6407 = smul.addr %s6406, 8
      %s6408 = scalar_lea.vmem %s9, %s6407
      // Predicated region
      $region57: #{psf_forward.1} parent=55 // pred_check
        %p6409 = pneg %p232
      $region58: #{psf_forward.1} parent=55 // pred_check_branch
        %6411 = sbr.rel (%p6409) target = $region60
      $region59: #{psf_forward.1} parent=55 // pred_region
        %s6412 = smul.u32 4, %s20
      $region60: #{psf_forward.1} parent=55 // pred_fallthru
        _
    $region56: #{psf_forward.1} parent=5 // pred_fallthru
      _
    %p6413 = scmp.le.s32.totalorder 2, %s15
    // Predicated region
    $region61: #{psf_forward.1} parent=5 // pred_check
      %p6414 = pneg %p6413
    $region62: #{psf_forward.1} parent=5 // pred_check_branch
      %6416 = sbr.rel (%p6414) target = $region64
    $region63: #{psf_forward.1} parent=5 // pred_region
      %s6417 = ssub.s32 %s15, 2
      // Predicated region
      $region65: #{psf_forward.1} parent=63 // pred_check
        %p6418 = pneg %p238
      $region66: #{psf_forward.1} parent=63 // pred_check_branch
        %6420 = sbr.rel (%p6418) target = $region68
      $region67: #{psf_forward.1} parent=63 // pred_region
        %s6421 = smul.u32 4, %s21
        %p6422 = scmp.lt.s32.totalorder %s6421, 7
        %s6423 = scalar_select %p6422, %s6421, 7
        %s6424 = smul.addr %s6423, 8
        %s6425 = scalar_lea.vmem %s9, %s6424
      $region68: #{psf_forward.1} parent=63 // pred_fallthru
        _
    $region64: #{psf_forward.1} parent=5 // pred_fallthru
      _
  $region6: #{psf_forward.1} parent=0 // loop_footer
    %s19 = sadd.s32 1, %s15
  $region7: #{psf_forward.1} parent=0 // loop_footer_branch
    %14 = sbr.rel target = $region3
  $region8: #{psf_forward.1} parent=0 // loop_exit
    _

</llo_original>
